<compile_context>
chip_gen: v7x
topology: tpu7x:2x2x1
jax: 0.10.0
libtpu: 0.0.40
codegen_flags: <defaults>
</compile_context>

<pallas_src>
import jax
import jax.numpy as jnp
from jax.experimental import pallas as pl
from jax.experimental.pallas import tpu as pltpu

LATENT_DIM = 10
HIDDEN = 400
IN_DIM = 784

# lane-aligned padded dims (only where it matters for the MXU / z path)
LAT_PAD = 128     # mu / logvar each occupy a 128-lane half of the fused head
HID_PAD = 512     # 400 -> 512


def _round_up(x, m):
    return (x + m - 1) // m * m


def _choose_tm(B):
    """Batch tile: >=16 rows (bf16 sublanes), <=512, and >=2 grid steps when possible."""
    if B <= 16:
        return 16
    tm = _round_up((B + 1) // 2, 16)   # aim for at least 2 grid steps (v7x megacore)
    return min(tm, 512)


def _vae_kernel(x_ref, eps_ref,
                w1_ref, b1_ref,
                w2_ref, b2_ref,
                w3_ref, b3_ref,
                w4_ref, b4_ref,
                recon_ref, mu_ref, logvar_ref):
    # ---- encoder: Linear(784,400) -> ReLU -> Linear(400, 20) ----
    x = x_ref[...].astype(jnp.bfloat16)                                   # (TM, 784)
    h1 = jnp.dot(x, w1_ref[...], preferred_element_type=jnp.float32) + b1_ref[...]
    h1 = jnp.maximum(h1, 0.0).astype(jnp.bfloat16)                        # (TM, HID_PAD)

    # fused mu|logvar head: one N=256 matmul, slice at the 128-lane boundary
    head = jnp.dot(h1, w2_ref[...], preferred_element_type=jnp.float32) + b2_ref[...]
    mu = head[:, :LAT_PAD]                                                # (TM, 128) f32
    logvar = head[:, LAT_PAD:]                                            # (TM, 128) f32

    # ---- reparameterize: z = mu + eps * exp(0.5 * logvar) ----
    # pad lanes: mu = logvar = eps = 0 there (w2/b2 pad cols zero)  =>  z pad = 0
    std = jnp.exp(0.5 * logvar)
    eps = eps_ref[...].astype(jnp.float32)
    z = (mu + eps * std).astype(jnp.bfloat16)                             # (TM, LAT_PAD)

    # ---- decoder: Linear(10,400) -> ReLU -> Linear(400,784) -> Sigmoid ----
    h2 = jnp.dot(z, w3_ref[...], preferred_element_type=jnp.float32) + b3_ref[...]
    h2 = jnp.maximum(h2, 0.0).astype(jnp.bfloat16)                        # (TM, HID_PAD)
    logits = jnp.dot(h2, w4_ref[...], preferred_element_type=jnp.float32) + b4_ref[...]
    # sigmoid via EUP exp + approx reciprocal (VPU divide stays off the critical path)
    recon = pl.reciprocal(1.0 + jnp.exp(-logits), approx=True)
    recon_ref[...] = recon.astype(jnp.bfloat16)                           # (TM, 784) bf16

    mu_ref[...] = mu[:, :LATENT_DIM]                                      # (TM, 10)
    logvar_ref[...] = logvar[:, :LATENT_DIM]                              # (TM, 10)


def vae_forward(x, eps, params):
    """x: (B, 1, 28, 28) or (B, 784) f32; eps: (B, LATENT_DIM) f32.
    Returns (recon bf16 (B,784), mu f32 (B,10), logvar f32 (B,10))."""
    x2d = x.reshape(-1, IN_DIM).astype(jnp.float32)
    B = x2d.shape[0]

    tm = _choose_tm(B)
    b_pad = _round_up(B, tm)

    # Only the batch axis is ever padded; feature dims stay natural width.
    if b_pad != B:
        x2d = jnp.pad(x2d, ((0, b_pad - B), (0, 0)))
    # eps is tiny: pad it to the 128-lane z width once (bf16 halves its DMA).
    eps_p = jnp.zeros((b_pad, LAT_PAD), jnp.bfloat16).at[:B, :LATENT_DIM].set(
        eps.astype(jnp.bfloat16))

    (w1, b1, w2, b2, w3, b3, w4, b4) = params

    grid = (b_pad // tm,)

    def row_spec(feat):
        return pl.BlockSpec((tm, feat), lambda i: (i, 0))

    def res_spec(shape):
        # weight/bias resident in VMEM: constant block index across the grid
        return pl.BlockSpec(shape, lambda i: (0, 0))

    recon_p, mu_p, logvar_p = pl.pallas_call(
        _vae_kernel,
        out_shape=(
            jax.ShapeDtypeStruct((b_pad, IN_DIM), jnp.bfloat16),     # recon
            jax.ShapeDtypeStruct((b_pad, LATENT_DIM), jnp.float32),  # mu
            jax.ShapeDtypeStruct((b_pad, LATENT_DIM), jnp.float32),  # logvar
        ),
        grid=grid,
        in_specs=[
            row_spec(IN_DIM),               # x        (tm, 784) f32
            row_spec(LAT_PAD),              # eps      (tm, 128) bf16
            res_spec((IN_DIM, HID_PAD)),    # w1       (784, 512) bf16
            res_spec((1, HID_PAD)),         # b1
            res_spec((HID_PAD, 2 * LAT_PAD)),  # w2 fused mu|logvar (512, 256) bf16
            res_spec((1, 2 * LAT_PAD)),     # b2
            res_spec((LAT_PAD, HID_PAD)),   # w3       (128, 512) bf16
            res_spec((1, HID_PAD)),         # b3
            res_spec((HID_PAD, IN_DIM)),    # w4       (512, 784) bf16
            res_spec((1, IN_DIM)),          # b4
        ],
        out_specs=(
            row_spec(IN_DIM),
            row_spec(LATENT_DIM),
            row_spec(LATENT_DIM),
        ),
        compiler_params=pltpu.CompilerParams(
            dimension_semantics=("parallel",),
            vmem_limit_bytes=32 * 1024 * 1024,
        ),
    )(x2d, eps_p, w1, b1, w2, b2, w3, b3, w4, b4)

    if b_pad != B:
        return recon_p[:B], mu_p[:B], logvar_p[:B]
    return recon_p, mu_p, logvar_p


def pack_params(w1, b1, w2, b2, w3, b3, w4, b4):
    """Pack unpadded (in, out)-layout f32 weights into the kernel's padded/bf16
    layout. Padded regions are zero BY CONSTRUCTION (required invariant)."""
    def pad_w(w, rows, cols):
        out = jnp.zeros((rows, cols), jnp.float32).at[:w.shape[0], :w.shape[1]].set(w)
        return out.astype(jnp.bfloat16)

    def pad_b(b, cols):
        return jnp.zeros((1, cols), jnp.float32).at[:, :b.shape[1]].set(b)

    # fused mu|logvar head: mu -> lanes [0:10], logvar -> lanes [128:138]
    w2f = jnp.zeros((HID_PAD, 2 * LAT_PAD), jnp.float32)
    w2f = w2f.at[:HIDDEN, :LATENT_DIM].set(w2[:, :LATENT_DIM])
    w2f = w2f.at[:HIDDEN, LAT_PAD:LAT_PAD + LATENT_DIM].set(w2[:, LATENT_DIM:])
    b2f = jnp.zeros((1, 2 * LAT_PAD), jnp.float32)
    b2f = b2f.at[:, :LATENT_DIM].set(b2[:, :LATENT_DIM])
    b2f = b2f.at[:, LAT_PAD:LAT_PAD + LATENT_DIM].set(b2[:, LATENT_DIM:])

    return (
        pad_w(w1, IN_DIM, HID_PAD), pad_b(b1, HID_PAD),
        w2f.astype(jnp.bfloat16), b2f,
        pad_w(w3, LAT_PAD, HID_PAD), pad_b(b3, HID_PAD),
        pad_w(w4, HID_PAD, IN_DIM), pad_b(b4, IN_DIM),
    )


def init_params(key):
    """Deterministic init. Weights stored transposed vs. PyTorch ((in, out))."""
    ks = jax.random.split(key, 8)
    scale = 0.05

    def lin(kw, kb, fan_in, fan_out):
        w = scale * jax.random.normal(kw, (fan_in, fan_out), jnp.float32)
        b = scale * jax.random.normal(kb, (1, fan_out), jnp.float32)
        return w, b

    w1, b1 = lin(ks[0], ks[1], IN_DIM, HIDDEN)           # encoder Linear(784,400)
    w2, b2 = lin(ks[2], ks[3], HIDDEN, 2 * LATENT_DIM)   # encoder Linear(400,20)
    w3, b3 = lin(ks[4], ks[5], LATENT_DIM, HIDDEN)       # decoder Linear(10,400)
    w4, b4 = lin(ks[6], ks[7], HIDDEN, IN_DIM)           # decoder Linear(400,784)
    return pack_params(w1, b1, w2, b2, w3, b3, w4, b4)


def _reference_forward(x, eps, params):
    """Pure-JAX reference mirroring the kernel's bf16-matmul / f32-accumulate math."""
    (w1, b1, w2, b2, w3, b3, w4, b4) = params
    x2d = x.reshape(-1, IN_DIM).astype(jnp.bfloat16)
    B = x2d.shape[0]

    h1 = jnp.maximum(jnp.dot(x2d, w1, preferred_element_type=jnp.float32) + b1, 0.0)
    h1 = h1.astype(jnp.bfloat16)
    head = jnp.dot(h1, w2, preferred_element_type=jnp.float32) + b2
    mu = head[:, :LATENT_DIM]
    logvar = head[:, LAT_PAD:LAT_PAD + LATENT_DIM]

    eps_f = eps.astype(jnp.bfloat16).astype(jnp.float32)
    z10 = mu + eps_f * jnp.exp(0.5 * logvar)
    z = jnp.zeros((B, LAT_PAD), jnp.float32).at[:, :LATENT_DIM].set(z10).astype(jnp.bfloat16)

    h2 = jnp.maximum(jnp.dot(z, w3, preferred_element_type=jnp.float32) + b3, 0.0)
    h2 = h2.astype(jnp.bfloat16)
    recon = jax.nn.sigmoid(jnp.dot(h2, w4, preferred_element_type=jnp.float32) + b4)
    return recon, mu, logvar


if __name__ == "__main__":
    key = jax.random.PRNGKey(0)
    k_params, k_x, k_eps = jax.random.split(key, 3)

    B = 2
    x = jax.random.uniform(k_x, (B, 1, 28, 28), jnp.float32)      # MNIST-like NCHW
    eps = jax.random.normal(k_eps, (B, LATENT_DIM), jnp.float32)  # reparam noise
    params = init_params(k_params)

    recon, mu, logvar = vae_forward(x, eps, params)
    jax.block_until_ready((recon, mu, logvar))

    # sanity check vs pure-JAX reference (same bf16/f32 math; exact sigmoid)
    r_ref, mu_ref, lv_ref = _reference_forward(x, eps, params)
    assert recon.shape == (B, IN_DIM)
    assert mu.shape == (B, LATENT_DIM) and logvar.shape == (B, LATENT_DIM)
    assert jnp.allclose(recon.astype(jnp.float32), r_ref, atol=2e-2)
    assert jnp.allclose(mu, mu_ref, atol=2e-2)
    assert jnp.allclose(logvar, lv_ref, atol=2e-2)

    print("KERNEL_OK")
</pallas_src>

<mosaic_0001>
module attributes {stable_mosaic.version = 11 : i64} {
  func.func @_vae_kernel(%arg0: i32, %arg1: memref<16x784xf32, #tpu.memory_space<vmem>>, %arg2: memref<16x128xbf16, #tpu.memory_space<vmem>>, %arg3: memref<784x512xbf16, #tpu.memory_space<vmem>>, %arg4: memref<1x512xf32, #tpu.memory_space<vmem>>, %arg5: memref<512x256xbf16, #tpu.memory_space<vmem>>, %arg6: memref<1x256xf32, #tpu.memory_space<vmem>>, %arg7: memref<128x512xbf16, #tpu.memory_space<vmem>>, %arg8: memref<1x512xf32, #tpu.memory_space<vmem>>, %arg9: memref<512x784xbf16, #tpu.memory_space<vmem>>, %arg10: memref<1x784xf32, #tpu.memory_space<vmem>>, %arg11: memref<16x784xbf16, #tpu.memory_space<vmem>>, %arg12: memref<16x10xf32, #tpu.memory_space<vmem>>, %arg13: memref<16x10xf32, #tpu.memory_space<vmem>>) attributes {dimension_semantics = [#tpu.dimension_semantics<parallel>], iteration_bounds = array<i64: 1>, scalar_prefetch = 0 : i64, scratch_operands = 0 : i64, tpu.core_type = #tpu.core_type<tc>, window_params = [{transform_indices = @transform_0, window_bounds = array<i64: 16, 784>}, {transform_indices = @transform_1, window_bounds = array<i64: 16, 128>}, {pipeline_mode = #tpu.pipeline_mode<synchronous>, transform_indices = @transform_2, window_bounds = array<i64: 784, 512>}, {pipeline_mode = #tpu.pipeline_mode<synchronous>, transform_indices = @transform_3, window_bounds = array<i64: 1, 512>}, {pipeline_mode = #tpu.pipeline_mode<synchronous>, transform_indices = @transform_4, window_bounds = array<i64: 512, 256>}, {pipeline_mode = #tpu.pipeline_mode<synchronous>, transform_indices = @transform_5, window_bounds = array<i64: 1, 256>}, {pipeline_mode = #tpu.pipeline_mode<synchronous>, transform_indices = @transform_6, window_bounds = array<i64: 128, 512>}, {pipeline_mode = #tpu.pipeline_mode<synchronous>, transform_indices = @transform_7, window_bounds = array<i64: 1, 512>}, {pipeline_mode = #tpu.pipeline_mode<synchronous>, transform_indices = @transform_8, window_bounds = array<i64: 512, 784>}, {pipeline_mode = #tpu.pipeline_mode<synchronous>, transform_indices = @transform_9, window_bounds = array<i64: 1, 784>}, {transform_indices = @transform_10, window_bounds = array<i64: 16, 784>}, {transform_indices = @transform_11, window_bounds = array<i64: 16, 10>}, {transform_indices = @transform_12, window_bounds = array<i64: 16, 10>}]} {
    %c0 = arith.constant 0 : index
    %c0_0 = arith.constant 0 : index
    %0 = vector.load %arg1[%c0, %c0_0] : memref<16x784xf32, #tpu.memory_space<vmem>>, vector<16x784xf32>
    %1 = arith.truncf %0 : vector<16x784xf32> to vector<16x784xbf16>
    %c0_1 = arith.constant 0 : index
    %c0_2 = arith.constant 0 : index
    %2 = vector.load %arg3[%c0_1, %c0_2] : memref<784x512xbf16, #tpu.memory_space<vmem>>, vector<784x512xbf16>
    %cst = arith.constant dense<0.000000e+00> : vector<16x512xf32>
    %3 = tpu.matmul %1, %2, %cst {dimension_numbers = #tpu.dot_dimension_numbers<[1], [0], [0], [1], [0, 0, 1, 1], [], []>} : vector<16x784xbf16>, vector<784x512xbf16>, vector<16x512xf32> -> vector<16x512xf32>
    %c0_3 = arith.constant 0 : index
    %c0_4 = arith.constant 0 : index
    %4 = vector.load %arg4[%c0_3, %c0_4] : memref<1x512xf32, #tpu.memory_space<vmem>>, vector<1x512xf32>
    %5 = vector.broadcast %4 : vector<1x512xf32> to vector<16x512xf32>
    %6 = arith.addf %3, %5 : vector<16x512xf32>
    %cst_5 = arith.constant 0.000000e+00 : f32
    %7 = vector.broadcast %cst_5 : f32 to vector<16x512xf32>
    %8 = arith.maximumf %6, %7 : vector<16x512xf32>
    %9 = arith.truncf %8 : vector<16x512xf32> to vector<16x512xbf16>
    %c0_6 = arith.constant 0 : index
    %c0_7 = arith.constant 0 : index
    %10 = vector.load %arg5[%c0_6, %c0_7] : memref<512x256xbf16, #tpu.memory_space<vmem>>, vector<512x256xbf16>
    %cst_8 = arith.constant dense<0.000000e+00> : vector<16x256xf32>
    %11 = tpu.matmul %9, %10, %cst_8 {dimension_numbers = #tpu.dot_dimension_numbers<[1], [0], [0], [1], [0, 0, 1, 1], [], []>} : vector<16x512xbf16>, vector<512x256xbf16>, vector<16x256xf32> -> vector<16x256xf32>
    %c0_9 = arith.constant 0 : index
    %c0_10 = arith.constant 0 : index
    %12 = vector.load %arg6[%c0_9, %c0_10] : memref<1x256xf32, #tpu.memory_space<vmem>>, vector<1x256xf32>
    %13 = vector.broadcast %12 : vector<1x256xf32> to vector<16x256xf32>
    %14 = arith.addf %11, %13 : vector<16x256xf32>
    %15 = vector.extract_strided_slice %14 {offsets = [0, 0], sizes = [16, 128], strides = [1, 1]} : vector<16x256xf32> to vector<16x128xf32>
    %16 = vector.extract_strided_slice %14 {offsets = [0, 128], sizes = [16, 128], strides = [1, 1]} : vector<16x256xf32> to vector<16x128xf32>
    %cst_11 = arith.constant 5.000000e-01 : f32
    %17 = vector.broadcast %cst_11 : f32 to vector<16x128xf32>
    %18 = arith.mulf %17, %16 : vector<16x128xf32>
    %19 = math.exp %18 : vector<16x128xf32>
    %c0_12 = arith.constant 0 : index
    %c0_13 = arith.constant 0 : index
    %20 = vector.load %arg2[%c0_12, %c0_13] : memref<16x128xbf16, #tpu.memory_space<vmem>>, vector<16x128xbf16>
    %21 = arith.extf %20 : vector<16x128xbf16> to vector<16x128xf32>
    %22 = arith.mulf %21, %19 : vector<16x128xf32>
    %23 = arith.addf %15, %22 : vector<16x128xf32>
    %24 = arith.truncf %23 : vector<16x128xf32> to vector<16x128xbf16>
    %c0_14 = arith.constant 0 : index
    %c0_15 = arith.constant 0 : index
    %25 = vector.load %arg7[%c0_14, %c0_15] : memref<128x512xbf16, #tpu.memory_space<vmem>>, vector<128x512xbf16>
    %cst_16 = arith.constant dense<0.000000e+00> : vector<16x512xf32>
    %26 = tpu.matmul %24, %25, %cst_16 {dimension_numbers = #tpu.dot_dimension_numbers<[1], [0], [0], [1], [0, 0, 1, 1], [], []>} : vector<16x128xbf16>, vector<128x512xbf16>, vector<16x512xf32> -> vector<16x512xf32>
    %c0_17 = arith.constant 0 : index
    %c0_18 = arith.constant 0 : index
    %27 = vector.load %arg8[%c0_17, %c0_18] : memref<1x512xf32, #tpu.memory_space<vmem>>, vector<1x512xf32>
    %28 = vector.broadcast %27 : vector<1x512xf32> to vector<16x512xf32>
    %29 = arith.addf %26, %28 : vector<16x512xf32>
    %cst_19 = arith.constant 0.000000e+00 : f32
    %30 = vector.broadcast %cst_19 : f32 to vector<16x512xf32>
    %31 = arith.maximumf %29, %30 : vector<16x512xf32>
    %32 = arith.truncf %31 : vector<16x512xf32> to vector<16x512xbf16>
    %c0_20 = arith.constant 0 : index
    %c0_21 = arith.constant 0 : index
    %33 = vector.load %arg9[%c0_20, %c0_21] : memref<512x784xbf16, #tpu.memory_space<vmem>>, vector<512x784xbf16>
    %cst_22 = arith.constant dense<0.000000e+00> : vector<16x784xf32>
    %34 = tpu.matmul %32, %33, %cst_22 {dimension_numbers = #tpu.dot_dimension_numbers<[1], [0], [0], [1], [0, 0, 1, 1], [], []>} : vector<16x512xbf16>, vector<512x784xbf16>, vector<16x784xf32> -> vector<16x784xf32>
    %c0_23 = arith.constant 0 : index
    %c0_24 = arith.constant 0 : index
    %35 = vector.load %arg10[%c0_23, %c0_24] : memref<1x784xf32, #tpu.memory_space<vmem>>, vector<1x784xf32>
    %36 = vector.broadcast %35 : vector<1x784xf32> to vector<16x784xf32>
    %37 = arith.addf %34, %36 : vector<16x784xf32>
    %cst_25 = arith.constant 0.000000e+00 : f32
    %38 = vector.broadcast %cst_25 : f32 to vector<16x784xf32>
    %39 = arith.subf %38, %37 : vector<16x784xf32>
    %40 = math.exp %39 : vector<16x784xf32>
    %cst_26 = arith.constant 1.000000e+00 : f32
    %41 = vector.broadcast %cst_26 : f32 to vector<16x784xf32>
    %42 = arith.addf %41, %40 : vector<16x784xf32>
    %43 = tpu.reciprocal %42 {approx = true} : vector<16x784xf32> -> vector<16x784xf32>
    %44 = arith.truncf %43 : vector<16x784xf32> to vector<16x784xbf16>
    %c0_27 = arith.constant 0 : index
    %c0_28 = arith.constant 0 : index
    %45 = vector.load %arg11[%c0_27, %c0_28] : memref<16x784xbf16, #tpu.memory_space<vmem>>, vector<16x784xbf16>
    tpu.vector_store %arg11[%c0_27, %c0_28], %44 {strides = array<i32>} : memref<16x784xbf16, #tpu.memory_space<vmem>>, vector<16x784xbf16>,
    %46 = vector.extract_strided_slice %15 {offsets = [0, 0], sizes = [16, 10], strides = [1, 1]} : vector<16x128xf32> to vector<16x10xf32>
    %c0_29 = arith.constant 0 : index
    %c0_30 = arith.constant 0 : index
    %47 = vector.load %arg12[%c0_29, %c0_30] : memref<16x10xf32, #tpu.memory_space<vmem>>, vector<16x10xf32>
    tpu.vector_store %arg12[%c0_29, %c0_30], %46 {strides = array<i32>} : memref<16x10xf32, #tpu.memory_space<vmem>>, vector<16x10xf32>,
    %48 = vector.extract_strided_slice %16 {offsets = [0, 0], sizes = [16, 10], strides = [1, 1]} : vector<16x128xf32> to vector<16x10xf32>
    %c0_31 = arith.constant 0 : index
    %c0_32 = arith.constant 0 : index
    %49 = vector.load %arg13[%c0_31, %c0_32] : memref<16x10xf32, #tpu.memory_space<vmem>>, vector<16x10xf32>
    tpu.vector_store %arg13[%c0_31, %c0_32], %48 {strides = array<i32>} : memref<16x10xf32, #tpu.memory_space<vmem>>, vector<16x10xf32>,
    return
  }
  func.func @transform_0(%arg0: i32) -> (i32, i32) {
    %c0_i32 = arith.constant 0 : i32
    %c0_i32_0 = arith.constant 0 : i32
    return %arg0, %c0_i32 : i32, i32
  }
  func.func @transform_1(%arg0: i32) -> (i32, i32) {
    %c0_i32 = arith.constant 0 : i32
    %c0_i32_0 = arith.constant 0 : i32
    return %arg0, %c0_i32 : i32, i32
  }
  func.func @transform_2(%arg0: i32) -> (i32, i32) {
    %c0_i32 = arith.constant 0 : i32
    %c0_i32_0 = arith.constant 0 : i32
    %c0_i32_1 = arith.constant 0 : i32
    return %c0_i32, %c0_i32_0 : i32, i32
  }
  func.func @transform_3(%arg0: i32) -> (i32, i32) {
    %c0_i32 = arith.constant 0 : i32
    %c0_i32_0 = arith.constant 0 : i32
    %c0_i32_1 = arith.constant 0 : i32
    return %c0_i32, %c0_i32_0 : i32, i32
  }
  func.func @transform_4(%arg0: i32) -> (i32, i32) {
    %c0_i32 = arith.constant 0 : i32
    %c0_i32_0 = arith.constant 0 : i32
    %c0_i32_1 = arith.constant 0 : i32
    return %c0_i32, %c0_i32_0 : i32, i32
  }
  func.func @transform_5(%arg0: i32) -> (i32, i32) {
    %c0_i32 = arith.constant 0 : i32
    %c0_i32_0 = arith.constant 0 : i32
    %c0_i32_1 = arith.constant 0 : i32
    return %c0_i32, %c0_i32_0 : i32, i32
  }
  func.func @transform_6(%arg0: i32) -> (i32, i32) {
    %c0_i32 = arith.constant 0 : i32
    %c0_i32_0 = arith.constant 0 : i32
    %c0_i32_1 = arith.constant 0 : i32
    return %c0_i32, %c0_i32_0 : i32, i32
  }
  func.func @transform_7(%arg0: i32) -> (i32, i32) {
    %c0_i32 = arith.constant 0 : i32
    %c0_i32_0 = arith.constant 0 : i32
    %c0_i32_1 = arith.constant 0 : i32
    return %c0_i32, %c0_i32_0 : i32, i32
  }
  func.func @transform_8(%arg0: i32) -> (i32, i32) {
    %c0_i32 = arith.constant 0 : i32
    %c0_i32_0 = arith.constant 0 : i32
    %c0_i32_1 = arith.constant 0 : i32
    return %c0_i32, %c0_i32_0 : i32, i32
  }
  func.func @transform_9(%arg0: i32) -> (i32, i32) {
    %c0_i32 = arith.constant 0 : i32
    %c0_i32_0 = arith.constant 0 : i32
    %c0_i32_1 = arith.constant 0 : i32
    return %c0_i32, %c0_i32_0 : i32, i32
  }
  func.func @transform_10(%arg0: i32) -> (i32, i32) {
    %c0_i32 = arith.constant 0 : i32
    %c0_i32_0 = arith.constant 0 : i32
    return %arg0, %c0_i32 : i32, i32
  }
  func.func @transform_11(%arg0: i32) -> (i32, i32) {
    %c0_i32 = arith.constant 0 : i32
    %c0_i32_0 = arith.constant 0 : i32
    return %arg0, %c0_i32 : i32, i32
  }
  func.func @transform_12(%arg0: i32) -> (i32, i32) {
    %c0_i32 = arith.constant 0 : i32
    %c0_i32_0 = arith.constant 0 : i32
    return %arg0, %c0_i32 : i32, i32
  }
}

</mosaic_0001>

<llo_original>
// kernel: tpu_custom_call.1
$region0: #{tpu_custom_call.1}
  #allocation0 [shape = 'u32[]', space=smem, size = 0x4, offset = 0x4, fixed_abs, tag = 'smem constant byte address 0x4 - core index']
  #allocation1 [shape = 'u32[144,128]{1,0:T(1,128)}', space=vmem, size = 0x12000, scoped, tag = 'internal scratch']
  %s0 = inlined_call_operand.vmem [shape: f32[16,784], index: 0, kind: input, shape index: {}]
  %s1 = inlined_call_operand.vmem [shape: bf16[16,128], index: 1, kind: input, shape index: {}]
  %s2 = inlined_call_operand.vmem [shape: bf16[784,512], index: 2, kind: input, shape index: {}]
  %s3 = inlined_call_operand.vmem [shape: f32[1,512], index: 3, kind: input, shape index: {}]
  %s4 = inlined_call_operand.vmem [shape: bf16[512,256], index: 4, kind: input, shape index: {}]
  %s5 = inlined_call_operand.vmem [shape: f32[1,256], index: 5, kind: input, shape index: {}]
  %s6 = inlined_call_operand.vmem [shape: bf16[128,512], index: 6, kind: input, shape index: {}]
  %s7 = inlined_call_operand.vmem [shape: f32[1,512], index: 7, kind: input, shape index: {}]
  %s8 = inlined_call_operand.vmem [shape: bf16[512,784], index: 8, kind: input, shape index: {}]
  %s9 = inlined_call_operand.vmem [shape: f32[1,784], index: 9, kind: input, shape index: {}]
  %s10 = inlined_call_operand.hbm [shape: bf16[16,784], index: 10, kind: output, shape index: {0}]
  %s11 = inlined_call_operand.hbm [shape: f32[16,10], index: 11, kind: output, shape index: {1}]
  %s12 = inlined_call_operand.hbm [shape: f32[16,10], index: 12, kind: output, shape index: {2}]
  %13 = xla_tuple %s10, %s11, %s12
  %s14 = sld [smem:[#allocation0]]
  $region66: #{tpu_custom_call.1} parent=0
    _
  %s16 = ssub.s32 1, %s14
  %s17 = scalar_select 0, %s16, %s14
  $region1: #{tpu_custom_call.1} parent=0
    #allocation2 [shape = 'u8[28672]{0}', space=vmem, size = 0x7000, scoped, tag = 'output window, operand 0, single buffered']
    #allocation3 [shape = 's32[1]{0}', space=sflag, size = 0x4, scoped, tag = 'scoped memory for tpu_custom_call.1']
    #allocation4 [shape = 'u8[8192]{0}', space=vmem, size = 0x2000, scoped, tag = 'output window, operand 1, single buffered']
    #allocation5 [shape = 's32[1]{0}', space=sflag, size = 0x4, scoped, tag = 'scoped memory for tpu_custom_call.1']
    #allocation6 [shape = 'u8[8192]{0}', space=vmem, size = 0x2000, scoped, tag = 'output window, operand 2, single buffered']
    %18 = vsyncpa [#allocation3], 0
    %19 = vsyncpa [#allocation5], 0
    // Predicated region
    $region2: #{tpu_custom_call.1} parent=1 // pred_check
      _
    $region3: #{tpu_custom_call.1} parent=1 // pred_check_branch
      %21 = sbr.rel (0) target = $region5
    $region4: #{tpu_custom_call.1} parent=1 // pred_region
      _
    $region5: #{tpu_custom_call.1} parent=1 // pred_fallthru
      _
    // Predicated region
    $region6: #{tpu_custom_call.1} parent=1 // pred_check
      _
    $region7: #{tpu_custom_call.1} parent=1 // pred_check_branch
      %23 = sbr.rel (0) target = $region9
    $region8: #{tpu_custom_call.1} parent=1 // pred_region
      _
    $region9: #{tpu_custom_call.1} parent=1 // pred_fallthru
      _
    // Predicated region
    $region10: #{tpu_custom_call.1} parent=1 // pred_check
      _
    $region11: #{tpu_custom_call.1} parent=1 // pred_check_branch
      %25 = sbr.rel (0) target = $region13
    $region12: #{tpu_custom_call.1} parent=1 // pred_region
      _
    $region13: #{tpu_custom_call.1} parent=1 // pred_fallthru
      _
    // Predicated region
    $region14: #{tpu_custom_call.1} parent=1 // pred_check
      _
    $region15: #{tpu_custom_call.1} parent=1 // pred_check_branch
      %27 = sbr.rel (0) target = $region17
    $region16: #{tpu_custom_call.1} parent=1 // pred_region
      _
    $region17: #{tpu_custom_call.1} parent=1 // pred_fallthru
      _
    // Predicated region
    $region18: #{tpu_custom_call.1} parent=1 // pred_check
      _
    $region19: #{tpu_custom_call.1} parent=1 // pred_check_branch
      %29 = sbr.rel (0) target = $region21
    $region20: #{tpu_custom_call.1} parent=1 // pred_region
      _
    $region21: #{tpu_custom_call.1} parent=1 // pred_fallthru
      _
    // Predicated region
    $region22: #{tpu_custom_call.1} parent=1 // pred_check
      _
    $region23: #{tpu_custom_call.1} parent=1 // pred_check_branch
      %31 = sbr.rel (0) target = $region25
    $region24: #{tpu_custom_call.1} parent=1 // pred_region
      _
    $region25: #{tpu_custom_call.1} parent=1 // pred_fallthru
      _
    // Predicated region
    $region26: #{tpu_custom_call.1} parent=1 // pred_check
      _
    $region27: #{tpu_custom_call.1} parent=1 // pred_check_branch
      %33 = sbr.rel (0) target = $region29
    $region28: #{tpu_custom_call.1} parent=1 // pred_region
      _
    $region29: #{tpu_custom_call.1} parent=1 // pred_fallthru
      _
    // Predicated region
    $region30: #{tpu_custom_call.1} parent=1 // pred_check
      _
    $region31: #{tpu_custom_call.1} parent=1 // pred_check_branch
      %35 = sbr.rel (0) target = $region33
    $region32: #{tpu_custom_call.1} parent=1 // pred_region
      _
    $region33: #{tpu_custom_call.1} parent=1 // pred_fallthru
      _
    // Predicated region
    $region34: #{tpu_custom_call.1} parent=1 // pred_check
      _
    $region35: #{tpu_custom_call.1} parent=1 // pred_check_branch
      %37 = sbr.rel (0) target = $region37
    $region36: #{tpu_custom_call.1} parent=1 // pred_region
      _
    $region37: #{tpu_custom_call.1} parent=1 // pred_fallthru
      _
    // Predicated region
    $region38: #{tpu_custom_call.1} parent=1 // pred_check
      _
    $region39: #{tpu_custom_call.1} parent=1 // pred_check_branch
      %39 = sbr.rel (0) target = $region41
    $region40: #{tpu_custom_call.1} parent=1 // pred_region
      _
    $region41: #{tpu_custom_call.1} parent=1 // pred_fallthru
      _
    %v41 = vld [vmem:[%s0] sm:$0xff]
    %v42 = vld [vmem:[%s0 + $0x8] sm:$0xff]
    %v43 = vld [vmem:[%s0 + $0x10] sm:$0xff]
    %v44 = vld [vmem:[%s0 + $0x18] sm:$0xff]
    %v45 = vld [vmem:[%s0 + $0x20] sm:$0xff]
    %v46 = vld [vmem:[%s0 + $0x28] sm:$0xff]
    %v47 = vld [vmem:[%s0 + $0x30] sm:$0xff]
    %v48 = vld [vmem:[%s0 + $0x38] sm:$0xff]
    %v49 = vld [vmem:[%s0 + $0x40] sm:$0xff]
    %v50 = vld [vmem:[%s0 + $0x48] sm:$0xff]
    %v51 = vld [vmem:[%s0 + $0x50] sm:$0xff]
    %v52 = vld [vmem:[%s0 + $0x58] sm:$0xff]
    %v53 = vld [vmem:[%s0 + $0x60] sm:$0xff]
    %v54 = vld [vmem:[%s0 + $0x68] sm:$0xff]
    %v55 = vpack.c.bf16 %v48, %v41
    %v56 = vpack.c.bf16 %v49, %v42
    %v57 = vpack.c.bf16 %v50, %v43
    %v58 = vpack.c.bf16 %v51, %v44
    %v59 = vpack.c.bf16 %v52, %v45
    %v60 = vpack.c.bf16 %v53, %v46
    %v61 = vpack.c.bf16 %v54, %v47
    %v62 = vld [vmem:[%s2] sm:$0xff]
    %v63 = vld [vmem:[%s2 + $0x8] sm:$0xff]
    %v64 = vld [vmem:[%s2 + $0x10] sm:$0xff]
    %v65 = vld [vmem:[%s2 + $0x18] sm:$0xff]
    %v66 = vld [vmem:[%s2 + $0x20] sm:$0xff]
    %v67 = vld [vmem:[%s2 + $0x28] sm:$0xff]
    %v68 = vld [vmem:[%s2 + $0x30] sm:$0xff]
    %v69 = vld [vmem:[%s2 + $0x38] sm:$0xff]
    %v70 = vld [vmem:[%s2 + $0x40] sm:$0xff]
    %v71 = vld [vmem:[%s2 + $0x48] sm:$0xff]
    %v72 = vld [vmem:[%s2 + $0x50] sm:$0xff]
    %v73 = vld [vmem:[%s2 + $0x58] sm:$0xff]
    %v74 = vld [vmem:[%s2 + $0x60] sm:$0xff]
    %v75 = vld [vmem:[%s2 + $0x68] sm:$0xff]
    %v76 = vld [vmem:[%s2 + $0x70] sm:$0xff]
    %v77 = vld [vmem:[%s2 + $0x78] sm:$0xff]
    %v78 = vld [vmem:[%s2 + $0x80] sm:$0xff]
    %v79 = vld [vmem:[%s2 + $0x88] sm:$0xff]
    %v80 = vld [vmem:[%s2 + $0x90] sm:$0xff]
    %v81 = vld [vmem:[%s2 + $0x98] sm:$0xff]
    %v82 = vld [vmem:[%s2 + $0xa0] sm:$0xff]
    %v83 = vld [vmem:[%s2 + $0xa8] sm:$0xff]
    %v84 = vld [vmem:[%s2 + $0xb0] sm:$0xff]
    %v85 = vld [vmem:[%s2 + $0xb8] sm:$0xff]
    %v86 = vld [vmem:[%s2 + $0xc0] sm:$0xff]
    %v87 = vld [vmem:[%s2 + $0xc8] sm:$0xff]
    %v88 = vld [vmem:[%s2 + $0xd0] sm:$0xff]
    %v89 = vld [vmem:[%s2 + $0xd8] sm:$0xff]
    %v90 = vld [vmem:[%s2 + $0xe0] sm:$0xff]
    %v91 = vld [vmem:[%s2 + $0xe8] sm:$0xff]
    %v92 = vld [vmem:[%s2 + $0xf0] sm:$0xff]
    %v93 = vld [vmem:[%s2 + $0xf8] sm:$0xff]
    %v94 = vld [vmem:[%s2 + $0x100] sm:$0xff]
    %v95 = vld [vmem:[%s2 + $0x108] sm:$0xff]
    %v96 = vld [vmem:[%s2 + $0x110] sm:$0xff]
    %v97 = vld [vmem:[%s2 + $0x118] sm:$0xff]
    %v98 = vld [vmem:[%s2 + $0x120] sm:$0xff]
    %v99 = vld [vmem:[%s2 + $0x128] sm:$0xff]
    %v100 = vld [vmem:[%s2 + $0x130] sm:$0xff]
    %v101 = vld [vmem:[%s2 + $0x138] sm:$0xff]
    %v102 = vld [vmem:[%s2 + $0x140] sm:$0xff]
    %v103 = vld [vmem:[%s2 + $0x148] sm:$0xff]
    %v104 = vld [vmem:[%s2 + $0x150] sm:$0xff]
    %v105 = vld [vmem:[%s2 + $0x158] sm:$0xff]
    %v106 = vld [vmem:[%s2 + $0x160] sm:$0xff]
    %v107 = vld [vmem:[%s2 + $0x168] sm:$0xff]
    %v108 = vld [vmem:[%s2 + $0x170] sm:$0xff]
    %v109 = vld [vmem:[%s2 + $0x178] sm:$0xff]
    %v110 = vld [vmem:[%s2 + $0x180] sm:$0xff]
    %v111 = vld [vmem:[%s2 + $0x188] sm:$0xff]
    %v112 = vld [vmem:[%s2 + $0x190] sm:$0xff]
    %v113 = vld [vmem:[%s2 + $0x198] sm:$0xff]
    %v114 = vld [vmem:[%s2 + $0x1a0] sm:$0xff]
    %v115 = vld [vmem:[%s2 + $0x1a8] sm:$0xff]
    %v116 = vld [vmem:[%s2 + $0x1b0] sm:$0xff]
    %v117 = vld [vmem:[%s2 + $0x1b8] sm:$0xff]
    %v118 = vld [vmem:[%s2 + $0x1c0] sm:$0xff]
    %v119 = vld [vmem:[%s2 + $0x1c8] sm:$0xff]
    %v120 = vld [vmem:[%s2 + $0x1d0] sm:$0xff]
    %v121 = vld [vmem:[%s2 + $0x1d8] sm:$0xff]
    %v122 = vld [vmem:[%s2 + $0x1e0] sm:$0xff]
    %v123 = vld [vmem:[%s2 + $0x1e8] sm:$0xff]
    %v124 = vld [vmem:[%s2 + $0x1f0] sm:$0xff]
    %v125 = vld [vmem:[%s2 + $0x1f8] sm:$0xff]
    %v126 = vld [vmem:[%s2 + $0x200] sm:$0xff]
    %v127 = vld [vmem:[%s2 + $0x208] sm:$0xff]
    %v128 = vld [vmem:[%s2 + $0x210] sm:$0xff]
    %v129 = vld [vmem:[%s2 + $0x218] sm:$0xff]
    %v130 = vld [vmem:[%s2 + $0x220] sm:$0xff]
    %v131 = vld [vmem:[%s2 + $0x228] sm:$0xff]
    %v132 = vld [vmem:[%s2 + $0x230] sm:$0xff]
    %v133 = vld [vmem:[%s2 + $0x238] sm:$0xff]
    %v134 = vld [vmem:[%s2 + $0x240] sm:$0xff]
    %v135 = vld [vmem:[%s2 + $0x248] sm:$0xff]
    %v136 = vld [vmem:[%s2 + $0x250] sm:$0xff]
    %v137 = vld [vmem:[%s2 + $0x258] sm:$0xff]
    %v138 = vld [vmem:[%s2 + $0x260] sm:$0xff]
    %v139 = vld [vmem:[%s2 + $0x268] sm:$0xff]
    %v140 = vld [vmem:[%s2 + $0x270] sm:$0xff]
    %v141 = vld [vmem:[%s2 + $0x278] sm:$0xff]
    %v142 = vld [vmem:[%s2 + $0x280] sm:$0xff]
    %v143 = vld [vmem:[%s2 + $0x288] sm:$0xff]
    %v144 = vld [vmem:[%s2 + $0x290] sm:$0xff]
    %v145 = vld [vmem:[%s2 + $0x298] sm:$0xff]
    %v146 = vld [vmem:[%s2 + $0x2a0] sm:$0xff]
    %v147 = vld [vmem:[%s2 + $0x2a8] sm:$0xff]
    %v148 = vld [vmem:[%s2 + $0x2b0] sm:$0xff]
    %v149 = vld [vmem:[%s2 + $0x2b8] sm:$0xff]
    %v150 = vld [vmem:[%s2 + $0x2c0] sm:$0xff]
    %v151 = vld [vmem:[%s2 + $0x2c8] sm:$0xff]
    %v152 = vld [vmem:[%s2 + $0x2d0] sm:$0xff]
    %v153 = vld [vmem:[%s2 + $0x2d8] sm:$0xff]
    %v154 = vld [vmem:[%s2 + $0x2e0] sm:$0xff]
    %v155 = vld [vmem:[%s2 + $0x2e8] sm:$0xff]
    %v156 = vld [vmem:[%s2 + $0x2f0] sm:$0xff]
    %v157 = vld [vmem:[%s2 + $0x2f8] sm:$0xff]
    %v158 = vld [vmem:[%s2 + $0x300] sm:$0xff]
    %v159 = vld [vmem:[%s2 + $0x308] sm:$0xff]
    %v160 = vld [vmem:[%s2 + $0x310] sm:$0xff]
    %v161 = vld [vmem:[%s2 + $0x318] sm:$0xff]
    %v162 = vld [vmem:[%s2 + $0x320] sm:$0xff]
    %v163 = vld [vmem:[%s2 + $0x328] sm:$0xff]
    %v164 = vld [vmem:[%s2 + $0x330] sm:$0xff]
    %v165 = vld [vmem:[%s2 + $0x338] sm:$0xff]
    %v166 = vld [vmem:[%s2 + $0x340] sm:$0xff]
    %v167 = vld [vmem:[%s2 + $0x348] sm:$0xff]
    %v168 = vld [vmem:[%s2 + $0x350] sm:$0xff]
    %v169 = vld [vmem:[%s2 + $0x358] sm:$0xff]
    %v170 = vld [vmem:[%s2 + $0x360] sm:$0xff]
    %v171 = vld [vmem:[%s2 + $0x368] sm:$0xff]
    %v172 = vld [vmem:[%s2 + $0x370] sm:$0xff]
    %v173 = vld [vmem:[%s2 + $0x378] sm:$0xff]
    %v174 = vld [vmem:[%s2 + $0x380] sm:$0xff]
    %v175 = vld [vmem:[%s2 + $0x388] sm:$0xff]
    %v176 = vld [vmem:[%s2 + $0x390] sm:$0xff]
    %v177 = vld [vmem:[%s2 + $0x398] sm:$0xff]
    %v178 = vld [vmem:[%s2 + $0x3a0] sm:$0xff]
    %v179 = vld [vmem:[%s2 + $0x3a8] sm:$0xff]
    %v180 = vld [vmem:[%s2 + $0x3b0] sm:$0xff]
    %v181 = vld [vmem:[%s2 + $0x3b8] sm:$0xff]
    %v182 = vld [vmem:[%s2 + $0x3c0] sm:$0xff]
    %v183 = vld [vmem:[%s2 + $0x3c8] sm:$0xff]
    %v184 = vld [vmem:[%s2 + $0x3d0] sm:$0xff]
    %v185 = vld [vmem:[%s2 + $0x3d8] sm:$0xff]
    %v186 = vld [vmem:[%s2 + $0x3e0] sm:$0xff]
    %v187 = vld [vmem:[%s2 + $0x3e8] sm:$0xff]
    %v188 = vld [vmem:[%s2 + $0x3f0] sm:$0xff]
    %v189 = vld [vmem:[%s2 + $0x3f8] sm:$0xff]
    %v190 = vld [vmem:[%s2 + $0x400] sm:$0xff]
    %v191 = vld [vmem:[%s2 + $0x408] sm:$0xff]
    %v192 = vld [vmem:[%s2 + $0x410] sm:$0xff]
    %v193 = vld [vmem:[%s2 + $0x418] sm:$0xff]
    %v194 = vld [vmem:[%s2 + $0x420] sm:$0xff]
    %v195 = vld [vmem:[%s2 + $0x428] sm:$0xff]
    %v196 = vld [vmem:[%s2 + $0x430] sm:$0xff]
    %v197 = vld [vmem:[%s2 + $0x438] sm:$0xff]
    %v198 = vld [vmem:[%s2 + $0x440] sm:$0xff]
    %v199 = vld [vmem:[%s2 + $0x448] sm:$0xff]
    %v200 = vld [vmem:[%s2 + $0x450] sm:$0xff]
    %v201 = vld [vmem:[%s2 + $0x458] sm:$0xff]
    %v202 = vld [vmem:[%s2 + $0x460] sm:$0xff]
    %v203 = vld [vmem:[%s2 + $0x468] sm:$0xff]
    %v204 = vld [vmem:[%s2 + $0x470] sm:$0xff]
    %v205 = vld [vmem:[%s2 + $0x478] sm:$0xff]
    %v206 = vld [vmem:[%s2 + $0x480] sm:$0xff]
    %v207 = vld [vmem:[%s2 + $0x488] sm:$0xff]
    %v208 = vld [vmem:[%s2 + $0x490] sm:$0xff]
    %v209 = vld [vmem:[%s2 + $0x498] sm:$0xff]
    %v210 = vld [vmem:[%s2 + $0x4a0] sm:$0xff]
    %v211 = vld [vmem:[%s2 + $0x4a8] sm:$0xff]
    %v212 = vld [vmem:[%s2 + $0x4b0] sm:$0xff]
    %v213 = vld [vmem:[%s2 + $0x4b8] sm:$0xff]
    %v214 = vld [vmem:[%s2 + $0x4c0] sm:$0xff]
    %v215 = vld [vmem:[%s2 + $0x4c8] sm:$0xff]
    %v216 = vld [vmem:[%s2 + $0x4d0] sm:$0xff]
    %v217 = vld [vmem:[%s2 + $0x4d8] sm:$0xff]
    %v218 = vld [vmem:[%s2 + $0x4e0] sm:$0xff]
    %v219 = vld [vmem:[%s2 + $0x4e8] sm:$0xff]
    %v220 = vld [vmem:[%s2 + $0x4f0] sm:$0xff]
    %v221 = vld [vmem:[%s2 + $0x4f8] sm:$0xff]
    %v222 = vld [vmem:[%s2 + $0x500] sm:$0xff]
    %v223 = vld [vmem:[%s2 + $0x508] sm:$0xff]
    %v224 = vld [vmem:[%s2 + $0x510] sm:$0xff]
    %v225 = vld [vmem:[%s2 + $0x518] sm:$0xff]
    %v226 = vld [vmem:[%s2 + $0x520] sm:$0xff]
    %v227 = vld [vmem:[%s2 + $0x528] sm:$0xff]
    %v228 = vld [vmem:[%s2 + $0x530] sm:$0xff]
    %v229 = vld [vmem:[%s2 + $0x538] sm:$0xff]
    %v230 = vld [vmem:[%s2 + $0x540] sm:$0xff]
    %v231 = vld [vmem:[%s2 + $0x548] sm:$0xff]
    %v232 = vld [vmem:[%s2 + $0x550] sm:$0xff]
    %v233 = vld [vmem:[%s2 + $0x558] sm:$0xff]
    %v234 = vld [vmem:[%s2 + $0x560] sm:$0xff]
    %v235 = vld [vmem:[%s2 + $0x568] sm:$0xff]
    %v236 = vld [vmem:[%s2 + $0x570] sm:$0xff]
    %v237 = vld [vmem:[%s2 + $0x578] sm:$0xff]
    %v238 = vld [vmem:[%s2 + $0x580] sm:$0xff]
    %v239 = vld [vmem:[%s2 + $0x588] sm:$0xff]
    %v240 = vld [vmem:[%s2 + $0x590] sm:$0xff]
    %v241 = vld [vmem:[%s2 + $0x598] sm:$0xff]
    %v242 = vld [vmem:[%s2 + $0x5a0] sm:$0xff]
    %v243 = vld [vmem:[%s2 + $0x5a8] sm:$0xff]
    %v244 = vld [vmem:[%s2 + $0x5b0] sm:$0xff]
    %v245 = vld [vmem:[%s2 + $0x5b8] sm:$0xff]
    %v246 = vld [vmem:[%s2 + $0x5c0] sm:$0xff]
    %v247 = vld [vmem:[%s2 + $0x5c8] sm:$0xff]
    %v248 = vld [vmem:[%s2 + $0x5d0] sm:$0xff]
    %v249 = vld [vmem:[%s2 + $0x5d8] sm:$0xff]
    %v250 = vld [vmem:[%s2 + $0x5e0] sm:$0xff]
    %v251 = vld [vmem:[%s2 + $0x5e8] sm:$0xff]
    %v252 = vld [vmem:[%s2 + $0x5f0] sm:$0xff]
    %v253 = vld [vmem:[%s2 + $0x5f8] sm:$0xff]
    %v254 = vld [vmem:[%s2 + $0x600] sm:$0xff]
    %v255 = vld [vmem:[%s2 + $0x608] sm:$0xff]
    %v256 = vld [vmem:[%s2 + $0x610] sm:$0xff]
    %v257 = vld [vmem:[%s2 + $0x618] sm:$0xff]
    %v258 = vld [vmem:[%s3] sm:$0xf]
    %v260 = vlaneseq
    %v261 = vshrl.u32 %v260, 7
    %v262 = vsub.s32 0, %v261
    %v263 = vrot.slane %v258, %v262
    %v264 = vlaneseq
    %v265 = vshrl.u32 %v264, 7
    %v266 = vsub.s32 1, %v265
    %v267 = vrot.slane %v258, %v266
    %v268 = vlaneseq
    %v269 = vshrl.u32 %v268, 7
    %v270 = vsub.s32 2, %v269
    %v271 = vrot.slane %v258, %v270
    %v272 = vlaneseq
    %v273 = vshrl.u32 %v272, 7
    %v274 = vsub.s32 3, %v273
    %v275 = vrot.slane %v258, %v274
    %v476 = vunpack.c.l.b16 %v62
    %v477 = vunpack.c.h.b16 %v62
    %v478 = vunpack.c.l.b16 %v63
    %v479 = vunpack.c.h.b16 %v63
    %v480 = vunpack.c.l.b16 %v64
    %v481 = vunpack.c.h.b16 %v64
    %v482 = vunpack.c.l.b16 %v65
    %v483 = vunpack.c.h.b16 %v65
    %v484 = vunpack.c.l.b16 %v66
    %v485 = vunpack.c.h.b16 %v66
    %v486 = vunpack.c.l.b16 %v67
    %v487 = vunpack.c.h.b16 %v67
    %v488 = vunpack.c.l.b16 %v68
    %v489 = vunpack.c.h.b16 %v68
    %v490 = vunpack.c.l.b16 %v69
    %v491 = vunpack.c.h.b16 %v69
    %v492 = vunpack.c.l.b16 %v70
    %v493 = vunpack.c.h.b16 %v70
    %v494 = vunpack.c.l.b16 %v71
    %v495 = vunpack.c.h.b16 %v71
    %v496 = vunpack.c.l.b16 %v72
    %v497 = vunpack.c.h.b16 %v72
    %v498 = vunpack.c.l.b16 %v73
    %v499 = vunpack.c.h.b16 %v73
    %v500 = vunpack.c.l.b16 %v74
    %v501 = vunpack.c.h.b16 %v74
    %v502 = vunpack.c.l.b16 %v75
    %v503 = vunpack.c.h.b16 %v75
    %v504 = vunpack.c.l.b16 %v76
    %v505 = vunpack.c.h.b16 %v76
    %v506 = vunpack.c.l.b16 %v77
    %v507 = vunpack.c.h.b16 %v77
    %v508 = vunpack.c.l.b16 %v78
    %v509 = vunpack.c.h.b16 %v78
    %v510 = vunpack.c.l.b16 %v79
    %v511 = vunpack.c.h.b16 %v79
    %v512 = vunpack.c.l.b16 %v80
    %v513 = vunpack.c.h.b16 %v80
    %v514 = vunpack.c.l.b16 %v81
    %v515 = vunpack.c.h.b16 %v81
    %v516 = vunpack.c.l.b16 %v82
    %v517 = vunpack.c.h.b16 %v82
    %v518 = vunpack.c.l.b16 %v83
    %v519 = vunpack.c.h.b16 %v83
    %v520 = vunpack.c.l.b16 %v84
    %v521 = vunpack.c.h.b16 %v84
    %v522 = vunpack.c.l.b16 %v85
    %v523 = vunpack.c.h.b16 %v85
    %v524 = vunpack.c.l.b16 %v86
    %v525 = vunpack.c.h.b16 %v86
    %v526 = vunpack.c.l.b16 %v87
    %v527 = vunpack.c.h.b16 %v87
    %v528 = vunpack.c.l.b16 %v88
    %v529 = vunpack.c.h.b16 %v88
    %v530 = vunpack.c.l.b16 %v89
    %v531 = vunpack.c.h.b16 %v89
    %v532 = vunpack.c.l.b16 %v90
    %v533 = vunpack.c.h.b16 %v90
    %v534 = vunpack.c.l.b16 %v91
    %v535 = vunpack.c.h.b16 %v91
    %v536 = vunpack.c.l.b16 %v92
    %v537 = vunpack.c.h.b16 %v92
    %v538 = vunpack.c.l.b16 %v93
    %v539 = vunpack.c.h.b16 %v93
    %v540 = vunpack.c.l.b16 %v94
    %v541 = vunpack.c.h.b16 %v94
    %v542 = vunpack.c.l.b16 %v95
    %v543 = vunpack.c.h.b16 %v95
    %v544 = vunpack.c.l.b16 %v96
    %v545 = vunpack.c.h.b16 %v96
    %v546 = vunpack.c.l.b16 %v97
    %v547 = vunpack.c.h.b16 %v97
    %v548 = vunpack.c.l.b16 %v98
    %v549 = vunpack.c.h.b16 %v98
    %v550 = vunpack.c.l.b16 %v99
    %v551 = vunpack.c.h.b16 %v99
    %v552 = vunpack.c.l.b16 %v100
    %v553 = vunpack.c.h.b16 %v100
    %v554 = vunpack.c.l.b16 %v101
    %v555 = vunpack.c.h.b16 %v101
    %v556 = vunpack.c.l.b16 %v102
    %v557 = vunpack.c.h.b16 %v102
    %v558 = vunpack.c.l.b16 %v103
    %v559 = vunpack.c.h.b16 %v103
    %v560 = vunpack.c.l.b16 %v104
    %v561 = vunpack.c.h.b16 %v104
    %v562 = vunpack.c.l.b16 %v105
    %v563 = vunpack.c.h.b16 %v105
    %v564 = vunpack.c.l.b16 %v106
    %v565 = vunpack.c.h.b16 %v106
    %v566 = vunpack.c.l.b16 %v107
    %v567 = vunpack.c.h.b16 %v107
    %v568 = vunpack.c.l.b16 %v108
    %v569 = vunpack.c.h.b16 %v108
    %v570 = vunpack.c.l.b16 %v109
    %v571 = vunpack.c.h.b16 %v109
    %v572 = vunpack.c.l.b16 %v110
    %v573 = vunpack.c.h.b16 %v110
    %v574 = vunpack.c.l.b16 %v111
    %v575 = vunpack.c.h.b16 %v111
    %v576 = vunpack.c.l.b16 %v112
    %v577 = vunpack.c.h.b16 %v112
    %v578 = vunpack.c.l.b16 %v113
    %v579 = vunpack.c.h.b16 %v113
    %v580 = vunpack.c.l.b16 %v114
    %v581 = vunpack.c.h.b16 %v114
    %v582 = vunpack.c.l.b16 %v115
    %v583 = vunpack.c.h.b16 %v115
    %v584 = vunpack.c.l.b16 %v116
    %v585 = vunpack.c.h.b16 %v116
    %v586 = vunpack.c.l.b16 %v117
    %v587 = vunpack.c.h.b16 %v117
    %v588 = vunpack.c.l.b16 %v118
    %v589 = vunpack.c.h.b16 %v118
    %v590 = vunpack.c.l.b16 %v119
    %v591 = vunpack.c.h.b16 %v119
    %v592 = vunpack.c.l.b16 %v120
    %v593 = vunpack.c.h.b16 %v120
    %v594 = vunpack.c.l.b16 %v121
    %v595 = vunpack.c.h.b16 %v121
    %v596 = vunpack.c.l.b16 %v122
    %v597 = vunpack.c.h.b16 %v122
    %v598 = vunpack.c.l.b16 %v123
    %v599 = vunpack.c.h.b16 %v123
    %v600 = vunpack.c.l.b16 %v124
    %v601 = vunpack.c.h.b16 %v124
    %v602 = vunpack.c.l.b16 %v125
    %v603 = vunpack.c.h.b16 %v125
    %v604 = vunpack.c.l.b16 %v126
    %v605 = vunpack.c.h.b16 %v126
    %v606 = vunpack.c.l.b16 %v127
    %v607 = vunpack.c.h.b16 %v127
    %v608 = vunpack.c.l.b16 %v128
    %v609 = vunpack.c.h.b16 %v128
    %v610 = vunpack.c.l.b16 %v129
    %v611 = vunpack.c.h.b16 %v129
    %v612 = vunpack.c.l.b16 %v130
    %v613 = vunpack.c.h.b16 %v130
    %v614 = vunpack.c.l.b16 %v131
    %v615 = vunpack.c.h.b16 %v131
    %v616 = vunpack.c.l.b16 %v132
    %v617 = vunpack.c.h.b16 %v132
    %v618 = vunpack.c.l.b16 %v133
    %v619 = vunpack.c.h.b16 %v133
    %v620 = vunpack.c.l.b16 %v134
    %v621 = vunpack.c.h.b16 %v134
    %v622 = vunpack.c.l.b16 %v135
    %v623 = vunpack.c.h.b16 %v135
    %v624 = vunpack.c.l.b16 %v136
    %v625 = vunpack.c.h.b16 %v136
    %v626 = vunpack.c.l.b16 %v137
    %v627 = vunpack.c.h.b16 %v137
    %v628 = vunpack.c.l.b16 %v138
    %v629 = vunpack.c.h.b16 %v138
    %v630 = vunpack.c.l.b16 %v139
    %v631 = vunpack.c.h.b16 %v139
    %v632 = vunpack.c.l.b16 %v140
    %v633 = vunpack.c.h.b16 %v140
    %v634 = vunpack.c.l.b16 %v141
    %v635 = vunpack.c.h.b16 %v141
    %v636 = vunpack.c.l.b16 %v142
    %v637 = vunpack.c.h.b16 %v142
    %v638 = vunpack.c.l.b16 %v143
    %v639 = vunpack.c.h.b16 %v143
    %v640 = vunpack.c.l.b16 %v144
    %v641 = vunpack.c.h.b16 %v144
    %v642 = vunpack.c.l.b16 %v145
    %v643 = vunpack.c.h.b16 %v145
    %v644 = vunpack.c.l.b16 %v146
    %v645 = vunpack.c.h.b16 %v146
    %v646 = vunpack.c.l.b16 %v147
    %v647 = vunpack.c.h.b16 %v147
    %v648 = vunpack.c.l.b16 %v148
    %v649 = vunpack.c.h.b16 %v148
    %v650 = vunpack.c.l.b16 %v149
    %v651 = vunpack.c.h.b16 %v149
    %v652 = vunpack.c.l.b16 %v150
    %v653 = vunpack.c.h.b16 %v150
    %v654 = vunpack.c.l.b16 %v151
    %v655 = vunpack.c.h.b16 %v151
    %v656 = vunpack.c.l.b16 %v152
    %v657 = vunpack.c.h.b16 %v152
    %v658 = vunpack.c.l.b16 %v153
    %v659 = vunpack.c.h.b16 %v153
    %v660 = vunpack.c.l.b16 %v154
    %v661 = vunpack.c.h.b16 %v154
    %v662 = vunpack.c.l.b16 %v155
    %v663 = vunpack.c.h.b16 %v155
    %v664 = vunpack.c.l.b16 %v156
    %v665 = vunpack.c.h.b16 %v156
    %v666 = vunpack.c.l.b16 %v157
    %v667 = vunpack.c.h.b16 %v157
    %v668 = vunpack.c.l.b16 %v158
    %v669 = vunpack.c.h.b16 %v158
    %v670 = vunpack.c.l.b16 %v159
    %v671 = vunpack.c.h.b16 %v159
    %v672 = vunpack.c.l.b16 %v160
    %v673 = vunpack.c.h.b16 %v160
    %v674 = vunpack.c.l.b16 %v161
    %v675 = vunpack.c.h.b16 %v161
    %v676 = vunpack.c.l.b16 %v162
    %v677 = vunpack.c.h.b16 %v162
    %v678 = vunpack.c.l.b16 %v163
    %v679 = vunpack.c.h.b16 %v163
    %v680 = vunpack.c.l.b16 %v164
    %v681 = vunpack.c.h.b16 %v164
    %v682 = vunpack.c.l.b16 %v165
    %v683 = vunpack.c.h.b16 %v165
    %v684 = vunpack.c.l.b16 %v166
    %v685 = vunpack.c.h.b16 %v166
    %v686 = vunpack.c.l.b16 %v167
    %v687 = vunpack.c.h.b16 %v167
    %v688 = vunpack.c.l.b16 %v168
    %v689 = vunpack.c.h.b16 %v168
    %v690 = vunpack.c.l.b16 %v169
    %v691 = vunpack.c.h.b16 %v169
    %v692 = vunpack.c.l.b16 %v170
    %v693 = vunpack.c.h.b16 %v170
    %v694 = vunpack.c.l.b16 %v171
    %v695 = vunpack.c.h.b16 %v171
    %v696 = vunpack.c.l.b16 %v172
    %v697 = vunpack.c.h.b16 %v172
    %v698 = vunpack.c.l.b16 %v173
    %v699 = vunpack.c.h.b16 %v173
    %v700 = vunpack.c.l.b16 %v174
    %v701 = vunpack.c.h.b16 %v174
    %v702 = vunpack.c.l.b16 %v175
    %v703 = vunpack.c.h.b16 %v175
    %v704 = vunpack.c.l.b16 %v176
    %v705 = vunpack.c.h.b16 %v176
    %v706 = vunpack.c.l.b16 %v177
    %v707 = vunpack.c.h.b16 %v177
    %v708 = vunpack.c.l.b16 %v178
    %v709 = vunpack.c.h.b16 %v178
    %v710 = vunpack.c.l.b16 %v179
    %v711 = vunpack.c.h.b16 %v179
    %v712 = vunpack.c.l.b16 %v180
    %v713 = vunpack.c.h.b16 %v180
    %v714 = vunpack.c.l.b16 %v181
    %v715 = vunpack.c.h.b16 %v181
    %v716 = vunpack.c.l.b16 %v182
    %v717 = vunpack.c.h.b16 %v182
    %v718 = vunpack.c.l.b16 %v183
    %v719 = vunpack.c.h.b16 %v183
    %v720 = vunpack.c.l.b16 %v184
    %v721 = vunpack.c.h.b16 %v184
    %v722 = vunpack.c.l.b16 %v185
    %v723 = vunpack.c.h.b16 %v185
    %v724 = vunpack.c.l.b16 %v186
    %v725 = vunpack.c.h.b16 %v186
    %v726 = vunpack.c.l.b16 %v187
    %v727 = vunpack.c.h.b16 %v187
    %v728 = vunpack.c.l.b16 %v188
    %v729 = vunpack.c.h.b16 %v188
    %v730 = vunpack.c.l.b16 %v189
    %v731 = vunpack.c.h.b16 %v189
    %v732 = vunpack.c.l.b16 %v190
    %v733 = vunpack.c.h.b16 %v190
    %v734 = vunpack.c.l.b16 %v191
    %v735 = vunpack.c.h.b16 %v191
    %v736 = vunpack.c.l.b16 %v192
    %v737 = vunpack.c.h.b16 %v192
    %v738 = vunpack.c.l.b16 %v193
    %v739 = vunpack.c.h.b16 %v193
    %v740 = vunpack.c.l.b16 %v194
    %v741 = vunpack.c.h.b16 %v194
    %v742 = vunpack.c.l.b16 %v195
    %v743 = vunpack.c.h.b16 %v195
    %v744 = vunpack.c.l.b16 %v196
    %v745 = vunpack.c.h.b16 %v196
    %v746 = vunpack.c.l.b16 %v197
    %v747 = vunpack.c.h.b16 %v197
    %v748 = vunpack.c.l.b16 %v198
    %v749 = vunpack.c.h.b16 %v198
    %v750 = vunpack.c.l.b16 %v199
    %v751 = vunpack.c.h.b16 %v199
    %v752 = vunpack.c.l.b16 %v200
    %v753 = vunpack.c.h.b16 %v200
    %v754 = vunpack.c.l.b16 %v201
    %v755 = vunpack.c.h.b16 %v201
    %v756 = vunpack.c.l.b16 %v202
    %v757 = vunpack.c.h.b16 %v202
    %v758 = vunpack.c.l.b16 %v203
    %v759 = vunpack.c.h.b16 %v203
    %v760 = vunpack.c.l.b16 %v204
    %v761 = vunpack.c.h.b16 %v204
    %v762 = vunpack.c.l.b16 %v205
    %v763 = vunpack.c.h.b16 %v205
    %v764 = vunpack.c.l.b16 %v206
    %v765 = vunpack.c.h.b16 %v206
    %v766 = vunpack.c.l.b16 %v207
    %v767 = vunpack.c.h.b16 %v207
    %v768 = vunpack.c.l.b16 %v208
    %v769 = vunpack.c.h.b16 %v208
    %v770 = vunpack.c.l.b16 %v209
    %v771 = vunpack.c.h.b16 %v209
    %v772 = vunpack.c.l.b16 %v210
    %v773 = vunpack.c.h.b16 %v210
    %v774 = vunpack.c.l.b16 %v211
    %v775 = vunpack.c.h.b16 %v211
    %v776 = vunpack.c.l.b16 %v212
    %v777 = vunpack.c.h.b16 %v212
    %v778 = vunpack.c.l.b16 %v213
    %v779 = vunpack.c.h.b16 %v213
    %v780 = vunpack.c.l.b16 %v214
    %v781 = vunpack.c.h.b16 %v214
    %v782 = vunpack.c.l.b16 %v215
    %v783 = vunpack.c.h.b16 %v215
    %v784 = vunpack.c.l.b16 %v216
    %v785 = vunpack.c.h.b16 %v216
    %v786 = vunpack.c.l.b16 %v217
    %v787 = vunpack.c.h.b16 %v217
    %v788 = vunpack.c.l.b16 %v218
    %v789 = vunpack.c.h.b16 %v218
    %v790 = vunpack.c.l.b16 %v219
    %v791 = vunpack.c.h.b16 %v219
    %v792 = vunpack.c.l.b16 %v220
    %v793 = vunpack.c.h.b16 %v220
    %v794 = vunpack.c.l.b16 %v221
    %v795 = vunpack.c.h.b16 %v221
    %v796 = vunpack.c.l.b16 %v222
    %v797 = vunpack.c.h.b16 %v222
    %v798 = vunpack.c.l.b16 %v223
    %v799 = vunpack.c.h.b16 %v223
    %v800 = vunpack.c.l.b16 %v224
    %v801 = vunpack.c.h.b16 %v224
    %v802 = vunpack.c.l.b16 %v225
    %v803 = vunpack.c.h.b16 %v225
    %v804 = vunpack.c.l.b16 %v226
    %v805 = vunpack.c.h.b16 %v226
    %v806 = vunpack.c.l.b16 %v227
    %v807 = vunpack.c.h.b16 %v227
    %v808 = vunpack.c.l.b16 %v228
    %v809 = vunpack.c.h.b16 %v228
    %v810 = vunpack.c.l.b16 %v229
    %v811 = vunpack.c.h.b16 %v229
    %v812 = vunpack.c.l.b16 %v230
    %v813 = vunpack.c.h.b16 %v230
    %v814 = vunpack.c.l.b16 %v231
    %v815 = vunpack.c.h.b16 %v231
    %v816 = vunpack.c.l.b16 %v232
    %v817 = vunpack.c.h.b16 %v232
    %v818 = vunpack.c.l.b16 %v233
    %v819 = vunpack.c.h.b16 %v233
    %v820 = vunpack.c.l.b16 %v234
    %v821 = vunpack.c.h.b16 %v234
    %v822 = vunpack.c.l.b16 %v235
    %v823 = vunpack.c.h.b16 %v235
    %v824 = vunpack.c.l.b16 %v236
    %v825 = vunpack.c.h.b16 %v236
    %v826 = vunpack.c.l.b16 %v237
    %v827 = vunpack.c.h.b16 %v237
    %v828 = vunpack.c.l.b16 %v238
    %v829 = vunpack.c.h.b16 %v238
    %v830 = vunpack.c.l.b16 %v239
    %v831 = vunpack.c.h.b16 %v239
    %v832 = vunpack.c.l.b16 %v240
    %v833 = vunpack.c.h.b16 %v240
    %v834 = vunpack.c.l.b16 %v241
    %v835 = vunpack.c.h.b16 %v241
    %v836 = vunpack.c.l.b16 %v242
    %v837 = vunpack.c.h.b16 %v242
    %v838 = vunpack.c.l.b16 %v243
    %v839 = vunpack.c.h.b16 %v243
    %v840 = vunpack.c.l.b16 %v244
    %v841 = vunpack.c.h.b16 %v244
    %v842 = vunpack.c.l.b16 %v245
    %v843 = vunpack.c.h.b16 %v245
    %v844 = vunpack.c.l.b16 %v246
    %v845 = vunpack.c.h.b16 %v246
    %v846 = vunpack.c.l.b16 %v247
    %v847 = vunpack.c.h.b16 %v247
    %v848 = vunpack.c.l.b16 %v248
    %v849 = vunpack.c.h.b16 %v248
    %v850 = vunpack.c.l.b16 %v249
    %v851 = vunpack.c.h.b16 %v249
    %v852 = vunpack.c.l.b16 %v250
    %v853 = vunpack.c.h.b16 %v250
    %v854 = vunpack.c.l.b16 %v251
    %v855 = vunpack.c.h.b16 %v251
    %v856 = vunpack.c.l.b16 %v252
    %v857 = vunpack.c.h.b16 %v252
    %v858 = vunpack.c.l.b16 %v253
    %v859 = vunpack.c.h.b16 %v253
    %v860 = vunpack.c.l.b16 %v254
    %v861 = vunpack.c.h.b16 %v254
    %v862 = vunpack.c.l.b16 %v255
    %v863 = vunpack.c.h.b16 %v255
    %v864 = vunpack.c.l.b16 %v256
    %v865 = vunpack.c.h.b16 %v256
    %v866 = vunpack.c.l.b16 %v257
    %v867 = vunpack.c.h.b16 %v257
    %v868 = vpack.c.b16 %v480, %v476
    %v869 = vpack.c.b16 %v481, %v477
    %v870 = vpack.c.b16 %v482, %v478
    %v871 = vpack.c.b16 %v483, %v479
    %v872 = vpack.c.b16 %v488, %v484
    %v873 = vpack.c.b16 %v489, %v485
    %v874 = vpack.c.b16 %v490, %v486
    %v875 = vpack.c.b16 %v491, %v487
    %v876 = vpack.c.b16 %v496, %v492
    %v877 = vpack.c.b16 %v497, %v493
    %v878 = vpack.c.b16 %v498, %v494
    %v879 = vpack.c.b16 %v499, %v495
    %v880 = vpack.c.b16 %v504, %v500
    %v881 = vpack.c.b16 %v505, %v501
    %v882 = vpack.c.b16 %v506, %v502
    %v883 = vpack.c.b16 %v507, %v503
    %v884 = vpack.c.b16 %v512, %v508
    %v885 = vpack.c.b16 %v513, %v509
    %v886 = vpack.c.b16 %v514, %v510
    %v887 = vpack.c.b16 %v515, %v511
    %v888 = vpack.c.b16 %v520, %v516
    %v889 = vpack.c.b16 %v521, %v517
    %v890 = vpack.c.b16 %v522, %v518
    %v891 = vpack.c.b16 %v523, %v519
    %v892 = vpack.c.b16 %v528, %v524
    %v893 = vpack.c.b16 %v529, %v525
    %v894 = vpack.c.b16 %v530, %v526
    %v895 = vpack.c.b16 %v531, %v527
    %v896 = vpack.c.b16 %v536, %v532
    %v897 = vpack.c.b16 %v537, %v533
    %v898 = vpack.c.b16 %v538, %v534
    %v899 = vpack.c.b16 %v539, %v535
    %v900 = vpack.c.b16 %v544, %v540
    %v901 = vpack.c.b16 %v545, %v541
    %v902 = vpack.c.b16 %v546, %v542
    %v903 = vpack.c.b16 %v547, %v543
    %v904 = vpack.c.b16 %v552, %v548
    %v905 = vpack.c.b16 %v553, %v549
    %v906 = vpack.c.b16 %v554, %v550
    %v907 = vpack.c.b16 %v555, %v551
    %v908 = vpack.c.b16 %v560, %v556
    %v909 = vpack.c.b16 %v561, %v557
    %v910 = vpack.c.b16 %v562, %v558
    %v911 = vpack.c.b16 %v563, %v559
    %v912 = vpack.c.b16 %v568, %v564
    %v913 = vpack.c.b16 %v569, %v565
    %v914 = vpack.c.b16 %v570, %v566
    %v915 = vpack.c.b16 %v571, %v567
    %v916 = vpack.c.b16 %v576, %v572
    %v917 = vpack.c.b16 %v577, %v573
    %v918 = vpack.c.b16 %v578, %v574
    %v919 = vpack.c.b16 %v579, %v575
    %v920 = vpack.c.b16 %v584, %v580
    %v921 = vpack.c.b16 %v585, %v581
    %v922 = vpack.c.b16 %v586, %v582
    %v923 = vpack.c.b16 %v587, %v583
    %v924 = vpack.c.b16 %v592, %v588
    %v925 = vpack.c.b16 %v593, %v589
    %v926 = vpack.c.b16 %v594, %v590
    %v927 = vpack.c.b16 %v595, %v591
    %v928 = vpack.c.b16 %v600, %v596
    %v929 = vpack.c.b16 %v601, %v597
    %v930 = vpack.c.b16 %v602, %v598
    %v931 = vpack.c.b16 %v603, %v599
    %v932 = vpack.c.b16 %v608, %v604
    %v933 = vpack.c.b16 %v609, %v605
    %v934 = vpack.c.b16 %v610, %v606
    %v935 = vpack.c.b16 %v611, %v607
    %v936 = vpack.c.b16 %v616, %v612
    %v937 = vpack.c.b16 %v617, %v613
    %v938 = vpack.c.b16 %v618, %v614
    %v939 = vpack.c.b16 %v619, %v615
    %v940 = vpack.c.b16 %v624, %v620
    %v941 = vpack.c.b16 %v625, %v621
    %v942 = vpack.c.b16 %v626, %v622
    %v943 = vpack.c.b16 %v627, %v623
    %v944 = vpack.c.b16 %v632, %v628
    %v945 = vpack.c.b16 %v633, %v629
    %v946 = vpack.c.b16 %v634, %v630
    %v947 = vpack.c.b16 %v635, %v631
    %v948 = vpack.c.b16 %v640, %v636
    %v949 = vpack.c.b16 %v641, %v637
    %v950 = vpack.c.b16 %v642, %v638
    %v951 = vpack.c.b16 %v643, %v639
    %v952 = vpack.c.b16 %v648, %v644
    %v953 = vpack.c.b16 %v649, %v645
    %v954 = vpack.c.b16 %v650, %v646
    %v955 = vpack.c.b16 %v651, %v647
    %v956 = vpack.c.b16 %v656, %v652
    %v957 = vpack.c.b16 %v657, %v653
    %v958 = vpack.c.b16 %v658, %v654
    %v959 = vpack.c.b16 %v659, %v655
    %v960 = vpack.c.b16 %v664, %v660
    %v961 = vpack.c.b16 %v665, %v661
    %v962 = vpack.c.b16 %v666, %v662
    %v963 = vpack.c.b16 %v667, %v663
    %v964 = vpack.c.b16 %v672, %v668
    %v965 = vpack.c.b16 %v673, %v669
    %v966 = vpack.c.b16 %v674, %v670
    %v967 = vpack.c.b16 %v675, %v671
    %v968 = vpack.c.b16 %v680, %v676
    %v969 = vpack.c.b16 %v681, %v677
    %v970 = vpack.c.b16 %v682, %v678
    %v971 = vpack.c.b16 %v683, %v679
    %v972 = vpack.c.b16 %v688, %v684
    %v973 = vpack.c.b16 %v689, %v685
    %v974 = vpack.c.b16 %v690, %v686
    %v975 = vpack.c.b16 %v691, %v687
    %v976 = vpack.c.b16 %v696, %v692
    %v977 = vpack.c.b16 %v697, %v693
    %v978 = vpack.c.b16 %v698, %v694
    %v979 = vpack.c.b16 %v699, %v695
    %v980 = vpack.c.b16 %v704, %v700
    %v981 = vpack.c.b16 %v705, %v701
    %v982 = vpack.c.b16 %v706, %v702
    %v983 = vpack.c.b16 %v707, %v703
    %v984 = vpack.c.b16 %v712, %v708
    %v985 = vpack.c.b16 %v713, %v709
    %v986 = vpack.c.b16 %v714, %v710
    %v987 = vpack.c.b16 %v715, %v711
    %v988 = vpack.c.b16 %v720, %v716
    %v989 = vpack.c.b16 %v721, %v717
    %v990 = vpack.c.b16 %v722, %v718
    %v991 = vpack.c.b16 %v723, %v719
    %v992 = vpack.c.b16 %v728, %v724
    %v993 = vpack.c.b16 %v729, %v725
    %v994 = vpack.c.b16 %v730, %v726
    %v995 = vpack.c.b16 %v731, %v727
    %v996 = vpack.c.b16 %v736, %v732
    %v997 = vpack.c.b16 %v737, %v733
    %v998 = vpack.c.b16 %v738, %v734
    %v999 = vpack.c.b16 %v739, %v735
    %v1000 = vpack.c.b16 %v744, %v740
    %v1001 = vpack.c.b16 %v745, %v741
    %v1002 = vpack.c.b16 %v746, %v742
    %v1003 = vpack.c.b16 %v747, %v743
    %v1004 = vpack.c.b16 %v752, %v748
    %v1005 = vpack.c.b16 %v753, %v749
    %v1006 = vpack.c.b16 %v754, %v750
    %v1007 = vpack.c.b16 %v755, %v751
    %v1008 = vpack.c.b16 %v760, %v756
    %v1009 = vpack.c.b16 %v761, %v757
    %v1010 = vpack.c.b16 %v762, %v758
    %v1011 = vpack.c.b16 %v763, %v759
    %v1012 = vpack.c.b16 %v768, %v764
    %v1013 = vpack.c.b16 %v769, %v765
    %v1014 = vpack.c.b16 %v770, %v766
    %v1015 = vpack.c.b16 %v771, %v767
    %v1016 = vpack.c.b16 %v776, %v772
    %v1017 = vpack.c.b16 %v777, %v773
    %v1018 = vpack.c.b16 %v778, %v774
    %v1019 = vpack.c.b16 %v779, %v775
    %v1020 = vpack.c.b16 %v784, %v780
    %v1021 = vpack.c.b16 %v785, %v781
    %v1022 = vpack.c.b16 %v786, %v782
    %v1023 = vpack.c.b16 %v787, %v783
    %v1024 = vpack.c.b16 %v792, %v788
    %v1025 = vpack.c.b16 %v793, %v789
    %v1026 = vpack.c.b16 %v794, %v790
    %v1027 = vpack.c.b16 %v795, %v791
    %v1028 = vpack.c.b16 %v800, %v796
    %v1029 = vpack.c.b16 %v801, %v797
    %v1030 = vpack.c.b16 %v802, %v798
    %v1031 = vpack.c.b16 %v803, %v799
    %v1032 = vpack.c.b16 %v808, %v804
    %v1033 = vpack.c.b16 %v809, %v805
    %v1034 = vpack.c.b16 %v810, %v806
    %v1035 = vpack.c.b16 %v811, %v807
    %v1036 = vpack.c.b16 %v816, %v812
    %v1037 = vpack.c.b16 %v817, %v813
    %v1038 = vpack.c.b16 %v818, %v814
    %v1039 = vpack.c.b16 %v819, %v815
    %v1040 = vpack.c.b16 %v824, %v820
    %v1041 = vpack.c.b16 %v825, %v821
    %v1042 = vpack.c.b16 %v826, %v822
    %v1043 = vpack.c.b16 %v827, %v823
    %v1044 = vpack.c.b16 %v832, %v828
    %v1045 = vpack.c.b16 %v833, %v829
    %v1046 = vpack.c.b16 %v834, %v830
    %v1047 = vpack.c.b16 %v835, %v831
    %v1048 = vpack.c.b16 %v840, %v836
    %v1049 = vpack.c.b16 %v841, %v837
    %v1050 = vpack.c.b16 %v842, %v838
    %v1051 = vpack.c.b16 %v843, %v839
    %v1052 = vpack.c.b16 %v848, %v844
    %v1053 = vpack.c.b16 %v849, %v845
    %v1054 = vpack.c.b16 %v850, %v846
    %v1055 = vpack.c.b16 %v851, %v847
    %v1056 = vpack.c.b16 %v856, %v852
    %v1057 = vpack.c.b16 %v857, %v853
    %v1058 = vpack.c.b16 %v858, %v854
    %v1059 = vpack.c.b16 %v859, %v855
    %v1060 = vpack.c.b16 %v864, %v860
    %v1061 = vpack.c.b16 %v865, %v861
    %v1062 = vpack.c.b16 %v866, %v862
    %v1063 = vpack.c.b16 %v867, %v863
    %vm1260 = vcmask 130048
    %v1262 = vsel %vm1260, %v61, 0
    %1264 = vmatprep.subr.bf16.mxu0 %v869
    %1265 = vmatpush1.bf16.msra.mxu0 %v868
    %1266 = vmatprep.subr.bf16.mxu0 %v873
    %1267 = vmatpush1.bf16.msra.mxu0 %v872
    %1268 = vmatprep.subr.bf16.mxu0 %v877
    %1269 = vmatpush1.bf16.msra.mxu0 %v876
    %1270 = vmatprep.subr.bf16.mxu0 %v881
    %1271 = vmatpush1.bf16.msra.mxu0 %v880
    %1272 = vmatprep.subr.bf16.mxu0 %v885
    %1273 = vmatpush1.bf16.msra.mxu0 %v884
    %1274 = vmatprep.subr.bf16.mxu0 %v889
    %1275 = vmatpush1.bf16.msra.mxu0 %v888
    %1276 = vmatprep.subr.bf16.mxu0 %v893
    %1277 = vmatpush1.bf16.msra.mxu0 %v892
    %1278 = vmatprep.subr.bf16.mxu0 %v897
    %1279 = vmatpush1.bf16.msra.mxu0 %v896
    %1280 = vmatprep.subr.bf16.mxu0 %v901
    %1281 = vmatpush1.bf16.msra.mxu0 %v900
    %1282 = vmatprep.subr.bf16.mxu0 %v905
    %1283 = vmatpush1.bf16.msra.mxu0 %v904
    %1284 = vmatprep.subr.bf16.mxu0 %v909
    %1285 = vmatpush1.bf16.msra.mxu0 %v908
    %1286 = vmatprep.subr.bf16.mxu0 %v913
    %1287 = vmatpush1.bf16.msra.mxu0 %v912
    %1288 = vmatprep.subr.bf16.mxu0 %v917
    %1289 = vmatpush1.bf16.msra.mxu0 %v916
    %1290 = vmatprep.subr.bf16.mxu0 %v921
    %1291 = vmatpush1.bf16.msra.mxu0 %v920
    %1292 = vmatprep.subr.bf16.mxu0 %v925
    %1293 = vmatpush1.bf16.msra.mxu0 %v924
    %1294 = vmatprep.subr.bf16.mxu0 %v929
    %1295 = vmatpush1.bf16.msra.mxu0 %v928
    %1296 = vmatprep.mubr.bf16.mxu0 %v56
    %1297 = vmatmul.mubr.bf16.gmra.mrb[0].mxu0 %v55
    %v1298 = vpop.f32.mrb[0].mxu0
    %v1299 = vadd.f32 %v263, %v1298
    %v1300 = vpop.f32.mrb[0].mxu0
    %v1301 = vadd.f32 %v267, %v1300
    %v1302 = vpop.f32.mrb[0].mxu0
    %v1303 = vadd.f32 %v263, %v1302
    %v1304 = vpop.f32.mrb[0].mxu0
    %v1305 = vadd.f32 %v267, %v1304
    %1306 = vdwg.mxu0
    %1307 = vmatprep.subr.bf16.mxu0 %v933
    %1308 = vmatpush1.bf16.msra.mxu0 %v932
    %1309 = vmatprep.subr.bf16.mxu0 %v937
    %1310 = vmatpush1.bf16.msra.mxu0 %v936
    %1311 = vmatprep.subr.bf16.mxu0 %v941
    %1312 = vmatpush1.bf16.msra.mxu0 %v940
    %1313 = vmatprep.subr.bf16.mxu0 %v945
    %1314 = vmatpush1.bf16.msra.mxu0 %v944
    %1315 = vmatprep.subr.bf16.mxu0 %v949
    %1316 = vmatpush1.bf16.msra.mxu0 %v948
    %1317 = vmatprep.subr.bf16.mxu0 %v953
    %1318 = vmatpush1.bf16.msra.mxu0 %v952
    %1319 = vmatprep.subr.bf16.mxu0 %v957
    %1320 = vmatpush1.bf16.msra.mxu0 %v956
    %1321 = vmatprep.subr.bf16.mxu0 %v961
    %1322 = vmatpush1.bf16.msra.mxu0 %v960
    %1323 = vmatprep.subr.bf16.mxu0 %v965
    %1324 = vmatpush1.bf16.msra.mxu0 %v964
    %1325 = vmatprep.subr.bf16.mxu0 %v969
    %1326 = vmatpush1.bf16.msra.mxu0 %v968
    %1327 = vmatprep.subr.bf16.mxu0 %v973
    %1328 = vmatpush1.bf16.msra.mxu0 %v972
    %1329 = vmatprep.subr.bf16.mxu0 %v977
    %1330 = vmatpush1.bf16.msra.mxu0 %v976
    %1331 = vmatprep.subr.bf16.mxu0 %v981
    %1332 = vmatpush1.bf16.msra.mxu0 %v980
    %1333 = vmatprep.subr.bf16.mxu0 %v985
    %1334 = vmatpush1.bf16.msra.mxu0 %v984
    %1335 = vmatprep.subr.bf16.mxu0 %v989
    %1336 = vmatpush1.bf16.msra.mxu0 %v988
    %1337 = vmatprep.subr.bf16.mxu0 %v993
    %1338 = vmatpush1.bf16.msra.mxu0 %v992
    %1339 = vmatprep.mubr.bf16.mxu0 %v58
    %1340 = vmatmul.mubr.bf16.gmra.mrb[0].mxu0 %v57
    %v1341 = vpop.f32.mrb[0].mxu0
    %v1342 = vadd.f32 %v1299, %v1341
    %v1343 = vpop.f32.mrb[0].mxu0
    %v1344 = vadd.f32 %v1301, %v1343
    %v1345 = vpop.f32.mrb[0].mxu0
    %v1346 = vadd.f32 %v1303, %v1345
    %v1347 = vpop.f32.mrb[0].mxu0
    %v1348 = vadd.f32 %v1305, %v1347
    %1349 = vdwg.mxu0
    %1350 = vmatprep.subr.bf16.mxu0 %v997
    %1351 = vmatpush1.bf16.msra.mxu0 %v996
    %1352 = vmatprep.subr.bf16.mxu0 %v1001
    %1353 = vmatpush1.bf16.msra.mxu0 %v1000
    %1354 = vmatprep.subr.bf16.mxu0 %v1005
    %1355 = vmatpush1.bf16.msra.mxu0 %v1004
    %1356 = vmatprep.subr.bf16.mxu0 %v1009
    %1357 = vmatpush1.bf16.msra.mxu0 %v1008
    %1358 = vmatprep.subr.bf16.mxu0 %v1013
    %1359 = vmatpush1.bf16.msra.mxu0 %v1012
    %1360 = vmatprep.subr.bf16.mxu0 %v1017
    %1361 = vmatpush1.bf16.msra.mxu0 %v1016
    %1362 = vmatprep.subr.bf16.mxu0 %v1021
    %1363 = vmatpush1.bf16.msra.mxu0 %v1020
    %1364 = vmatprep.subr.bf16.mxu0 %v1025
    %1365 = vmatpush1.bf16.msra.mxu0 %v1024
    %1366 = vmatprep.subr.bf16.mxu0 %v1029
    %1367 = vmatpush1.bf16.msra.mxu0 %v1028
    %1368 = vmatprep.subr.bf16.mxu0 %v1033
    %1369 = vmatpush1.bf16.msra.mxu0 %v1032
    %1370 = vmatprep.subr.bf16.mxu0 %v1037
    %1371 = vmatpush1.bf16.msra.mxu0 %v1036
    %1372 = vmatprep.subr.bf16.mxu0 %v1041
    %1373 = vmatpush1.bf16.msra.mxu0 %v1040
    %1374 = vmatprep.subr.bf16.mxu0 %v1045
    %1375 = vmatpush1.bf16.msra.mxu0 %v1044
    %1376 = vmatprep.subr.bf16.mxu0 %v1049
    %1377 = vmatpush1.bf16.msra.mxu0 %v1048
    %1378 = vmatprep.subr.bf16.mxu0 %v1053
    %1379 = vmatpush1.bf16.msra.mxu0 %v1052
    %1380 = vmatprep.subr.bf16.mxu0 %v1057
    %1381 = vmatpush1.bf16.msra.mxu0 %v1056
    %1382 = vmatprep.mubr.bf16.mxu0 %v60
    %1383 = vmatmul.mubr.bf16.gmra.mrb[0].mxu0 %v59
    %v1384 = vpop.f32.mrb[0].mxu0
    %v1385 = vadd.f32 %v1342, %v1384
    %v1386 = vpop.f32.mrb[0].mxu0
    %v1387 = vadd.f32 %v1344, %v1386
    %v1388 = vpop.f32.mrb[0].mxu0
    %v1389 = vadd.f32 %v1346, %v1388
    %v1390 = vpop.f32.mrb[0].mxu0
    %v1391 = vadd.f32 %v1348, %v1390
    %1392 = vdwg.mxu0
    %1393 = vmatprep.subr.bf16.mxu0 %v1061
    %1394 = vmatpush1.bf16.msra.mxu0 %v1060
    %1395 = vmatprep.subr.bf16.mxu0 0
    %1396 = vmatpush1.bf16.msra.mxu0 0
    %1397 = vmatprep.subr.bf16.mxu0 0
    %1398 = vmatpush1.bf16.msra.mxu0 0
    %1399 = vmatprep.subr.bf16.mxu0 0
    %1400 = vmatpush1.bf16.msra.mxu0 0
    %1401 = vmatprep.subr.bf16.mxu0 0
    %1402 = vmatpush1.bf16.msra.mxu0 0
    %1403 = vmatprep.subr.bf16.mxu0 0
    %1404 = vmatpush1.bf16.msra.mxu0 0
    %1405 = vmatprep.subr.bf16.mxu0 0
    %1406 = vmatpush1.bf16.msra.mxu0 0
    %1407 = vmatprep.subr.bf16.mxu0 0
    %1408 = vmatpush1.bf16.msra.mxu0 0
    %1409 = vmatprep.subr.bf16.mxu0 0
    %1410 = vmatpush1.bf16.msra.mxu0 0
    %1411 = vmatprep.subr.bf16.mxu0 0
    %1412 = vmatpush1.bf16.msra.mxu0 0
    %1413 = vmatprep.subr.bf16.mxu0 0
    %1414 = vmatpush1.bf16.msra.mxu0 0
    %1415 = vmatprep.subr.bf16.mxu0 0
    %1416 = vmatpush1.bf16.msra.mxu0 0
    %1417 = vmatprep.subr.bf16.mxu0 0
    %1418 = vmatpush1.bf16.msra.mxu0 0
    %1419 = vmatprep.subr.bf16.mxu0 0
    %1420 = vmatpush1.bf16.msra.mxu0 0
    %1421 = vmatprep.subr.bf16.mxu0 0
    %1422 = vmatpush1.bf16.msra.mxu0 0
    %1423 = vmatprep.subr.bf16.mxu0 0
    %1424 = vmatpush1.bf16.msra.mxu0 0
    %1425 = vmatprep.mubr.bf16.mxu0 0
    %1426 = vmatmul.mubr.bf16.gmra.mrb[0].mxu0 %v1262
    %v1427 = vpop.f32.mrb[0].mxu0
    %v1428 = vadd.f32 %v1385, %v1427
    %v1429 = vpop.f32.mrb[0].mxu0
    %v1430 = vadd.f32 %v1387, %v1429
    %v1431 = vpop.f32.mrb[0].mxu0
    %v1432 = vadd.f32 %v1389, %v1431
    %v1433 = vpop.f32.mrb[0].mxu0
    %v1434 = vadd.f32 %v1391, %v1433
    %1435 = vdwg.mxu0
    %1436 = vmatprep.subr.bf16.mxu0 %v871
    %1437 = vmatpush1.bf16.msra.mxu0 %v870
    %1438 = vmatprep.subr.bf16.mxu0 %v875
    %1439 = vmatpush1.bf16.msra.mxu0 %v874
    %1440 = vmatprep.subr.bf16.mxu0 %v879
    %1441 = vmatpush1.bf16.msra.mxu0 %v878
    %1442 = vmatprep.subr.bf16.mxu0 %v883
    %1443 = vmatpush1.bf16.msra.mxu0 %v882
    %1444 = vmatprep.subr.bf16.mxu0 %v887
    %1445 = vmatpush1.bf16.msra.mxu0 %v886
    %1446 = vmatprep.subr.bf16.mxu0 %v891
    %1447 = vmatpush1.bf16.msra.mxu0 %v890
    %1448 = vmatprep.subr.bf16.mxu0 %v895
    %1449 = vmatpush1.bf16.msra.mxu0 %v894
    %1450 = vmatprep.subr.bf16.mxu0 %v899
    %1451 = vmatpush1.bf16.msra.mxu0 %v898
    %1452 = vmatprep.subr.bf16.mxu0 %v903
    %1453 = vmatpush1.bf16.msra.mxu0 %v902
    %1454 = vmatprep.subr.bf16.mxu0 %v907
    %1455 = vmatpush1.bf16.msra.mxu0 %v906
    %1456 = vmatprep.subr.bf16.mxu0 %v911
    %1457 = vmatpush1.bf16.msra.mxu0 %v910
    %1458 = vmatprep.subr.bf16.mxu0 %v915
    %1459 = vmatpush1.bf16.msra.mxu0 %v914
    %1460 = vmatprep.subr.bf16.mxu0 %v919
    %1461 = vmatpush1.bf16.msra.mxu0 %v918
    %1462 = vmatprep.subr.bf16.mxu0 %v923
    %1463 = vmatpush1.bf16.msra.mxu0 %v922
    %1464 = vmatprep.subr.bf16.mxu0 %v927
    %1465 = vmatpush1.bf16.msra.mxu0 %v926
    %1466 = vmatprep.subr.bf16.mxu0 %v931
    %1467 = vmatpush1.bf16.msra.mxu0 %v930
    %1468 = vmatprep.mubr.bf16.mxu0 %v56
    %1469 = vmatmul.mubr.bf16.gmra.mrb[0].mxu0 %v55
    %v1470 = vpop.f32.mrb[0].mxu0
    %v1471 = vadd.f32 %v271, %v1470
    %v1472 = vpop.f32.mrb[0].mxu0
    %v1473 = vadd.f32 %v275, %v1472
    %v1474 = vpop.f32.mrb[0].mxu0
    %v1475 = vadd.f32 %v271, %v1474
    %v1476 = vpop.f32.mrb[0].mxu0
    %v1477 = vadd.f32 %v275, %v1476
    %1478 = vdwg.mxu0
    %1479 = vmatprep.subr.bf16.mxu0 %v935
    %1480 = vmatpush1.bf16.msra.mxu0 %v934
    %1481 = vmatprep.subr.bf16.mxu0 %v939
    %1482 = vmatpush1.bf16.msra.mxu0 %v938
    %1483 = vmatprep.subr.bf16.mxu0 %v943
    %1484 = vmatpush1.bf16.msra.mxu0 %v942
    %1485 = vmatprep.subr.bf16.mxu0 %v947
    %1486 = vmatpush1.bf16.msra.mxu0 %v946
    %1487 = vmatprep.subr.bf16.mxu0 %v951
    %1488 = vmatpush1.bf16.msra.mxu0 %v950
    %1489 = vmatprep.subr.bf16.mxu0 %v955
    %1490 = vmatpush1.bf16.msra.mxu0 %v954
    %1491 = vmatprep.subr.bf16.mxu0 %v959
    %1492 = vmatpush1.bf16.msra.mxu0 %v958
    %1493 = vmatprep.subr.bf16.mxu0 %v963
    %1494 = vmatpush1.bf16.msra.mxu0 %v962
    %1495 = vmatprep.subr.bf16.mxu0 %v967
    %1496 = vmatpush1.bf16.msra.mxu0 %v966
    %1497 = vmatprep.subr.bf16.mxu0 %v971
    %1498 = vmatpush1.bf16.msra.mxu0 %v970
    %1499 = vmatprep.subr.bf16.mxu0 %v975
    %1500 = vmatpush1.bf16.msra.mxu0 %v974
    %1501 = vmatprep.subr.bf16.mxu0 %v979
    %1502 = vmatpush1.bf16.msra.mxu0 %v978
    %1503 = vmatprep.subr.bf16.mxu0 %v983
    %1504 = vmatpush1.bf16.msra.mxu0 %v982
    %1505 = vmatprep.subr.bf16.mxu0 %v987
    %1506 = vmatpush1.bf16.msra.mxu0 %v986
    %1507 = vmatprep.subr.bf16.mxu0 %v991
    %1508 = vmatpush1.bf16.msra.mxu0 %v990
    %1509 = vmatprep.subr.bf16.mxu0 %v995
    %1510 = vmatpush1.bf16.msra.mxu0 %v994
    %1511 = vmatprep.mubr.bf16.mxu0 %v58
    %1512 = vmatmul.mubr.bf16.gmra.mrb[0].mxu0 %v57
    %v1513 = vpop.f32.mrb[0].mxu0
    %v1514 = vadd.f32 %v1471, %v1513
    %v1515 = vpop.f32.mrb[0].mxu0
    %v1516 = vadd.f32 %v1473, %v1515
    %v1517 = vpop.f32.mrb[0].mxu0
    %v1518 = vadd.f32 %v1475, %v1517
    %v1519 = vpop.f32.mrb[0].mxu0
    %v1520 = vadd.f32 %v1477, %v1519
    %1521 = vdwg.mxu0
    %1522 = vmatprep.subr.bf16.mxu0 %v999
    %1523 = vmatpush1.bf16.msra.mxu0 %v998
    %1524 = vmatprep.subr.bf16.mxu0 %v1003
    %1525 = vmatpush1.bf16.msra.mxu0 %v1002
    %1526 = vmatprep.subr.bf16.mxu0 %v1007
    %1527 = vmatpush1.bf16.msra.mxu0 %v1006
    %1528 = vmatprep.subr.bf16.mxu0 %v1011
    %1529 = vmatpush1.bf16.msra.mxu0 %v1010
    %1530 = vmatprep.subr.bf16.mxu0 %v1015
    %1531 = vmatpush1.bf16.msra.mxu0 %v1014
    %1532 = vmatprep.subr.bf16.mxu0 %v1019
    %1533 = vmatpush1.bf16.msra.mxu0 %v1018
    %1534 = vmatprep.subr.bf16.mxu0 %v1023
    %1535 = vmatpush1.bf16.msra.mxu0 %v1022
    %1536 = vmatprep.subr.bf16.mxu0 %v1027
    %1537 = vmatpush1.bf16.msra.mxu0 %v1026
    %1538 = vmatprep.subr.bf16.mxu0 %v1031
    %1539 = vmatpush1.bf16.msra.mxu0 %v1030
    %1540 = vmatprep.subr.bf16.mxu0 %v1035
    %1541 = vmatpush1.bf16.msra.mxu0 %v1034
    %1542 = vmatprep.subr.bf16.mxu0 %v1039
    %1543 = vmatpush1.bf16.msra.mxu0 %v1038
    %1544 = vmatprep.subr.bf16.mxu0 %v1043
    %1545 = vmatpush1.bf16.msra.mxu0 %v1042
    %1546 = vmatprep.subr.bf16.mxu0 %v1047
    %1547 = vmatpush1.bf16.msra.mxu0 %v1046
    %1548 = vmatprep.subr.bf16.mxu0 %v1051
    %1549 = vmatpush1.bf16.msra.mxu0 %v1050
    %1550 = vmatprep.subr.bf16.mxu0 %v1055
    %1551 = vmatpush1.bf16.msra.mxu0 %v1054
    %1552 = vmatprep.subr.bf16.mxu0 %v1059
    %1553 = vmatpush1.bf16.msra.mxu0 %v1058
    %1554 = vmatprep.mubr.bf16.mxu0 %v60
    %1555 = vmatmul.mubr.bf16.gmra.mrb[0].mxu0 %v59
    %v1556 = vpop.f32.mrb[0].mxu0
    %v1557 = vadd.f32 %v1514, %v1556
    %v1558 = vpop.f32.mrb[0].mxu0
    %v1559 = vadd.f32 %v1516, %v1558
    %v1560 = vpop.f32.mrb[0].mxu0
    %v1561 = vadd.f32 %v1518, %v1560
    %v1562 = vpop.f32.mrb[0].mxu0
    %v1563 = vadd.f32 %v1520, %v1562
    %1564 = vdwg.mxu0
    %1565 = vmatprep.subr.bf16.mxu0 %v1063
    %1566 = vmatpush1.bf16.msra.mxu0 %v1062
    %1567 = vmatprep.subr.bf16.mxu0 0
    %1568 = vmatpush1.bf16.msra.mxu0 0
    %1569 = vmatprep.subr.bf16.mxu0 0
    %1570 = vmatpush1.bf16.msra.mxu0 0
    %1571 = vmatprep.subr.bf16.mxu0 0
    %1572 = vmatpush1.bf16.msra.mxu0 0
    %1573 = vmatprep.subr.bf16.mxu0 0
    %1574 = vmatpush1.bf16.msra.mxu0 0
    %1575 = vmatprep.subr.bf16.mxu0 0
    %1576 = vmatpush1.bf16.msra.mxu0 0
    %1577 = vmatprep.subr.bf16.mxu0 0
    %1578 = vmatpush1.bf16.msra.mxu0 0
    %1579 = vmatprep.subr.bf16.mxu0 0
    %1580 = vmatpush1.bf16.msra.mxu0 0
    %1581 = vmatprep.subr.bf16.mxu0 0
    %1582 = vmatpush1.bf16.msra.mxu0 0
    %1583 = vmatprep.subr.bf16.mxu0 0
    %1584 = vmatpush1.bf16.msra.mxu0 0
    %1585 = vmatprep.subr.bf16.mxu0 0
    %1586 = vmatpush1.bf16.msra.mxu0 0
    %1587 = vmatprep.subr.bf16.mxu0 0
    %1588 = vmatpush1.bf16.msra.mxu0 0
    %1589 = vmatprep.subr.bf16.mxu0 0
    %1590 = vmatpush1.bf16.msra.mxu0 0
    %1591 = vmatprep.subr.bf16.mxu0 0
    %1592 = vmatpush1.bf16.msra.mxu0 0
    %1593 = vmatprep.subr.bf16.mxu0 0
    %1594 = vmatpush1.bf16.msra.mxu0 0
    %1595 = vmatprep.subr.bf16.mxu0 0
    %1596 = vmatpush1.bf16.msra.mxu0 0
    %1597 = vmatprep.mubr.bf16.mxu0 0
    %1598 = vmatmul.mubr.bf16.gmra.mrb[0].mxu0 %v1262
    %v1599 = vpop.f32.mrb[0].mxu0
    %v1600 = vadd.f32 %v1557, %v1599
    %v1601 = vpop.f32.mrb[0].mxu0
    %v1602 = vadd.f32 %v1559, %v1601
    %v1603 = vpop.f32.mrb[0].mxu0
    %v1604 = vadd.f32 %v1561, %v1603
    %v1605 = vpop.f32.mrb[0].mxu0
    %v1606 = vadd.f32 %v1563, %v1605
    %1607 = vdwg.mxu0
    %v1608 = vmax.f32 %v1428, 0.0
    %v1609 = vmax.f32 %v1430, 0.0
    %v1610 = vmax.f32 %v1600, 0.0
    %v1611 = vmax.f32 %v1602, 0.0
    %v1612 = vmax.f32 %v1432, 0.0
    %v1613 = vmax.f32 %v1434, 0.0
    %v1614 = vmax.f32 %v1604, 0.0
    %v1615 = vmax.f32 %v1606, 0.0
    %v1616 = vpack.c.bf16 %v1612, %v1608
    %v1617 = vpack.c.bf16 %v1613, %v1609
    %v1618 = vpack.c.bf16 %v1614, %v1610
    %v1619 = vpack.c.bf16 %v1615, %v1611
    %v1620 = vld [vmem:[%s4] sm:$0xff]
    %v1621 = vld [vmem:[%s4 + $0x8] sm:$0xff]
    %v1622 = vld [vmem:[%s4 + $0x10] sm:$0xff]
    %v1623 = vld [vmem:[%s4 + $0x18] sm:$0xff]
    %v1624 = vld [vmem:[%s4 + $0x20] sm:$0xff]
    %v1625 = vld [vmem:[%s4 + $0x28] sm:$0xff]
    %v1626 = vld [vmem:[%s4 + $0x30] sm:$0xff]
    %v1627 = vld [vmem:[%s4 + $0x38] sm:$0xff]
    %v1628 = vld [vmem:[%s4 + $0x40] sm:$0xff]
    %v1629 = vld [vmem:[%s4 + $0x48] sm:$0xff]
    %v1630 = vld [vmem:[%s4 + $0x50] sm:$0xff]
    %v1631 = vld [vmem:[%s4 + $0x58] sm:$0xff]
    %v1632 = vld [vmem:[%s4 + $0x60] sm:$0xff]
    %v1633 = vld [vmem:[%s4 + $0x68] sm:$0xff]
    %v1634 = vld [vmem:[%s4 + $0x70] sm:$0xff]
    %v1635 = vld [vmem:[%s4 + $0x78] sm:$0xff]
    %v1636 = vld [vmem:[%s4 + $0x80] sm:$0xff]
    %v1637 = vld [vmem:[%s4 + $0x88] sm:$0xff]
    %v1638 = vld [vmem:[%s4 + $0x90] sm:$0xff]
    %v1639 = vld [vmem:[%s4 + $0x98] sm:$0xff]
    %v1640 = vld [vmem:[%s4 + $0xa0] sm:$0xff]
    %v1641 = vld [vmem:[%s4 + $0xa8] sm:$0xff]
    %v1642 = vld [vmem:[%s4 + $0xb0] sm:$0xff]
    %v1643 = vld [vmem:[%s4 + $0xb8] sm:$0xff]
    %v1644 = vld [vmem:[%s4 + $0xc0] sm:$0xff]
    %v1645 = vld [vmem:[%s4 + $0xc8] sm:$0xff]
    %v1646 = vld [vmem:[%s4 + $0xd0] sm:$0xff]
    %v1647 = vld [vmem:[%s4 + $0xd8] sm:$0xff]
    %v1648 = vld [vmem:[%s4 + $0xe0] sm:$0xff]
    %v1649 = vld [vmem:[%s4 + $0xe8] sm:$0xff]
    %v1650 = vld [vmem:[%s4 + $0xf0] sm:$0xff]
    %v1651 = vld [vmem:[%s4 + $0xf8] sm:$0xff]
    %v1652 = vld [vmem:[%s4 + $0x100] sm:$0xff]
    %v1653 = vld [vmem:[%s4 + $0x108] sm:$0xff]
    %v1654 = vld [vmem:[%s4 + $0x110] sm:$0xff]
    %v1655 = vld [vmem:[%s4 + $0x118] sm:$0xff]
    %v1656 = vld [vmem:[%s4 + $0x120] sm:$0xff]
    %v1657 = vld [vmem:[%s4 + $0x128] sm:$0xff]
    %v1658 = vld [vmem:[%s4 + $0x130] sm:$0xff]
    %v1659 = vld [vmem:[%s4 + $0x138] sm:$0xff]
    %v1660 = vld [vmem:[%s4 + $0x140] sm:$0xff]
    %v1661 = vld [vmem:[%s4 + $0x148] sm:$0xff]
    %v1662 = vld [vmem:[%s4 + $0x150] sm:$0xff]
    %v1663 = vld [vmem:[%s4 + $0x158] sm:$0xff]
    %v1664 = vld [vmem:[%s4 + $0x160] sm:$0xff]
    %v1665 = vld [vmem:[%s4 + $0x168] sm:$0xff]
    %v1666 = vld [vmem:[%s4 + $0x170] sm:$0xff]
    %v1667 = vld [vmem:[%s4 + $0x178] sm:$0xff]
    %v1668 = vld [vmem:[%s4 + $0x180] sm:$0xff]
    %v1669 = vld [vmem:[%s4 + $0x188] sm:$0xff]
    %v1670 = vld [vmem:[%s4 + $0x190] sm:$0xff]
    %v1671 = vld [vmem:[%s4 + $0x198] sm:$0xff]
    %v1672 = vld [vmem:[%s4 + $0x1a0] sm:$0xff]
    %v1673 = vld [vmem:[%s4 + $0x1a8] sm:$0xff]
    %v1674 = vld [vmem:[%s4 + $0x1b0] sm:$0xff]
    %v1675 = vld [vmem:[%s4 + $0x1b8] sm:$0xff]
    %v1676 = vld [vmem:[%s4 + $0x1c0] sm:$0xff]
    %v1677 = vld [vmem:[%s4 + $0x1c8] sm:$0xff]
    %v1678 = vld [vmem:[%s4 + $0x1d0] sm:$0xff]
    %v1679 = vld [vmem:[%s4 + $0x1d8] sm:$0xff]
    %v1680 = vld [vmem:[%s4 + $0x1e0] sm:$0xff]
    %v1681 = vld [vmem:[%s4 + $0x1e8] sm:$0xff]
    %v1682 = vld [vmem:[%s4 + $0x1f0] sm:$0xff]
    %v1683 = vld [vmem:[%s4 + $0x1f8] sm:$0xff]
    %v1684 = vld [vmem:[%s5] sm:$0x3]
    %v1686 = vlaneseq
    %v1687 = vshrl.u32 %v1686, 7
    %v1688 = vsub.s32 0, %v1687
    %v1689 = vrot.slane %v1684, %v1688
    %v1690 = vlaneseq
    %v1691 = vshrl.u32 %v1690, 7
    %v1692 = vsub.s32 1, %v1691
    %v1693 = vrot.slane %v1684, %v1692
    %v1760 = vunpack.c.l.b16 %v1620
    %v1761 = vunpack.c.h.b16 %v1620
    %v1762 = vunpack.c.l.b16 %v1621
    %v1763 = vunpack.c.h.b16 %v1621
    %v1764 = vunpack.c.l.b16 %v1622
    %v1765 = vunpack.c.h.b16 %v1622
    %v1766 = vunpack.c.l.b16 %v1623
    %v1767 = vunpack.c.h.b16 %v1623
    %v1768 = vunpack.c.l.b16 %v1624
    %v1769 = vunpack.c.h.b16 %v1624
    %v1770 = vunpack.c.l.b16 %v1625
    %v1771 = vunpack.c.h.b16 %v1625
    %v1772 = vunpack.c.l.b16 %v1626
    %v1773 = vunpack.c.h.b16 %v1626
    %v1774 = vunpack.c.l.b16 %v1627
    %v1775 = vunpack.c.h.b16 %v1627
    %v1776 = vunpack.c.l.b16 %v1628
    %v1777 = vunpack.c.h.b16 %v1628
    %v1778 = vunpack.c.l.b16 %v1629
    %v1779 = vunpack.c.h.b16 %v1629
    %v1780 = vunpack.c.l.b16 %v1630
    %v1781 = vunpack.c.h.b16 %v1630
    %v1782 = vunpack.c.l.b16 %v1631
    %v1783 = vunpack.c.h.b16 %v1631
    %v1784 = vunpack.c.l.b16 %v1632
    %v1785 = vunpack.c.h.b16 %v1632
    %v1786 = vunpack.c.l.b16 %v1633
    %v1787 = vunpack.c.h.b16 %v1633
    %v1788 = vunpack.c.l.b16 %v1634
    %v1789 = vunpack.c.h.b16 %v1634
    %v1790 = vunpack.c.l.b16 %v1635
    %v1791 = vunpack.c.h.b16 %v1635
    %v1792 = vunpack.c.l.b16 %v1636
    %v1793 = vunpack.c.h.b16 %v1636
    %v1794 = vunpack.c.l.b16 %v1637
    %v1795 = vunpack.c.h.b16 %v1637
    %v1796 = vunpack.c.l.b16 %v1638
    %v1797 = vunpack.c.h.b16 %v1638
    %v1798 = vunpack.c.l.b16 %v1639
    %v1799 = vunpack.c.h.b16 %v1639
    %v1800 = vunpack.c.l.b16 %v1640
    %v1801 = vunpack.c.h.b16 %v1640
    %v1802 = vunpack.c.l.b16 %v1641
    %v1803 = vunpack.c.h.b16 %v1641
    %v1804 = vunpack.c.l.b16 %v1642
    %v1805 = vunpack.c.h.b16 %v1642
    %v1806 = vunpack.c.l.b16 %v1643
    %v1807 = vunpack.c.h.b16 %v1643
    %v1808 = vunpack.c.l.b16 %v1644
    %v1809 = vunpack.c.h.b16 %v1644
    %v1810 = vunpack.c.l.b16 %v1645
    %v1811 = vunpack.c.h.b16 %v1645
    %v1812 = vunpack.c.l.b16 %v1646
    %v1813 = vunpack.c.h.b16 %v1646
    %v1814 = vunpack.c.l.b16 %v1647
    %v1815 = vunpack.c.h.b16 %v1647
    %v1816 = vunpack.c.l.b16 %v1648
    %v1817 = vunpack.c.h.b16 %v1648
    %v1818 = vunpack.c.l.b16 %v1649
    %v1819 = vunpack.c.h.b16 %v1649
    %v1820 = vunpack.c.l.b16 %v1650
    %v1821 = vunpack.c.h.b16 %v1650
    %v1822 = vunpack.c.l.b16 %v1651
    %v1823 = vunpack.c.h.b16 %v1651
    %v1824 = vunpack.c.l.b16 %v1652
    %v1825 = vunpack.c.h.b16 %v1652
    %v1826 = vunpack.c.l.b16 %v1653
    %v1827 = vunpack.c.h.b16 %v1653
    %v1828 = vunpack.c.l.b16 %v1654
    %v1829 = vunpack.c.h.b16 %v1654
    %v1830 = vunpack.c.l.b16 %v1655
    %v1831 = vunpack.c.h.b16 %v1655
    %v1832 = vunpack.c.l.b16 %v1656
    %v1833 = vunpack.c.h.b16 %v1656
    %v1834 = vunpack.c.l.b16 %v1657
    %v1835 = vunpack.c.h.b16 %v1657
    %v1836 = vunpack.c.l.b16 %v1658
    %v1837 = vunpack.c.h.b16 %v1658
    %v1838 = vunpack.c.l.b16 %v1659
    %v1839 = vunpack.c.h.b16 %v1659
    %v1840 = vunpack.c.l.b16 %v1660
    %v1841 = vunpack.c.h.b16 %v1660
    %v1842 = vunpack.c.l.b16 %v1661
    %v1843 = vunpack.c.h.b16 %v1661
    %v1844 = vunpack.c.l.b16 %v1662
    %v1845 = vunpack.c.h.b16 %v1662
    %v1846 = vunpack.c.l.b16 %v1663
    %v1847 = vunpack.c.h.b16 %v1663
    %v1848 = vunpack.c.l.b16 %v1664
    %v1849 = vunpack.c.h.b16 %v1664
    %v1850 = vunpack.c.l.b16 %v1665
    %v1851 = vunpack.c.h.b16 %v1665
    %v1852 = vunpack.c.l.b16 %v1666
    %v1853 = vunpack.c.h.b16 %v1666
    %v1854 = vunpack.c.l.b16 %v1667
    %v1855 = vunpack.c.h.b16 %v1667
    %v1856 = vunpack.c.l.b16 %v1668
    %v1857 = vunpack.c.h.b16 %v1668
    %v1858 = vunpack.c.l.b16 %v1669
    %v1859 = vunpack.c.h.b16 %v1669
    %v1860 = vunpack.c.l.b16 %v1670
    %v1861 = vunpack.c.h.b16 %v1670
    %v1862 = vunpack.c.l.b16 %v1671
    %v1863 = vunpack.c.h.b16 %v1671
    %v1864 = vunpack.c.l.b16 %v1672
    %v1865 = vunpack.c.h.b16 %v1672
    %v1866 = vunpack.c.l.b16 %v1673
    %v1867 = vunpack.c.h.b16 %v1673
    %v1868 = vunpack.c.l.b16 %v1674
    %v1869 = vunpack.c.h.b16 %v1674
    %v1870 = vunpack.c.l.b16 %v1675
    %v1871 = vunpack.c.h.b16 %v1675
    %v1872 = vunpack.c.l.b16 %v1676
    %v1873 = vunpack.c.h.b16 %v1676
    %v1874 = vunpack.c.l.b16 %v1677
    %v1875 = vunpack.c.h.b16 %v1677
    %v1876 = vunpack.c.l.b16 %v1678
    %v1877 = vunpack.c.h.b16 %v1678
    %v1878 = vunpack.c.l.b16 %v1679
    %v1879 = vunpack.c.h.b16 %v1679
    %v1880 = vunpack.c.l.b16 %v1680
    %v1881 = vunpack.c.h.b16 %v1680
    %v1882 = vunpack.c.l.b16 %v1681
    %v1883 = vunpack.c.h.b16 %v1681
    %v1884 = vunpack.c.l.b16 %v1682
    %v1885 = vunpack.c.h.b16 %v1682
    %v1886 = vunpack.c.l.b16 %v1683
    %v1887 = vunpack.c.h.b16 %v1683
    %v1888 = vpack.c.b16 %v1762, %v1760
    %v1889 = vpack.c.b16 %v1763, %v1761
    %v1890 = vpack.c.b16 %v1766, %v1764
    %v1891 = vpack.c.b16 %v1767, %v1765
    %v1892 = vpack.c.b16 %v1770, %v1768
    %v1893 = vpack.c.b16 %v1771, %v1769
    %v1894 = vpack.c.b16 %v1774, %v1772
    %v1895 = vpack.c.b16 %v1775, %v1773
    %v1896 = vpack.c.b16 %v1778, %v1776
    %v1897 = vpack.c.b16 %v1779, %v1777
    %v1898 = vpack.c.b16 %v1782, %v1780
    %v1899 = vpack.c.b16 %v1783, %v1781
    %v1900 = vpack.c.b16 %v1786, %v1784
    %v1901 = vpack.c.b16 %v1787, %v1785
    %v1902 = vpack.c.b16 %v1790, %v1788
    %v1903 = vpack.c.b16 %v1791, %v1789
    %v1904 = vpack.c.b16 %v1794, %v1792
    %v1905 = vpack.c.b16 %v1795, %v1793
    %v1906 = vpack.c.b16 %v1798, %v1796
    %v1907 = vpack.c.b16 %v1799, %v1797
    %v1908 = vpack.c.b16 %v1802, %v1800
    %v1909 = vpack.c.b16 %v1803, %v1801
    %v1910 = vpack.c.b16 %v1806, %v1804
    %v1911 = vpack.c.b16 %v1807, %v1805
    %v1912 = vpack.c.b16 %v1810, %v1808
    %v1913 = vpack.c.b16 %v1811, %v1809
    %v1914 = vpack.c.b16 %v1814, %v1812
    %v1915 = vpack.c.b16 %v1815, %v1813
    %v1916 = vpack.c.b16 %v1818, %v1816
    %v1917 = vpack.c.b16 %v1819, %v1817
    %v1918 = vpack.c.b16 %v1822, %v1820
    %v1919 = vpack.c.b16 %v1823, %v1821
    %v1920 = vpack.c.b16 %v1826, %v1824
    %v1921 = vpack.c.b16 %v1827, %v1825
    %v1922 = vpack.c.b16 %v1830, %v1828
    %v1923 = vpack.c.b16 %v1831, %v1829
    %v1924 = vpack.c.b16 %v1834, %v1832
    %v1925 = vpack.c.b16 %v1835, %v1833
    %v1926 = vpack.c.b16 %v1838, %v1836
    %v1927 = vpack.c.b16 %v1839, %v1837
    %v1928 = vpack.c.b16 %v1842, %v1840
    %v1929 = vpack.c.b16 %v1843, %v1841
    %v1930 = vpack.c.b16 %v1846, %v1844
    %v1931 = vpack.c.b16 %v1847, %v1845
    %v1932 = vpack.c.b16 %v1850, %v1848
    %v1933 = vpack.c.b16 %v1851, %v1849
    %v1934 = vpack.c.b16 %v1854, %v1852
    %v1935 = vpack.c.b16 %v1855, %v1853
    %v1936 = vpack.c.b16 %v1858, %v1856
    %v1937 = vpack.c.b16 %v1859, %v1857
    %v1938 = vpack.c.b16 %v1862, %v1860
    %v1939 = vpack.c.b16 %v1863, %v1861
    %v1940 = vpack.c.b16 %v1866, %v1864
    %v1941 = vpack.c.b16 %v1867, %v1865
    %v1942 = vpack.c.b16 %v1870, %v1868
    %v1943 = vpack.c.b16 %v1871, %v1869
    %v1944 = vpack.c.b16 %v1874, %v1872
    %v1945 = vpack.c.b16 %v1875, %v1873
    %v1946 = vpack.c.b16 %v1878, %v1876
    %v1947 = vpack.c.b16 %v1879, %v1877
    %v1948 = vpack.c.b16 %v1882, %v1880
    %v1949 = vpack.c.b16 %v1883, %v1881
    %v1950 = vpack.c.b16 %v1886, %v1884
    %v1951 = vpack.c.b16 %v1887, %v1885
    %2016 = vmatprep.subr.bf16.mxu0 %v1889
    %2017 = vmatpush1.bf16.msra.mxu0 %v1888
    %2018 = vmatprep.subr.bf16.mxu0 %v1891
    %2019 = vmatpush1.bf16.msra.mxu0 %v1890
    %2020 = vmatprep.subr.bf16.mxu0 %v1893
    %2021 = vmatpush1.bf16.msra.mxu0 %v1892
    %2022 = vmatprep.subr.bf16.mxu0 %v1895
    %2023 = vmatpush1.bf16.msra.mxu0 %v1894
    %2024 = vmatprep.subr.bf16.mxu0 %v1897
    %2025 = vmatpush1.bf16.msra.mxu0 %v1896
    %2026 = vmatprep.subr.bf16.mxu0 %v1899
    %2027 = vmatpush1.bf16.msra.mxu0 %v1898
    %2028 = vmatprep.subr.bf16.mxu0 %v1901
    %2029 = vmatpush1.bf16.msra.mxu0 %v1900
    %2030 = vmatprep.subr.bf16.mxu0 %v1903
    %2031 = vmatpush1.bf16.msra.mxu0 %v1902
    %2032 = vmatprep.subr.bf16.mxu0 %v1905
    %2033 = vmatpush1.bf16.msra.mxu0 %v1904
    %2034 = vmatprep.subr.bf16.mxu0 %v1907
    %2035 = vmatpush1.bf16.msra.mxu0 %v1906
    %2036 = vmatprep.subr.bf16.mxu0 %v1909
    %2037 = vmatpush1.bf16.msra.mxu0 %v1908
    %2038 = vmatprep.subr.bf16.mxu0 %v1911
    %2039 = vmatpush1.bf16.msra.mxu0 %v1910
    %2040 = vmatprep.subr.bf16.mxu0 %v1913
    %2041 = vmatpush1.bf16.msra.mxu0 %v1912
    %2042 = vmatprep.subr.bf16.mxu0 %v1915
    %2043 = vmatpush1.bf16.msra.mxu0 %v1914
    %2044 = vmatprep.subr.bf16.mxu0 %v1917
    %2045 = vmatpush1.bf16.msra.mxu0 %v1916
    %2046 = vmatprep.subr.bf16.mxu0 %v1919
    %2047 = vmatpush1.bf16.msra.mxu0 %v1918
    %2048 = vmatprep.mubr.bf16.mxu0 %v1617
    %2049 = vmatmul.mubr.bf16.gmra.mrb[0].mxu0 %v1616
    %v2050 = vpop.f32.mrb[0].mxu0
    %v2051 = vadd.f32 %v1689, %v2050
    %v2052 = vpop.f32.mrb[0].mxu0
    %v2053 = vadd.f32 %v1693, %v2052
    %v2054 = vpop.f32.mrb[0].mxu0
    %v2055 = vadd.f32 %v1689, %v2054
    %v2056 = vpop.f32.mrb[0].mxu0
    %v2057 = vadd.f32 %v1693, %v2056
    %2058 = vdwg.mxu0
    %2059 = vmatprep.subr.bf16.mxu0 %v1921
    %2060 = vmatpush1.bf16.msra.mxu0 %v1920
    %2061 = vmatprep.subr.bf16.mxu0 %v1923
    %2062 = vmatpush1.bf16.msra.mxu0 %v1922
    %2063 = vmatprep.subr.bf16.mxu0 %v1925
    %2064 = vmatpush1.bf16.msra.mxu0 %v1924
    %2065 = vmatprep.subr.bf16.mxu0 %v1927
    %2066 = vmatpush1.bf16.msra.mxu0 %v1926
    %2067 = vmatprep.subr.bf16.mxu0 %v1929
    %2068 = vmatpush1.bf16.msra.mxu0 %v1928
    %2069 = vmatprep.subr.bf16.mxu0 %v1931
    %2070 = vmatpush1.bf16.msra.mxu0 %v1930
    %2071 = vmatprep.subr.bf16.mxu0 %v1933
    %2072 = vmatpush1.bf16.msra.mxu0 %v1932
    %2073 = vmatprep.subr.bf16.mxu0 %v1935
    %2074 = vmatpush1.bf16.msra.mxu0 %v1934
    %2075 = vmatprep.subr.bf16.mxu0 %v1937
    %2076 = vmatpush1.bf16.msra.mxu0 %v1936
    %2077 = vmatprep.subr.bf16.mxu0 %v1939
    %2078 = vmatpush1.bf16.msra.mxu0 %v1938
    %2079 = vmatprep.subr.bf16.mxu0 %v1941
    %2080 = vmatpush1.bf16.msra.mxu0 %v1940
    %2081 = vmatprep.subr.bf16.mxu0 %v1943
    %2082 = vmatpush1.bf16.msra.mxu0 %v1942
    %2083 = vmatprep.subr.bf16.mxu0 %v1945
    %2084 = vmatpush1.bf16.msra.mxu0 %v1944
    %2085 = vmatprep.subr.bf16.mxu0 %v1947
    %2086 = vmatpush1.bf16.msra.mxu0 %v1946
    %2087 = vmatprep.subr.bf16.mxu0 %v1949
    %2088 = vmatpush1.bf16.msra.mxu0 %v1948
    %2089 = vmatprep.subr.bf16.mxu0 %v1951
    %2090 = vmatpush1.bf16.msra.mxu0 %v1950
    %2091 = vmatprep.mubr.bf16.mxu0 %v1619
    %2092 = vmatmul.mubr.bf16.gmra.mrb[0].mxu0 %v1618
    %v2093 = vpop.f32.mrb[0].mxu0
    %v2094 = vadd.f32 %v2051, %v2093
    %v2095 = vpop.f32.mrb[0].mxu0
    %v2096 = vadd.f32 %v2053, %v2095
    %v2097 = vpop.f32.mrb[0].mxu0
    %v2098 = vadd.f32 %v2055, %v2097
    %v2099 = vpop.f32.mrb[0].mxu0
    %v2100 = vadd.f32 %v2057, %v2099
    %2101 = vdwg.mxu0
    %v2102 = vmul.f32 %v2096, 0.5
    %v2103 = vmul.f32 %v2100, 0.5
    %v2104 = vmul.f32 %v2102, 1.442695
    %v2105 = vpow.pop %v2104
    %v2106 = vmul.f32 %v2103, 1.442695
    %v2107 = vpow.pop %v2106
    %v2108 = vld [vmem:[%s1] sm:$0xf]
    %v2109 = vld [vmem:[%s1 + $0x4] sm:$0xf]
    %v2110 = vunpack.c.l.bf16 %v2108
    %v2111 = vunpack.c.l.bf16 %v2109
    %v2112 = vmul.f32 %v2110, %v2105
    %v2113 = vmul.f32 %v2111, %v2107
    %v2114 = vadd.f32 %v2094, %v2112
    %v2115 = vadd.f32 %v2098, %v2113
    %v2116 = vpack.c.bf16 %v2115, %v2114
    %v2117 = vld [vmem:[%s6] sm:$0xff]
    %v2118 = vld [vmem:[%s6 + $0x8] sm:$0xff]
    %v2119 = vld [vmem:[%s6 + $0x10] sm:$0xff]
    %v2120 = vld [vmem:[%s6 + $0x18] sm:$0xff]
    %v2121 = vld [vmem:[%s6 + $0x20] sm:$0xff]
    %v2122 = vld [vmem:[%s6 + $0x28] sm:$0xff]
    %v2123 = vld [vmem:[%s6 + $0x30] sm:$0xff]
    %v2124 = vld [vmem:[%s6 + $0x38] sm:$0xff]
    %v2125 = vld [vmem:[%s6 + $0x40] sm:$0xff]
    %v2126 = vld [vmem:[%s6 + $0x48] sm:$0xff]
    %v2127 = vld [vmem:[%s6 + $0x50] sm:$0xff]
    %v2128 = vld [vmem:[%s6 + $0x58] sm:$0xff]
    %v2129 = vld [vmem:[%s6 + $0x60] sm:$0xff]
    %v2130 = vld [vmem:[%s6 + $0x68] sm:$0xff]
    %v2131 = vld [vmem:[%s6 + $0x70] sm:$0xff]
    %v2132 = vld [vmem:[%s6 + $0x78] sm:$0xff]
    %v2133 = vld [vmem:[%s6 + $0x80] sm:$0xff]
    %v2134 = vld [vmem:[%s6 + $0x88] sm:$0xff]
    %v2135 = vld [vmem:[%s6 + $0x90] sm:$0xff]
    %v2136 = vld [vmem:[%s6 + $0x98] sm:$0xff]
    %v2137 = vld [vmem:[%s6 + $0xa0] sm:$0xff]
    %v2138 = vld [vmem:[%s6 + $0xa8] sm:$0xff]
    %v2139 = vld [vmem:[%s6 + $0xb0] sm:$0xff]
    %v2140 = vld [vmem:[%s6 + $0xb8] sm:$0xff]
    %v2141 = vld [vmem:[%s6 + $0xc0] sm:$0xff]
    %v2142 = vld [vmem:[%s6 + $0xc8] sm:$0xff]
    %v2143 = vld [vmem:[%s6 + $0xd0] sm:$0xff]
    %v2144 = vld [vmem:[%s6 + $0xd8] sm:$0xff]
    %v2145 = vld [vmem:[%s6 + $0xe0] sm:$0xff]
    %v2146 = vld [vmem:[%s6 + $0xe8] sm:$0xff]
    %v2147 = vld [vmem:[%s6 + $0xf0] sm:$0xff]
    %v2148 = vld [vmem:[%s6 + $0xf8] sm:$0xff]
    %v2149 = vld [vmem:[%s7] sm:$0xf]
    %v2151 = vlaneseq
    %v2152 = vshrl.u32 %v2151, 7
    %v2153 = vsub.s32 0, %v2152
    %v2154 = vrot.slane %v2149, %v2153
    %v2155 = vlaneseq
    %v2156 = vshrl.u32 %v2155, 7
    %v2157 = vsub.s32 1, %v2156
    %v2158 = vrot.slane %v2149, %v2157
    %v2159 = vlaneseq
    %v2160 = vshrl.u32 %v2159, 7
    %v2161 = vsub.s32 2, %v2160
    %v2162 = vrot.slane %v2149, %v2161
    %v2163 = vlaneseq
    %v2164 = vshrl.u32 %v2163, 7
    %v2165 = vsub.s32 3, %v2164
    %v2166 = vrot.slane %v2149, %v2165
    %v2203 = vunpack.c.l.b16 %v2117
    %v2204 = vunpack.c.h.b16 %v2117
    %v2205 = vunpack.c.l.b16 %v2118
    %v2206 = vunpack.c.h.b16 %v2118
    %v2207 = vunpack.c.l.b16 %v2119
    %v2208 = vunpack.c.h.b16 %v2119
    %v2209 = vunpack.c.l.b16 %v2120
    %v2210 = vunpack.c.h.b16 %v2120
    %v2211 = vunpack.c.l.b16 %v2121
    %v2212 = vunpack.c.h.b16 %v2121
    %v2213 = vunpack.c.l.b16 %v2122
    %v2214 = vunpack.c.h.b16 %v2122
    %v2215 = vunpack.c.l.b16 %v2123
    %v2216 = vunpack.c.h.b16 %v2123
    %v2217 = vunpack.c.l.b16 %v2124
    %v2218 = vunpack.c.h.b16 %v2124
    %v2219 = vunpack.c.l.b16 %v2125
    %v2220 = vunpack.c.h.b16 %v2125
    %v2221 = vunpack.c.l.b16 %v2126
    %v2222 = vunpack.c.h.b16 %v2126
    %v2223 = vunpack.c.l.b16 %v2127
    %v2224 = vunpack.c.h.b16 %v2127
    %v2225 = vunpack.c.l.b16 %v2128
    %v2226 = vunpack.c.h.b16 %v2128
    %v2227 = vunpack.c.l.b16 %v2129
    %v2228 = vunpack.c.h.b16 %v2129
    %v2229 = vunpack.c.l.b16 %v2130
    %v2230 = vunpack.c.h.b16 %v2130
    %v2231 = vunpack.c.l.b16 %v2131
    %v2232 = vunpack.c.h.b16 %v2131
    %v2233 = vunpack.c.l.b16 %v2132
    %v2234 = vunpack.c.h.b16 %v2132
    %v2235 = vunpack.c.l.b16 %v2133
    %v2236 = vunpack.c.h.b16 %v2133
    %v2237 = vunpack.c.l.b16 %v2134
    %v2238 = vunpack.c.h.b16 %v2134
    %v2239 = vunpack.c.l.b16 %v2135
    %v2240 = vunpack.c.h.b16 %v2135
    %v2241 = vunpack.c.l.b16 %v2136
    %v2242 = vunpack.c.h.b16 %v2136
    %v2243 = vunpack.c.l.b16 %v2137
    %v2244 = vunpack.c.h.b16 %v2137
    %v2245 = vunpack.c.l.b16 %v2138
    %v2246 = vunpack.c.h.b16 %v2138
    %v2247 = vunpack.c.l.b16 %v2139
    %v2248 = vunpack.c.h.b16 %v2139
    %v2249 = vunpack.c.l.b16 %v2140
    %v2250 = vunpack.c.h.b16 %v2140
    %v2251 = vunpack.c.l.b16 %v2141
    %v2252 = vunpack.c.h.b16 %v2141
    %v2253 = vunpack.c.l.b16 %v2142
    %v2254 = vunpack.c.h.b16 %v2142
    %v2255 = vunpack.c.l.b16 %v2143
    %v2256 = vunpack.c.h.b16 %v2143
    %v2257 = vunpack.c.l.b16 %v2144
    %v2258 = vunpack.c.h.b16 %v2144
    %v2259 = vunpack.c.l.b16 %v2145
    %v2260 = vunpack.c.h.b16 %v2145
    %v2261 = vunpack.c.l.b16 %v2146
    %v2262 = vunpack.c.h.b16 %v2146
    %v2263 = vunpack.c.l.b16 %v2147
    %v2264 = vunpack.c.h.b16 %v2147
    %v2265 = vunpack.c.l.b16 %v2148
    %v2266 = vunpack.c.h.b16 %v2148
    %v2267 = vpack.c.b16 %v2207, %v2203
    %v2268 = vpack.c.b16 %v2208, %v2204
    %v2269 = vpack.c.b16 %v2209, %v2205
    %v2270 = vpack.c.b16 %v2210, %v2206
    %v2271 = vpack.c.b16 %v2215, %v2211
    %v2272 = vpack.c.b16 %v2216, %v2212
    %v2273 = vpack.c.b16 %v2217, %v2213
    %v2274 = vpack.c.b16 %v2218, %v2214
    %v2275 = vpack.c.b16 %v2223, %v2219
    %v2276 = vpack.c.b16 %v2224, %v2220
    %v2277 = vpack.c.b16 %v2225, %v2221
    %v2278 = vpack.c.b16 %v2226, %v2222
    %v2279 = vpack.c.b16 %v2231, %v2227
    %v2280 = vpack.c.b16 %v2232, %v2228
    %v2281 = vpack.c.b16 %v2233, %v2229
    %v2282 = vpack.c.b16 %v2234, %v2230
    %v2283 = vpack.c.b16 %v2239, %v2235
    %v2284 = vpack.c.b16 %v2240, %v2236
    %v2285 = vpack.c.b16 %v2241, %v2237
    %v2286 = vpack.c.b16 %v2242, %v2238
    %v2287 = vpack.c.b16 %v2247, %v2243
    %v2288 = vpack.c.b16 %v2248, %v2244
    %v2289 = vpack.c.b16 %v2249, %v2245
    %v2290 = vpack.c.b16 %v2250, %v2246
    %v2291 = vpack.c.b16 %v2255, %v2251
    %v2292 = vpack.c.b16 %v2256, %v2252
    %v2293 = vpack.c.b16 %v2257, %v2253
    %v2294 = vpack.c.b16 %v2258, %v2254
    %v2295 = vpack.c.b16 %v2263, %v2259
    %v2296 = vpack.c.b16 %v2264, %v2260
    %v2297 = vpack.c.b16 %v2265, %v2261
    %v2298 = vpack.c.b16 %v2266, %v2262
    %2331 = vmatprep.subr.bf16.mxu0 %v2268
    %2332 = vmatpush1.bf16.msra.mxu0 %v2267
    %2333 = vmatprep.subr.bf16.mxu0 %v2272
    %2334 = vmatpush1.bf16.msra.mxu0 %v2271
    %2335 = vmatprep.subr.bf16.mxu0 %v2276
    %2336 = vmatpush1.bf16.msra.mxu0 %v2275
    %2337 = vmatprep.subr.bf16.mxu0 %v2280
    %2338 = vmatpush1.bf16.msra.mxu0 %v2279
    %2339 = vmatprep.subr.bf16.mxu0 %v2284
    %2340 = vmatpush1.bf16.msra.mxu0 %v2283
    %2341 = vmatprep.subr.bf16.mxu0 %v2288
    %2342 = vmatpush1.bf16.msra.mxu0 %v2287
    %2343 = vmatprep.subr.bf16.mxu0 %v2292
    %2344 = vmatpush1.bf16.msra.mxu0 %v2291
    %2345 = vmatprep.subr.bf16.mxu0 %v2296
    %2346 = vmatpush1.bf16.msra.mxu0 %v2295
    %2347 = vmatprep.subr.bf16.mxu0 0
    %2348 = vmatpush1.bf16.msra.mxu0 0
    %2349 = vmatprep.subr.bf16.mxu0 0
    %2350 = vmatpush1.bf16.msra.mxu0 0
    %2351 = vmatprep.subr.bf16.mxu0 0
    %2352 = vmatpush1.bf16.msra.mxu0 0
    %2353 = vmatprep.subr.bf16.mxu0 0
    %2354 = vmatpush1.bf16.msra.mxu0 0
    %2355 = vmatprep.subr.bf16.mxu0 0
    %2356 = vmatpush1.bf16.msra.mxu0 0
    %2357 = vmatprep.subr.bf16.mxu0 0
    %2358 = vmatpush1.bf16.msra.mxu0 0
    %2359 = vmatprep.subr.bf16.mxu0 0
    %2360 = vmatpush1.bf16.msra.mxu0 0
    %2361 = vmatprep.subr.bf16.mxu0 0
    %2362 = vmatpush1.bf16.msra.mxu0 0
    %2363 = vmatprep.mubr.bf16.mxu0 0
    %2364 = vmatmul.mubr.bf16.gmra.mrb[0].mxu0 %v2116
    %v2365 = vpop.f32.mrb[0].mxu0
    %v2366 = vadd.f32 %v2154, %v2365
    %v2367 = vpop.f32.mrb[0].mxu0
    %v2368 = vadd.f32 %v2158, %v2367
    %v2369 = vpop.f32.mrb[0].mxu0
    %v2370 = vadd.f32 %v2154, %v2369
    %v2371 = vpop.f32.mrb[0].mxu0
    %v2372 = vadd.f32 %v2158, %v2371
    %2373 = vdwg.mxu0
    %2374 = vmatprep.subr.bf16.mxu0 %v2270
    %2375 = vmatpush1.bf16.msra.mxu0 %v2269
    %2376 = vmatprep.subr.bf16.mxu0 %v2274
    %2377 = vmatpush1.bf16.msra.mxu0 %v2273
    %2378 = vmatprep.subr.bf16.mxu0 %v2278
    %2379 = vmatpush1.bf16.msra.mxu0 %v2277
    %2380 = vmatprep.subr.bf16.mxu0 %v2282
    %2381 = vmatpush1.bf16.msra.mxu0 %v2281
    %2382 = vmatprep.subr.bf16.mxu0 %v2286
    %2383 = vmatpush1.bf16.msra.mxu0 %v2285
    %2384 = vmatprep.subr.bf16.mxu0 %v2290
    %2385 = vmatpush1.bf16.msra.mxu0 %v2289
    %2386 = vmatprep.subr.bf16.mxu0 %v2294
    %2387 = vmatpush1.bf16.msra.mxu0 %v2293
    %2388 = vmatprep.subr.bf16.mxu0 %v2298
    %2389 = vmatpush1.bf16.msra.mxu0 %v2297
    %2390 = vmatprep.subr.bf16.mxu0 0
    %2391 = vmatpush1.bf16.msra.mxu0 0
    %2392 = vmatprep.subr.bf16.mxu0 0
    %2393 = vmatpush1.bf16.msra.mxu0 0
    %2394 = vmatprep.subr.bf16.mxu0 0
    %2395 = vmatpush1.bf16.msra.mxu0 0
    %2396 = vmatprep.subr.bf16.mxu0 0
    %2397 = vmatpush1.bf16.msra.mxu0 0
    %2398 = vmatprep.subr.bf16.mxu0 0
    %2399 = vmatpush1.bf16.msra.mxu0 0
    %2400 = vmatprep.subr.bf16.mxu0 0
    %2401 = vmatpush1.bf16.msra.mxu0 0
    %2402 = vmatprep.subr.bf16.mxu0 0
    %2403 = vmatpush1.bf16.msra.mxu0 0
    %2404 = vmatprep.subr.bf16.mxu0 0
    %2405 = vmatpush1.bf16.msra.mxu0 0
    %2406 = vmatprep.mubr.bf16.mxu0 0
    %2407 = vmatmul.mubr.bf16.gmra.mrb[0].mxu0 %v2116
    %v2408 = vpop.f32.mrb[0].mxu0
    %v2409 = vadd.f32 %v2162, %v2408
    %v2410 = vpop.f32.mrb[0].mxu0
    %v2411 = vadd.f32 %v2166, %v2410
    %v2412 = vpop.f32.mrb[0].mxu0
    %v2413 = vadd.f32 %v2162, %v2412
    %v2414 = vpop.f32.mrb[0].mxu0
    %v2415 = vadd.f32 %v2166, %v2414
    %2416 = vdwg.mxu0
    %v2417 = vmax.f32 %v2366, 0.0
    %v2418 = vmax.f32 %v2368, 0.0
    %v2419 = vmax.f32 %v2409, 0.0
    %v2420 = vmax.f32 %v2411, 0.0
    %v2421 = vmax.f32 %v2370, 0.0
    %v2422 = vmax.f32 %v2372, 0.0
    %v2423 = vmax.f32 %v2413, 0.0
    %v2424 = vmax.f32 %v2415, 0.0
    %v2425 = vpack.c.bf16 %v2421, %v2417
    %v2426 = vpack.c.bf16 %v2422, %v2418
    %v2427 = vpack.c.bf16 %v2423, %v2419
    %v2428 = vpack.c.bf16 %v2424, %v2420
    %v2429 = vld [vmem:[%s8] sm:$0xff]
    %v2430 = vld [vmem:[%s8 + $0x8] sm:$0xff]
    %v2431 = vld [vmem:[%s8 + $0x10] sm:$0xff]
    %v2432 = vld [vmem:[%s8 + $0x18] sm:$0xf]
    %v2433 = vld [vmem:[%s8 + $0x1c] sm:$0xff]
    %v2434 = vld [vmem:[%s8 + $0x24] sm:$0xff]
    %v2435 = vld [vmem:[%s8 + $0x2c] sm:$0xff]
    %v2436 = vld [vmem:[%s8 + $0x34] sm:$0xf]
    %v2437 = vld [vmem:[%s8 + $0x38] sm:$0xff]
    %v2438 = vld [vmem:[%s8 + $0x40] sm:$0xff]
    %v2439 = vld [vmem:[%s8 + $0x48] sm:$0xff]
    %v2440 = vld [vmem:[%s8 + $0x50] sm:$0xf]
    %v2441 = vld [vmem:[%s8 + $0x54] sm:$0xff]
    %v2442 = vld [vmem:[%s8 + $0x5c] sm:$0xff]
    %v2443 = vld [vmem:[%s8 + $0x64] sm:$0xff]
    %v2444 = vld [vmem:[%s8 + $0x6c] sm:$0xf]
    %v2445 = vld [vmem:[%s8 + $0x70] sm:$0xff]
    %v2446 = vld [vmem:[%s8 + $0x78] sm:$0xff]
    %v2447 = vld [vmem:[%s8 + $0x80] sm:$0xff]
    %v2448 = vld [vmem:[%s8 + $0x88] sm:$0xf]
    %v2449 = vld [vmem:[%s8 + $0x8c] sm:$0xff]
    %v2450 = vld [vmem:[%s8 + $0x94] sm:$0xff]
    %v2451 = vld [vmem:[%s8 + $0x9c] sm:$0xff]
    %v2452 = vld [vmem:[%s8 + $0xa4] sm:$0xf]
    %v2453 = vld [vmem:[%s8 + $0xa8] sm:$0xff]
    %v2454 = vld [vmem:[%s8 + $0xb0] sm:$0xff]
    %v2455 = vld [vmem:[%s8 + $0xb8] sm:$0xff]
    %v2456 = vld [vmem:[%s8 + $0xc0] sm:$0xf]
    %v2457 = vld [vmem:[%s8 + $0xc4] sm:$0xff]
    %v2458 = vld [vmem:[%s8 + $0xcc] sm:$0xff]
    %v2459 = vld [vmem:[%s8 + $0xd4] sm:$0xff]
    %v2460 = vld [vmem:[%s8 + $0xdc] sm:$0xf]
    %v2461 = vld [vmem:[%s8 + $0xe0] sm:$0xff]
    %v2462 = vld [vmem:[%s8 + $0xe8] sm:$0xff]
    %v2463 = vld [vmem:[%s8 + $0xf0] sm:$0xff]
    %v2464 = vld [vmem:[%s8 + $0xf8] sm:$0xf]
    %v2465 = vld [vmem:[%s8 + $0xfc] sm:$0xff]
    %v2466 = vld [vmem:[%s8 + $0x104] sm:$0xff]
    %v2467 = vld [vmem:[%s8 + $0x10c] sm:$0xff]
    %v2468 = vld [vmem:[%s8 + $0x114] sm:$0xf]
    %v2469 = vld [vmem:[%s8 + $0x118] sm:$0xff]
    %v2470 = vld [vmem:[%s8 + $0x120] sm:$0xff]
    %v2471 = vld [vmem:[%s8 + $0x128] sm:$0xff]
    %v2472 = vld [vmem:[%s8 + $0x130] sm:$0xf]
    %v2473 = vld [vmem:[%s8 + $0x134] sm:$0xff]
    %v2474 = vld [vmem:[%s8 + $0x13c] sm:$0xff]
    %v2475 = vld [vmem:[%s8 + $0x144] sm:$0xff]
    %v2476 = vld [vmem:[%s8 + $0x14c] sm:$0xf]
    %v2477 = vld [vmem:[%s8 + $0x150] sm:$0xff]
    %v2478 = vld [vmem:[%s8 + $0x158] sm:$0xff]
    %v2479 = vld [vmem:[%s8 + $0x160] sm:$0xff]
    %v2480 = vld [vmem:[%s8 + $0x168] sm:$0xf]
    %v2481 = vld [vmem:[%s8 + $0x16c] sm:$0xff]
    %v2482 = vld [vmem:[%s8 + $0x174] sm:$0xff]
    %v2483 = vld [vmem:[%s8 + $0x17c] sm:$0xff]
    %v2484 = vld [vmem:[%s8 + $0x184] sm:$0xf]
    %v2485 = vld [vmem:[%s8 + $0x188] sm:$0xff]
    %v2486 = vld [vmem:[%s8 + $0x190] sm:$0xff]
    %v2487 = vld [vmem:[%s8 + $0x198] sm:$0xff]
    %v2488 = vld [vmem:[%s8 + $0x1a0] sm:$0xf]
    %v2489 = vld [vmem:[%s8 + $0x1a4] sm:$0xff]
    %v2490 = vld [vmem:[%s8 + $0x1ac] sm:$0xff]
    %v2491 = vld [vmem:[%s8 + $0x1b4] sm:$0xff]
    %v2492 = vld [vmem:[%s8 + $0x1bc] sm:$0xf]
    %v2493 = vld [vmem:[%s8 + $0x1c0] sm:$0xff]
    %v2494 = vld [vmem:[%s8 + $0x1c8] sm:$0xff]
    %v2495 = vld [vmem:[%s8 + $0x1d0] sm:$0xff]
    %v2496 = vld [vmem:[%s8 + $0x1d8] sm:$0xf]
    %v2497 = vld [vmem:[%s8 + $0x1dc] sm:$0xff]
    %v2498 = vld [vmem:[%s8 + $0x1e4] sm:$0xff]
    %v2499 = vld [vmem:[%s8 + $0x1ec] sm:$0xff]
    %v2500 = vld [vmem:[%s8 + $0x1f4] sm:$0xf]
    %v2501 = vld [vmem:[%s8 + $0x1f8] sm:$0xff]
    %v2502 = vld [vmem:[%s8 + $0x200] sm:$0xff]
    %v2503 = vld [vmem:[%s8 + $0x208] sm:$0xff]
    %v2504 = vld [vmem:[%s8 + $0x210] sm:$0xf]
    %v2505 = vld [vmem:[%s8 + $0x214] sm:$0xff]
    %v2506 = vld [vmem:[%s8 + $0x21c] sm:$0xff]
    %v2507 = vld [vmem:[%s8 + $0x224] sm:$0xff]
    %v2508 = vld [vmem:[%s8 + $0x22c] sm:$0xf]
    %v2509 = vld [vmem:[%s8 + $0x230] sm:$0xff]
    %v2510 = vld [vmem:[%s8 + $0x238] sm:$0xff]
    %v2511 = vld [vmem:[%s8 + $0x240] sm:$0xff]
    %v2512 = vld [vmem:[%s8 + $0x248] sm:$0xf]
    %v2513 = vld [vmem:[%s8 + $0x24c] sm:$0xff]
    %v2514 = vld [vmem:[%s8 + $0x254] sm:$0xff]
    %v2515 = vld [vmem:[%s8 + $0x25c] sm:$0xff]
    %v2516 = vld [vmem:[%s8 + $0x264] sm:$0xf]
    %v2517 = vld [vmem:[%s8 + $0x268] sm:$0xff]
    %v2518 = vld [vmem:[%s8 + $0x270] sm:$0xff]
    %v2519 = vld [vmem:[%s8 + $0x278] sm:$0xff]
    %v2520 = vld [vmem:[%s8 + $0x280] sm:$0xf]
    %v2521 = vld [vmem:[%s8 + $0x284] sm:$0xff]
    %v2522 = vld [vmem:[%s8 + $0x28c] sm:$0xff]
    %v2523 = vld [vmem:[%s8 + $0x294] sm:$0xff]
    %v2524 = vld [vmem:[%s8 + $0x29c] sm:$0xf]
    %v2525 = vld [vmem:[%s8 + $0x2a0] sm:$0xff]
    %v2526 = vld [vmem:[%s8 + $0x2a8] sm:$0xff]
    %v2527 = vld [vmem:[%s8 + $0x2b0] sm:$0xff]
    %v2528 = vld [vmem:[%s8 + $0x2b8] sm:$0xf]
    %v2529 = vld [vmem:[%s8 + $0x2bc] sm:$0xff]
    %v2530 = vld [vmem:[%s8 + $0x2c4] sm:$0xff]
    %v2531 = vld [vmem:[%s8 + $0x2cc] sm:$0xff]
    %v2532 = vld [vmem:[%s8 + $0x2d4] sm:$0xf]
    %v2533 = vld [vmem:[%s8 + $0x2d8] sm:$0xff]
    %v2534 = vld [vmem:[%s8 + $0x2e0] sm:$0xff]
    %v2535 = vld [vmem:[%s8 + $0x2e8] sm:$0xff]
    %v2536 = vld [vmem:[%s8 + $0x2f0] sm:$0xf]
    %v2537 = vld [vmem:[%s8 + $0x2f4] sm:$0xff]
    %v2538 = vld [vmem:[%s8 + $0x2fc] sm:$0xff]
    %v2539 = vld [vmem:[%s8 + $0x304] sm:$0xff]
    %v2540 = vld [vmem:[%s8 + $0x30c] sm:$0xf]
    %v2541 = vld [vmem:[%s8 + $0x310] sm:$0xff]
    %v2542 = vld [vmem:[%s8 + $0x318] sm:$0xff]
    %v2543 = vld [vmem:[%s8 + $0x320] sm:$0xff]
    %v2544 = vld [vmem:[%s8 + $0x328] sm:$0xf]
    %v2545 = vld [vmem:[%s8 + $0x32c] sm:$0xff]
    %v2546 = vld [vmem:[%s8 + $0x334] sm:$0xff]
    %v2547 = vld [vmem:[%s8 + $0x33c] sm:$0xff]
    %v2548 = vld [vmem:[%s8 + $0x344] sm:$0xf]
    %v2549 = vld [vmem:[%s8 + $0x348] sm:$0xff]
    %v2550 = vld [vmem:[%s8 + $0x350] sm:$0xff]
    %v2551 = vld [vmem:[%s8 + $0x358] sm:$0xff]
    %v2552 = vld [vmem:[%s8 + $0x360] sm:$0xf]
    %v2553 = vld [vmem:[%s8 + $0x364] sm:$0xff]
    %v2554 = vld [vmem:[%s8 + $0x36c] sm:$0xff]
    %v2555 = vld [vmem:[%s8 + $0x374] sm:$0xff]
    %v2556 = vld [vmem:[%s8 + $0x37c] sm:$0xf]
    %v2557 = vld [vmem:[%s8 + $0x380] sm:$0xff]
    %v2558 = vld [vmem:[%s8 + $0x388] sm:$0xff]
    %v2559 = vld [vmem:[%s8 + $0x390] sm:$0xff]
    %v2560 = vld [vmem:[%s8 + $0x398] sm:$0xf]
    %v2561 = vld [vmem:[%s8 + $0x39c] sm:$0xff]
    %v2562 = vld [vmem:[%s8 + $0x3a4] sm:$0xff]
    %v2563 = vld [vmem:[%s8 + $0x3ac] sm:$0xff]
    %v2564 = vld [vmem:[%s8 + $0x3b4] sm:$0xf]
    %v2565 = vld [vmem:[%s8 + $0x3b8] sm:$0xff]
    %v2566 = vld [vmem:[%s8 + $0x3c0] sm:$0xff]
    %v2567 = vld [vmem:[%s8 + $0x3c8] sm:$0xff]
    %v2568 = vld [vmem:[%s8 + $0x3d0] sm:$0xf]
    %v2569 = vld [vmem:[%s8 + $0x3d4] sm:$0xff]
    %v2570 = vld [vmem:[%s8 + $0x3dc] sm:$0xff]
    %v2571 = vld [vmem:[%s8 + $0x3e4] sm:$0xff]
    %v2572 = vld [vmem:[%s8 + $0x3ec] sm:$0xf]
    %v2573 = vld [vmem:[%s8 + $0x3f0] sm:$0xff]
    %v2574 = vld [vmem:[%s8 + $0x3f8] sm:$0xff]
    %v2575 = vld [vmem:[%s8 + $0x400] sm:$0xff]
    %v2576 = vld [vmem:[%s8 + $0x408] sm:$0xf]
    %v2577 = vld [vmem:[%s8 + $0x40c] sm:$0xff]
    %v2578 = vld [vmem:[%s8 + $0x414] sm:$0xff]
    %v2579 = vld [vmem:[%s8 + $0x41c] sm:$0xff]
    %v2580 = vld [vmem:[%s8 + $0x424] sm:$0xf]
    %v2581 = vld [vmem:[%s8 + $0x428] sm:$0xff]
    %v2582 = vld [vmem:[%s8 + $0x430] sm:$0xff]
    %v2583 = vld [vmem:[%s8 + $0x438] sm:$0xff]
    %v2584 = vld [vmem:[%s8 + $0x440] sm:$0xf]
    %v2585 = vld [vmem:[%s8 + $0x444] sm:$0xff]
    %v2586 = vld [vmem:[%s8 + $0x44c] sm:$0xff]
    %v2587 = vld [vmem:[%s8 + $0x454] sm:$0xff]
    %v2588 = vld [vmem:[%s8 + $0x45c] sm:$0xf]
    %v2589 = vld [vmem:[%s8 + $0x460] sm:$0xff]
    %v2590 = vld [vmem:[%s8 + $0x468] sm:$0xff]
    %v2591 = vld [vmem:[%s8 + $0x470] sm:$0xff]
    %v2592 = vld [vmem:[%s8 + $0x478] sm:$0xf]
    %v2593 = vld [vmem:[%s8 + $0x47c] sm:$0xff]
    %v2594 = vld [vmem:[%s8 + $0x484] sm:$0xff]
    %v2595 = vld [vmem:[%s8 + $0x48c] sm:$0xff]
    %v2596 = vld [vmem:[%s8 + $0x494] sm:$0xf]
    %v2597 = vld [vmem:[%s8 + $0x498] sm:$0xff]
    %v2598 = vld [vmem:[%s8 + $0x4a0] sm:$0xff]
    %v2599 = vld [vmem:[%s8 + $0x4a8] sm:$0xff]
    %v2600 = vld [vmem:[%s8 + $0x4b0] sm:$0xf]
    %v2601 = vld [vmem:[%s8 + $0x4b4] sm:$0xff]
    %v2602 = vld [vmem:[%s8 + $0x4bc] sm:$0xff]
    %v2603 = vld [vmem:[%s8 + $0x4c4] sm:$0xff]
    %v2604 = vld [vmem:[%s8 + $0x4cc] sm:$0xf]
    %v2605 = vld [vmem:[%s8 + $0x4d0] sm:$0xff]
    %v2606 = vld [vmem:[%s8 + $0x4d8] sm:$0xff]
    %v2607 = vld [vmem:[%s8 + $0x4e0] sm:$0xff]
    %v2608 = vld [vmem:[%s8 + $0x4e8] sm:$0xf]
    %v2609 = vld [vmem:[%s8 + $0x4ec] sm:$0xff]
    %v2610 = vld [vmem:[%s8 + $0x4f4] sm:$0xff]
    %v2611 = vld [vmem:[%s8 + $0x4fc] sm:$0xff]
    %v2612 = vld [vmem:[%s8 + $0x504] sm:$0xf]
    %v2613 = vld [vmem:[%s8 + $0x508] sm:$0xff]
    %v2614 = vld [vmem:[%s8 + $0x510] sm:$0xff]
    %v2615 = vld [vmem:[%s8 + $0x518] sm:$0xff]
    %v2616 = vld [vmem:[%s8 + $0x520] sm:$0xf]
    %v2617 = vld [vmem:[%s8 + $0x524] sm:$0xff]
    %v2618 = vld [vmem:[%s8 + $0x52c] sm:$0xff]
    %v2619 = vld [vmem:[%s8 + $0x534] sm:$0xff]
    %v2620 = vld [vmem:[%s8 + $0x53c] sm:$0xf]
    %v2621 = vld [vmem:[%s8 + $0x540] sm:$0xff]
    %v2622 = vld [vmem:[%s8 + $0x548] sm:$0xff]
    %v2623 = vld [vmem:[%s8 + $0x550] sm:$0xff]
    %v2624 = vld [vmem:[%s8 + $0x558] sm:$0xf]
    %v2625 = vld [vmem:[%s8 + $0x55c] sm:$0xff]
    %v2626 = vld [vmem:[%s8 + $0x564] sm:$0xff]
    %v2627 = vld [vmem:[%s8 + $0x56c] sm:$0xff]
    %v2628 = vld [vmem:[%s8 + $0x574] sm:$0xf]
    %v2629 = vld [vmem:[%s8 + $0x578] sm:$0xff]
    %v2630 = vld [vmem:[%s8 + $0x580] sm:$0xff]
    %v2631 = vld [vmem:[%s8 + $0x588] sm:$0xff]
    %v2632 = vld [vmem:[%s8 + $0x590] sm:$0xf]
    %v2633 = vld [vmem:[%s8 + $0x594] sm:$0xff]
    %v2634 = vld [vmem:[%s8 + $0x59c] sm:$0xff]
    %v2635 = vld [vmem:[%s8 + $0x5a4] sm:$0xff]
    %v2636 = vld [vmem:[%s8 + $0x5ac] sm:$0xf]
    %v2637 = vld [vmem:[%s8 + $0x5b0] sm:$0xff]
    %v2638 = vld [vmem:[%s8 + $0x5b8] sm:$0xff]
    %v2639 = vld [vmem:[%s8 + $0x5c0] sm:$0xff]
    %v2640 = vld [vmem:[%s8 + $0x5c8] sm:$0xf]
    %v2641 = vld [vmem:[%s8 + $0x5cc] sm:$0xff]
    %v2642 = vld [vmem:[%s8 + $0x5d4] sm:$0xff]
    %v2643 = vld [vmem:[%s8 + $0x5dc] sm:$0xff]
    %v2644 = vld [vmem:[%s8 + $0x5e4] sm:$0xf]
    %v2645 = vld [vmem:[%s8 + $0x5e8] sm:$0xff]
    %v2646 = vld [vmem:[%s8 + $0x5f0] sm:$0xff]
    %v2647 = vld [vmem:[%s8 + $0x5f8] sm:$0xff]
    %v2648 = vld [vmem:[%s8 + $0x600] sm:$0xf]
    %v2649 = vld [vmem:[%s8 + $0x604] sm:$0xff]
    %v2650 = vld [vmem:[%s8 + $0x60c] sm:$0xff]
    %v2651 = vld [vmem:[%s8 + $0x614] sm:$0xff]
    %v2652 = vld [vmem:[%s8 + $0x61c] sm:$0xf]
    %v2653 = vld [vmem:[%s8 + $0x620] sm:$0xff]
    %v2654 = vld [vmem:[%s8 + $0x628] sm:$0xff]
    %v2655 = vld [vmem:[%s8 + $0x630] sm:$0xff]
    %v2656 = vld [vmem:[%s8 + $0x638] sm:$0xf]
    %v2657 = vld [vmem:[%s8 + $0x63c] sm:$0xff]
    %v2658 = vld [vmem:[%s8 + $0x644] sm:$0xff]
    %v2659 = vld [vmem:[%s8 + $0x64c] sm:$0xff]
    %v2660 = vld [vmem:[%s8 + $0x654] sm:$0xf]
    %v2661 = vld [vmem:[%s8 + $0x658] sm:$0xff]
    %v2662 = vld [vmem:[%s8 + $0x660] sm:$0xff]
    %v2663 = vld [vmem:[%s8 + $0x668] sm:$0xff]
    %v2664 = vld [vmem:[%s8 + $0x670] sm:$0xf]
    %v2665 = vld [vmem:[%s8 + $0x674] sm:$0xff]
    %v2666 = vld [vmem:[%s8 + $0x67c] sm:$0xff]
    %v2667 = vld [vmem:[%s8 + $0x684] sm:$0xff]
    %v2668 = vld [vmem:[%s8 + $0x68c] sm:$0xf]
    %v2669 = vld [vmem:[%s8 + $0x690] sm:$0xff]
    %v2670 = vld [vmem:[%s8 + $0x698] sm:$0xff]
    %v2671 = vld [vmem:[%s8 + $0x6a0] sm:$0xff]
    %v2672 = vld [vmem:[%s8 + $0x6a8] sm:$0xf]
    %v2673 = vld [vmem:[%s8 + $0x6ac] sm:$0xff]
    %v2674 = vld [vmem:[%s8 + $0x6b4] sm:$0xff]
    %v2675 = vld [vmem:[%s8 + $0x6bc] sm:$0xff]
    %v2676 = vld [vmem:[%s8 + $0x6c4] sm:$0xf]
    %v2677 = vld [vmem:[%s8 + $0x6c8] sm:$0xff]
    %v2678 = vld [vmem:[%s8 + $0x6d0] sm:$0xff]
    %v2679 = vld [vmem:[%s8 + $0x6d8] sm:$0xff]
    %v2680 = vld [vmem:[%s8 + $0x6e0] sm:$0xf]
    %v2681 = vld [vmem:[%s8 + $0x6e4] sm:$0xff]
    %v2682 = vld [vmem:[%s8 + $0x6ec] sm:$0xff]
    %v2683 = vld [vmem:[%s8 + $0x6f4] sm:$0xff]
    %v2684 = vld [vmem:[%s8 + $0x6fc] sm:$0xf]
    %v2685 = vld [vmem:[%s9] sm:$0x7f]
    %v2687 = vlaneseq
    %v2688 = vshrl.u32 %v2687, 7
    %v2689 = vsub.s32 0, %v2688
    %v2690 = vrot.slane %v2685, %v2689
    %v2691 = vlaneseq
    %v2692 = vshrl.u32 %v2691, 7
    %v2693 = vsub.s32 1, %v2692
    %v2694 = vrot.slane %v2685, %v2693
    %v2695 = vlaneseq
    %v2696 = vshrl.u32 %v2695, 7
    %v2697 = vsub.s32 2, %v2696
    %v2698 = vrot.slane %v2685, %v2697
    %v2699 = vlaneseq
    %v2700 = vshrl.u32 %v2699, 7
    %v2701 = vsub.s32 3, %v2700
    %v2702 = vrot.slane %v2685, %v2701
    %v2703 = vlaneseq
    %v2704 = vshrl.u32 %v2703, 7
    %v2705 = vsub.s32 4, %v2704
    %v2706 = vrot.slane %v2685, %v2705
    %v2707 = vlaneseq
    %v2708 = vshrl.u32 %v2707, 7
    %v2709 = vsub.s32 5, %v2708
    %v2710 = vrot.slane %v2685, %v2709
    %v2711 = vlaneseq
    %v2712 = vshrl.u32 %v2711, 7
    %v2713 = vsub.s32 6, %v2712
    %v2714 = vrot.slane %v2685, %v2713
    %v2978 = vunpack.c.l.b16 %v2429
    %v2979 = vunpack.c.h.b16 %v2429
    %v2980 = vunpack.c.l.b16 %v2430
    %v2981 = vunpack.c.h.b16 %v2430
    %v2982 = vunpack.c.l.b16 %v2431
    %v2983 = vunpack.c.h.b16 %v2431
    %v2984 = vunpack.c.l.b16 %v2432
    %v2985 = vunpack.c.l.b16 %v2433
    %v2986 = vunpack.c.h.b16 %v2433
    %v2987 = vunpack.c.l.b16 %v2434
    %v2988 = vunpack.c.h.b16 %v2434
    %v2989 = vunpack.c.l.b16 %v2435
    %v2990 = vunpack.c.h.b16 %v2435
    %v2991 = vunpack.c.l.b16 %v2436
    %v2992 = vunpack.c.l.b16 %v2437
    %v2993 = vunpack.c.h.b16 %v2437
    %v2994 = vunpack.c.l.b16 %v2438
    %v2995 = vunpack.c.h.b16 %v2438
    %v2996 = vunpack.c.l.b16 %v2439
    %v2997 = vunpack.c.h.b16 %v2439
    %v2998 = vunpack.c.l.b16 %v2440
    %v2999 = vunpack.c.l.b16 %v2441
    %v3000 = vunpack.c.h.b16 %v2441
    %v3001 = vunpack.c.l.b16 %v2442
    %v3002 = vunpack.c.h.b16 %v2442
    %v3003 = vunpack.c.l.b16 %v2443
    %v3004 = vunpack.c.h.b16 %v2443
    %v3005 = vunpack.c.l.b16 %v2444
    %v3006 = vunpack.c.l.b16 %v2445
    %v3007 = vunpack.c.h.b16 %v2445
    %v3008 = vunpack.c.l.b16 %v2446
    %v3009 = vunpack.c.h.b16 %v2446
    %v3010 = vunpack.c.l.b16 %v2447
    %v3011 = vunpack.c.h.b16 %v2447
    %v3012 = vunpack.c.l.b16 %v2448
    %v3013 = vunpack.c.l.b16 %v2449
    %v3014 = vunpack.c.h.b16 %v2449
    %v3015 = vunpack.c.l.b16 %v2450
    %v3016 = vunpack.c.h.b16 %v2450
    %v3017 = vunpack.c.l.b16 %v2451
    %v3018 = vunpack.c.h.b16 %v2451
    %v3019 = vunpack.c.l.b16 %v2452
    %v3020 = vunpack.c.l.b16 %v2453
    %v3021 = vunpack.c.h.b16 %v2453
    %v3022 = vunpack.c.l.b16 %v2454
    %v3023 = vunpack.c.h.b16 %v2454
    %v3024 = vunpack.c.l.b16 %v2455
    %v3025 = vunpack.c.h.b16 %v2455
    %v3026 = vunpack.c.l.b16 %v2456
    %v3027 = vunpack.c.l.b16 %v2457
    %v3028 = vunpack.c.h.b16 %v2457
    %v3029 = vunpack.c.l.b16 %v2458
    %v3030 = vunpack.c.h.b16 %v2458
    %v3031 = vunpack.c.l.b16 %v2459
    %v3032 = vunpack.c.h.b16 %v2459
    %v3033 = vunpack.c.l.b16 %v2460
    %v3034 = vunpack.c.l.b16 %v2461
    %v3035 = vunpack.c.h.b16 %v2461
    %v3036 = vunpack.c.l.b16 %v2462
    %v3037 = vunpack.c.h.b16 %v2462
    %v3038 = vunpack.c.l.b16 %v2463
    %v3039 = vunpack.c.h.b16 %v2463
    %v3040 = vunpack.c.l.b16 %v2464
    %v3041 = vunpack.c.l.b16 %v2465
    %v3042 = vunpack.c.h.b16 %v2465
    %v3043 = vunpack.c.l.b16 %v2466
    %v3044 = vunpack.c.h.b16 %v2466
    %v3045 = vunpack.c.l.b16 %v2467
    %v3046 = vunpack.c.h.b16 %v2467
    %v3047 = vunpack.c.l.b16 %v2468
    %v3048 = vunpack.c.l.b16 %v2469
    %v3049 = vunpack.c.h.b16 %v2469
    %v3050 = vunpack.c.l.b16 %v2470
    %v3051 = vunpack.c.h.b16 %v2470
    %v3052 = vunpack.c.l.b16 %v2471
    %v3053 = vunpack.c.h.b16 %v2471
    %v3054 = vunpack.c.l.b16 %v2472
    %v3055 = vunpack.c.l.b16 %v2473
    %v3056 = vunpack.c.h.b16 %v2473
    %v3057 = vunpack.c.l.b16 %v2474
    %v3058 = vunpack.c.h.b16 %v2474
    %v3059 = vunpack.c.l.b16 %v2475
    %v3060 = vunpack.c.h.b16 %v2475
    %v3061 = vunpack.c.l.b16 %v2476
    %v3062 = vunpack.c.l.b16 %v2477
    %v3063 = vunpack.c.h.b16 %v2477
    %v3064 = vunpack.c.l.b16 %v2478
    %v3065 = vunpack.c.h.b16 %v2478
    %v3066 = vunpack.c.l.b16 %v2479
    %v3067 = vunpack.c.h.b16 %v2479
    %v3068 = vunpack.c.l.b16 %v2480
    %v3069 = vunpack.c.l.b16 %v2481
    %v3070 = vunpack.c.h.b16 %v2481
    %v3071 = vunpack.c.l.b16 %v2482
    %v3072 = vunpack.c.h.b16 %v2482
    %v3073 = vunpack.c.l.b16 %v2483
    %v3074 = vunpack.c.h.b16 %v2483
    %v3075 = vunpack.c.l.b16 %v2484
    %v3076 = vunpack.c.l.b16 %v2485
    %v3077 = vunpack.c.h.b16 %v2485
    %v3078 = vunpack.c.l.b16 %v2486
    %v3079 = vunpack.c.h.b16 %v2486
    %v3080 = vunpack.c.l.b16 %v2487
    %v3081 = vunpack.c.h.b16 %v2487
    %v3082 = vunpack.c.l.b16 %v2488
    %v3083 = vunpack.c.l.b16 %v2489
    %v3084 = vunpack.c.h.b16 %v2489
    %v3085 = vunpack.c.l.b16 %v2490
    %v3086 = vunpack.c.h.b16 %v2490
    %v3087 = vunpack.c.l.b16 %v2491
    %v3088 = vunpack.c.h.b16 %v2491
    %v3089 = vunpack.c.l.b16 %v2492
    %v3090 = vunpack.c.l.b16 %v2493
    %v3091 = vunpack.c.h.b16 %v2493
    %v3092 = vunpack.c.l.b16 %v2494
    %v3093 = vunpack.c.h.b16 %v2494
    %v3094 = vunpack.c.l.b16 %v2495
    %v3095 = vunpack.c.h.b16 %v2495
    %v3096 = vunpack.c.l.b16 %v2496
    %v3097 = vunpack.c.l.b16 %v2497
    %v3098 = vunpack.c.h.b16 %v2497
    %v3099 = vunpack.c.l.b16 %v2498
    %v3100 = vunpack.c.h.b16 %v2498
    %v3101 = vunpack.c.l.b16 %v2499
    %v3102 = vunpack.c.h.b16 %v2499
    %v3103 = vunpack.c.l.b16 %v2500
    %v3104 = vunpack.c.l.b16 %v2501
    %v3105 = vunpack.c.h.b16 %v2501
    %v3106 = vunpack.c.l.b16 %v2502
    %v3107 = vunpack.c.h.b16 %v2502
    %v3108 = vunpack.c.l.b16 %v2503
    %v3109 = vunpack.c.h.b16 %v2503
    %v3110 = vunpack.c.l.b16 %v2504
    %v3111 = vunpack.c.l.b16 %v2505
    %v3112 = vunpack.c.h.b16 %v2505
    %v3113 = vunpack.c.l.b16 %v2506
    %v3114 = vunpack.c.h.b16 %v2506
    %v3115 = vunpack.c.l.b16 %v2507
    %v3116 = vunpack.c.h.b16 %v2507
    %v3117 = vunpack.c.l.b16 %v2508
    %v3118 = vunpack.c.l.b16 %v2509
    %v3119 = vunpack.c.h.b16 %v2509
    %v3120 = vunpack.c.l.b16 %v2510
    %v3121 = vunpack.c.h.b16 %v2510
    %v3122 = vunpack.c.l.b16 %v2511
    %v3123 = vunpack.c.h.b16 %v2511
    %v3124 = vunpack.c.l.b16 %v2512
    %v3125 = vunpack.c.l.b16 %v2513
    %v3126 = vunpack.c.h.b16 %v2513
    %v3127 = vunpack.c.l.b16 %v2514
    %v3128 = vunpack.c.h.b16 %v2514
    %v3129 = vunpack.c.l.b16 %v2515
    %v3130 = vunpack.c.h.b16 %v2515
    %v3131 = vunpack.c.l.b16 %v2516
    %v3132 = vunpack.c.l.b16 %v2517
    %v3133 = vunpack.c.h.b16 %v2517
    %v3134 = vunpack.c.l.b16 %v2518
    %v3135 = vunpack.c.h.b16 %v2518
    %v3136 = vunpack.c.l.b16 %v2519
    %v3137 = vunpack.c.h.b16 %v2519
    %v3138 = vunpack.c.l.b16 %v2520
    %v3139 = vunpack.c.l.b16 %v2521
    %v3140 = vunpack.c.h.b16 %v2521
    %v3141 = vunpack.c.l.b16 %v2522
    %v3142 = vunpack.c.h.b16 %v2522
    %v3143 = vunpack.c.l.b16 %v2523
    %v3144 = vunpack.c.h.b16 %v2523
    %v3145 = vunpack.c.l.b16 %v2524
    %v3146 = vunpack.c.l.b16 %v2525
    %v3147 = vunpack.c.h.b16 %v2525
    %v3148 = vunpack.c.l.b16 %v2526
    %v3149 = vunpack.c.h.b16 %v2526
    %v3150 = vunpack.c.l.b16 %v2527
    %v3151 = vunpack.c.h.b16 %v2527
    %v3152 = vunpack.c.l.b16 %v2528
    %v3153 = vunpack.c.l.b16 %v2529
    %v3154 = vunpack.c.h.b16 %v2529
    %v3155 = vunpack.c.l.b16 %v2530
    %v3156 = vunpack.c.h.b16 %v2530
    %v3157 = vunpack.c.l.b16 %v2531
    %v3158 = vunpack.c.h.b16 %v2531
    %v3159 = vunpack.c.l.b16 %v2532
    %v3160 = vunpack.c.l.b16 %v2533
    %v3161 = vunpack.c.h.b16 %v2533
    %v3162 = vunpack.c.l.b16 %v2534
    %v3163 = vunpack.c.h.b16 %v2534
    %v3164 = vunpack.c.l.b16 %v2535
    %v3165 = vunpack.c.h.b16 %v2535
    %v3166 = vunpack.c.l.b16 %v2536
    %v3167 = vunpack.c.l.b16 %v2537
    %v3168 = vunpack.c.h.b16 %v2537
    %v3169 = vunpack.c.l.b16 %v2538
    %v3170 = vunpack.c.h.b16 %v2538
    %v3171 = vunpack.c.l.b16 %v2539
    %v3172 = vunpack.c.h.b16 %v2539
    %v3173 = vunpack.c.l.b16 %v2540
    %v3174 = vunpack.c.l.b16 %v2541
    %v3175 = vunpack.c.h.b16 %v2541
    %v3176 = vunpack.c.l.b16 %v2542
    %v3177 = vunpack.c.h.b16 %v2542
    %v3178 = vunpack.c.l.b16 %v2543
    %v3179 = vunpack.c.h.b16 %v2543
    %v3180 = vunpack.c.l.b16 %v2544
    %v3181 = vunpack.c.l.b16 %v2545
    %v3182 = vunpack.c.h.b16 %v2545
    %v3183 = vunpack.c.l.b16 %v2546
    %v3184 = vunpack.c.h.b16 %v2546
    %v3185 = vunpack.c.l.b16 %v2547
    %v3186 = vunpack.c.h.b16 %v2547
    %v3187 = vunpack.c.l.b16 %v2548
    %v3188 = vunpack.c.l.b16 %v2549
    %v3189 = vunpack.c.h.b16 %v2549
    %v3190 = vunpack.c.l.b16 %v2550
    %v3191 = vunpack.c.h.b16 %v2550
    %v3192 = vunpack.c.l.b16 %v2551
    %v3193 = vunpack.c.h.b16 %v2551
    %v3194 = vunpack.c.l.b16 %v2552
    %v3195 = vunpack.c.l.b16 %v2553
    %v3196 = vunpack.c.h.b16 %v2553
    %v3197 = vunpack.c.l.b16 %v2554
    %v3198 = vunpack.c.h.b16 %v2554
    %v3199 = vunpack.c.l.b16 %v2555
    %v3200 = vunpack.c.h.b16 %v2555
    %v3201 = vunpack.c.l.b16 %v2556
    %v3202 = vunpack.c.l.b16 %v2557
    %v3203 = vunpack.c.h.b16 %v2557
    %v3204 = vunpack.c.l.b16 %v2558
    %v3205 = vunpack.c.h.b16 %v2558
    %v3206 = vunpack.c.l.b16 %v2559
    %v3207 = vunpack.c.h.b16 %v2559
    %v3208 = vunpack.c.l.b16 %v2560
    %v3209 = vunpack.c.l.b16 %v2561
    %v3210 = vunpack.c.h.b16 %v2561
    %v3211 = vunpack.c.l.b16 %v2562
    %v3212 = vunpack.c.h.b16 %v2562
    %v3213 = vunpack.c.l.b16 %v2563
    %v3214 = vunpack.c.h.b16 %v2563
    %v3215 = vunpack.c.l.b16 %v2564
    %v3216 = vunpack.c.l.b16 %v2565
    %v3217 = vunpack.c.h.b16 %v2565
    %v3218 = vunpack.c.l.b16 %v2566
    %v3219 = vunpack.c.h.b16 %v2566
    %v3220 = vunpack.c.l.b16 %v2567
    %v3221 = vunpack.c.h.b16 %v2567
    %v3222 = vunpack.c.l.b16 %v2568
    %v3223 = vunpack.c.l.b16 %v2569
    %v3224 = vunpack.c.h.b16 %v2569
    %v3225 = vunpack.c.l.b16 %v2570
    %v3226 = vunpack.c.h.b16 %v2570
    %v3227 = vunpack.c.l.b16 %v2571
    %v3228 = vunpack.c.h.b16 %v2571
    %v3229 = vunpack.c.l.b16 %v2572
    %v3230 = vunpack.c.l.b16 %v2573
    %v3231 = vunpack.c.h.b16 %v2573
    %v3232 = vunpack.c.l.b16 %v2574
    %v3233 = vunpack.c.h.b16 %v2574
    %v3234 = vunpack.c.l.b16 %v2575
    %v3235 = vunpack.c.h.b16 %v2575
    %v3236 = vunpack.c.l.b16 %v2576
    %v3237 = vunpack.c.l.b16 %v2577
    %v3238 = vunpack.c.h.b16 %v2577
    %v3239 = vunpack.c.l.b16 %v2578
    %v3240 = vunpack.c.h.b16 %v2578
    %v3241 = vunpack.c.l.b16 %v2579
    %v3242 = vunpack.c.h.b16 %v2579
    %v3243 = vunpack.c.l.b16 %v2580
    %v3244 = vunpack.c.l.b16 %v2581
    %v3245 = vunpack.c.h.b16 %v2581
    %v3246 = vunpack.c.l.b16 %v2582
    %v3247 = vunpack.c.h.b16 %v2582
    %v3248 = vunpack.c.l.b16 %v2583
    %v3249 = vunpack.c.h.b16 %v2583
    %v3250 = vunpack.c.l.b16 %v2584
    %v3251 = vunpack.c.l.b16 %v2585
    %v3252 = vunpack.c.h.b16 %v2585
    %v3253 = vunpack.c.l.b16 %v2586
    %v3254 = vunpack.c.h.b16 %v2586
    %v3255 = vunpack.c.l.b16 %v2587
    %v3256 = vunpack.c.h.b16 %v2587
    %v3257 = vunpack.c.l.b16 %v2588
    %v3258 = vunpack.c.l.b16 %v2589
    %v3259 = vunpack.c.h.b16 %v2589
    %v3260 = vunpack.c.l.b16 %v2590
    %v3261 = vunpack.c.h.b16 %v2590
    %v3262 = vunpack.c.l.b16 %v2591
    %v3263 = vunpack.c.h.b16 %v2591
    %v3264 = vunpack.c.l.b16 %v2592
    %v3265 = vunpack.c.l.b16 %v2593
    %v3266 = vunpack.c.h.b16 %v2593
    %v3267 = vunpack.c.l.b16 %v2594
    %v3268 = vunpack.c.h.b16 %v2594
    %v3269 = vunpack.c.l.b16 %v2595
    %v3270 = vunpack.c.h.b16 %v2595
    %v3271 = vunpack.c.l.b16 %v2596
    %v3272 = vunpack.c.l.b16 %v2597
    %v3273 = vunpack.c.h.b16 %v2597
    %v3274 = vunpack.c.l.b16 %v2598
    %v3275 = vunpack.c.h.b16 %v2598
    %v3276 = vunpack.c.l.b16 %v2599
    %v3277 = vunpack.c.h.b16 %v2599
    %v3278 = vunpack.c.l.b16 %v2600
    %v3279 = vunpack.c.l.b16 %v2601
    %v3280 = vunpack.c.h.b16 %v2601
    %v3281 = vunpack.c.l.b16 %v2602
    %v3282 = vunpack.c.h.b16 %v2602
    %v3283 = vunpack.c.l.b16 %v2603
    %v3284 = vunpack.c.h.b16 %v2603
    %v3285 = vunpack.c.l.b16 %v2604
    %v3286 = vunpack.c.l.b16 %v2605
    %v3287 = vunpack.c.h.b16 %v2605
    %v3288 = vunpack.c.l.b16 %v2606
    %v3289 = vunpack.c.h.b16 %v2606
    %v3290 = vunpack.c.l.b16 %v2607
    %v3291 = vunpack.c.h.b16 %v2607
    %v3292 = vunpack.c.l.b16 %v2608
    %v3293 = vunpack.c.l.b16 %v2609
    %v3294 = vunpack.c.h.b16 %v2609
    %v3295 = vunpack.c.l.b16 %v2610
    %v3296 = vunpack.c.h.b16 %v2610
    %v3297 = vunpack.c.l.b16 %v2611
    %v3298 = vunpack.c.h.b16 %v2611
    %v3299 = vunpack.c.l.b16 %v2612
    %v3300 = vunpack.c.l.b16 %v2613
    %v3301 = vunpack.c.h.b16 %v2613
    %v3302 = vunpack.c.l.b16 %v2614
    %v3303 = vunpack.c.h.b16 %v2614
    %v3304 = vunpack.c.l.b16 %v2615
    %v3305 = vunpack.c.h.b16 %v2615
    %v3306 = vunpack.c.l.b16 %v2616
    %v3307 = vunpack.c.l.b16 %v2617
    %v3308 = vunpack.c.h.b16 %v2617
    %v3309 = vunpack.c.l.b16 %v2618
    %v3310 = vunpack.c.h.b16 %v2618
    %v3311 = vunpack.c.l.b16 %v2619
    %v3312 = vunpack.c.h.b16 %v2619
    %v3313 = vunpack.c.l.b16 %v2620
    %v3314 = vunpack.c.l.b16 %v2621
    %v3315 = vunpack.c.h.b16 %v2621
    %v3316 = vunpack.c.l.b16 %v2622
    %v3317 = vunpack.c.h.b16 %v2622
    %v3318 = vunpack.c.l.b16 %v2623
    %v3319 = vunpack.c.h.b16 %v2623
    %v3320 = vunpack.c.l.b16 %v2624
    %v3321 = vunpack.c.l.b16 %v2625
    %v3322 = vunpack.c.h.b16 %v2625
    %v3323 = vunpack.c.l.b16 %v2626
    %v3324 = vunpack.c.h.b16 %v2626
    %v3325 = vunpack.c.l.b16 %v2627
    %v3326 = vunpack.c.h.b16 %v2627
    %v3327 = vunpack.c.l.b16 %v2628
    %v3328 = vunpack.c.l.b16 %v2629
    %v3329 = vunpack.c.h.b16 %v2629
    %v3330 = vunpack.c.l.b16 %v2630
    %v3331 = vunpack.c.h.b16 %v2630
    %v3332 = vunpack.c.l.b16 %v2631
    %v3333 = vunpack.c.h.b16 %v2631
    %v3334 = vunpack.c.l.b16 %v2632
    %v3335 = vunpack.c.l.b16 %v2633
    %v3336 = vunpack.c.h.b16 %v2633
    %v3337 = vunpack.c.l.b16 %v2634
    %v3338 = vunpack.c.h.b16 %v2634
    %v3339 = vunpack.c.l.b16 %v2635
    %v3340 = vunpack.c.h.b16 %v2635
    %v3341 = vunpack.c.l.b16 %v2636
    %v3342 = vunpack.c.l.b16 %v2637
    %v3343 = vunpack.c.h.b16 %v2637
    %v3344 = vunpack.c.l.b16 %v2638
    %v3345 = vunpack.c.h.b16 %v2638
    %v3346 = vunpack.c.l.b16 %v2639
    %v3347 = vunpack.c.h.b16 %v2639
    %v3348 = vunpack.c.l.b16 %v2640
    %v3349 = vunpack.c.l.b16 %v2641
    %v3350 = vunpack.c.h.b16 %v2641
    %v3351 = vunpack.c.l.b16 %v2642
    %v3352 = vunpack.c.h.b16 %v2642
    %v3353 = vunpack.c.l.b16 %v2643
    %v3354 = vunpack.c.h.b16 %v2643
    %v3355 = vunpack.c.l.b16 %v2644
    %v3356 = vunpack.c.l.b16 %v2645
    %v3357 = vunpack.c.h.b16 %v2645
    %v3358 = vunpack.c.l.b16 %v2646
    %v3359 = vunpack.c.h.b16 %v2646
    %v3360 = vunpack.c.l.b16 %v2647
    %v3361 = vunpack.c.h.b16 %v2647
    %v3362 = vunpack.c.l.b16 %v2648
    %v3363 = vunpack.c.l.b16 %v2649
    %v3364 = vunpack.c.h.b16 %v2649
    %v3365 = vunpack.c.l.b16 %v2650
    %v3366 = vunpack.c.h.b16 %v2650
    %v3367 = vunpack.c.l.b16 %v2651
    %v3368 = vunpack.c.h.b16 %v2651
    %v3369 = vunpack.c.l.b16 %v2652
    %v3370 = vunpack.c.l.b16 %v2653
    %v3371 = vunpack.c.h.b16 %v2653
    %v3372 = vunpack.c.l.b16 %v2654
    %v3373 = vunpack.c.h.b16 %v2654
    %v3374 = vunpack.c.l.b16 %v2655
    %v3375 = vunpack.c.h.b16 %v2655
    %v3376 = vunpack.c.l.b16 %v2656
    %v3377 = vunpack.c.l.b16 %v2657
    %v3378 = vunpack.c.h.b16 %v2657
    %v3379 = vunpack.c.l.b16 %v2658
    %v3380 = vunpack.c.h.b16 %v2658
    %v3381 = vunpack.c.l.b16 %v2659
    %v3382 = vunpack.c.h.b16 %v2659
    %v3383 = vunpack.c.l.b16 %v2660
    %v3384 = vunpack.c.l.b16 %v2661
    %v3385 = vunpack.c.h.b16 %v2661
    %v3386 = vunpack.c.l.b16 %v2662
    %v3387 = vunpack.c.h.b16 %v2662
    %v3388 = vunpack.c.l.b16 %v2663
    %v3389 = vunpack.c.h.b16 %v2663
    %v3390 = vunpack.c.l.b16 %v2664
    %v3391 = vunpack.c.l.b16 %v2665
    %v3392 = vunpack.c.h.b16 %v2665
    %v3393 = vunpack.c.l.b16 %v2666
    %v3394 = vunpack.c.h.b16 %v2666
    %v3395 = vunpack.c.l.b16 %v2667
    %v3396 = vunpack.c.h.b16 %v2667
    %v3397 = vunpack.c.l.b16 %v2668
    %v3398 = vunpack.c.l.b16 %v2669
    %v3399 = vunpack.c.h.b16 %v2669
    %v3400 = vunpack.c.l.b16 %v2670
    %v3401 = vunpack.c.h.b16 %v2670
    %v3402 = vunpack.c.l.b16 %v2671
    %v3403 = vunpack.c.h.b16 %v2671
    %v3404 = vunpack.c.l.b16 %v2672
    %v3405 = vunpack.c.l.b16 %v2673
    %v3406 = vunpack.c.h.b16 %v2673
    %v3407 = vunpack.c.l.b16 %v2674
    %v3408 = vunpack.c.h.b16 %v2674
    %v3409 = vunpack.c.l.b16 %v2675
    %v3410 = vunpack.c.h.b16 %v2675
    %v3411 = vunpack.c.l.b16 %v2676
    %v3412 = vunpack.c.l.b16 %v2677
    %v3413 = vunpack.c.h.b16 %v2677
    %v3414 = vunpack.c.l.b16 %v2678
    %v3415 = vunpack.c.h.b16 %v2678
    %v3416 = vunpack.c.l.b16 %v2679
    %v3417 = vunpack.c.h.b16 %v2679
    %v3418 = vunpack.c.l.b16 %v2680
    %v3419 = vunpack.c.l.b16 %v2681
    %v3420 = vunpack.c.h.b16 %v2681
    %v3421 = vunpack.c.l.b16 %v2682
    %v3422 = vunpack.c.h.b16 %v2682
    %v3423 = vunpack.c.l.b16 %v2683
    %v3424 = vunpack.c.h.b16 %v2683
    %v3425 = vunpack.c.l.b16 %v2684
    %v3426 = vpack.c.b16 %v2985, %v2978
    %v3427 = vpack.c.b16 %v2986, %v2979
    %v3428 = vpack.c.b16 %v2987, %v2980
    %v3429 = vpack.c.b16 %v2988, %v2981
    %v3430 = vpack.c.b16 %v2989, %v2982
    %v3431 = vpack.c.b16 %v2990, %v2983
    %v3432 = vpack.c.b16 %v2991, %v2984
    %v3433 = vpack.c.b16 %v2999, %v2992
    %v3434 = vpack.c.b16 %v3000, %v2993
    %v3435 = vpack.c.b16 %v3001, %v2994
    %v3436 = vpack.c.b16 %v3002, %v2995
    %v3437 = vpack.c.b16 %v3003, %v2996
    %v3438 = vpack.c.b16 %v3004, %v2997
    %v3439 = vpack.c.b16 %v3005, %v2998
    %v3440 = vpack.c.b16 %v3013, %v3006
    %v3441 = vpack.c.b16 %v3014, %v3007
    %v3442 = vpack.c.b16 %v3015, %v3008
    %v3443 = vpack.c.b16 %v3016, %v3009
    %v3444 = vpack.c.b16 %v3017, %v3010
    %v3445 = vpack.c.b16 %v3018, %v3011
    %v3446 = vpack.c.b16 %v3019, %v3012
    %v3447 = vpack.c.b16 %v3027, %v3020
    %v3448 = vpack.c.b16 %v3028, %v3021
    %v3449 = vpack.c.b16 %v3029, %v3022
    %v3450 = vpack.c.b16 %v3030, %v3023
    %v3451 = vpack.c.b16 %v3031, %v3024
    %v3452 = vpack.c.b16 %v3032, %v3025
    %v3453 = vpack.c.b16 %v3033, %v3026
    %v3454 = vpack.c.b16 %v3041, %v3034
    %v3455 = vpack.c.b16 %v3042, %v3035
    %v3456 = vpack.c.b16 %v3043, %v3036
    %v3457 = vpack.c.b16 %v3044, %v3037
    %v3458 = vpack.c.b16 %v3045, %v3038
    %v3459 = vpack.c.b16 %v3046, %v3039
    %v3460 = vpack.c.b16 %v3047, %v3040
    %v3461 = vpack.c.b16 %v3055, %v3048
    %v3462 = vpack.c.b16 %v3056, %v3049
    %v3463 = vpack.c.b16 %v3057, %v3050
    %v3464 = vpack.c.b16 %v3058, %v3051
    %v3465 = vpack.c.b16 %v3059, %v3052
    %v3466 = vpack.c.b16 %v3060, %v3053
    %v3467 = vpack.c.b16 %v3061, %v3054
    %v3468 = vpack.c.b16 %v3069, %v3062
    %v3469 = vpack.c.b16 %v3070, %v3063
    %v3470 = vpack.c.b16 %v3071, %v3064
    %v3471 = vpack.c.b16 %v3072, %v3065
    %v3472 = vpack.c.b16 %v3073, %v3066
    %v3473 = vpack.c.b16 %v3074, %v3067
    %v3474 = vpack.c.b16 %v3075, %v3068
    %v3475 = vpack.c.b16 %v3083, %v3076
    %v3476 = vpack.c.b16 %v3084, %v3077
    %v3477 = vpack.c.b16 %v3085, %v3078
    %v3478 = vpack.c.b16 %v3086, %v3079
    %v3479 = vpack.c.b16 %v3087, %v3080
    %v3480 = vpack.c.b16 %v3088, %v3081
    %v3481 = vpack.c.b16 %v3089, %v3082
    %v3482 = vpack.c.b16 %v3097, %v3090
    %v3483 = vpack.c.b16 %v3098, %v3091
    %v3484 = vpack.c.b16 %v3099, %v3092
    %v3485 = vpack.c.b16 %v3100, %v3093
    %v3486 = vpack.c.b16 %v3101, %v3094
    %v3487 = vpack.c.b16 %v3102, %v3095
    %v3488 = vpack.c.b16 %v3103, %v3096
    %v3489 = vpack.c.b16 %v3111, %v3104
    %v3490 = vpack.c.b16 %v3112, %v3105
    %v3491 = vpack.c.b16 %v3113, %v3106
    %v3492 = vpack.c.b16 %v3114, %v3107
    %v3493 = vpack.c.b16 %v3115, %v3108
    %v3494 = vpack.c.b16 %v3116, %v3109
    %v3495 = vpack.c.b16 %v3117, %v3110
    %v3496 = vpack.c.b16 %v3125, %v3118
    %v3497 = vpack.c.b16 %v3126, %v3119
    %v3498 = vpack.c.b16 %v3127, %v3120
    %v3499 = vpack.c.b16 %v3128, %v3121
    %v3500 = vpack.c.b16 %v3129, %v3122
    %v3501 = vpack.c.b16 %v3130, %v3123
    %v3502 = vpack.c.b16 %v3131, %v3124
    %v3503 = vpack.c.b16 %v3139, %v3132
    %v3504 = vpack.c.b16 %v3140, %v3133
    %v3505 = vpack.c.b16 %v3141, %v3134
    %v3506 = vpack.c.b16 %v3142, %v3135
    %v3507 = vpack.c.b16 %v3143, %v3136
    %v3508 = vpack.c.b16 %v3144, %v3137
    %v3509 = vpack.c.b16 %v3145, %v3138
    %v3510 = vpack.c.b16 %v3153, %v3146
    %v3511 = vpack.c.b16 %v3154, %v3147
    %v3512 = vpack.c.b16 %v3155, %v3148
    %v3513 = vpack.c.b16 %v3156, %v3149
    %v3514 = vpack.c.b16 %v3157, %v3150
    %v3515 = vpack.c.b16 %v3158, %v3151
    %v3516 = vpack.c.b16 %v3159, %v3152
    %v3517 = vpack.c.b16 %v3167, %v3160
    %v3518 = vpack.c.b16 %v3168, %v3161
    %v3519 = vpack.c.b16 %v3169, %v3162
    %v3520 = vpack.c.b16 %v3170, %v3163
    %v3521 = vpack.c.b16 %v3171, %v3164
    %v3522 = vpack.c.b16 %v3172, %v3165
    %v3523 = vpack.c.b16 %v3173, %v3166
    %v3524 = vpack.c.b16 %v3181, %v3174
    %v3525 = vpack.c.b16 %v3182, %v3175
    %v3526 = vpack.c.b16 %v3183, %v3176
    %v3527 = vpack.c.b16 %v3184, %v3177
    %v3528 = vpack.c.b16 %v3185, %v3178
    %v3529 = vpack.c.b16 %v3186, %v3179
    %v3530 = vpack.c.b16 %v3187, %v3180
    %v3531 = vpack.c.b16 %v3195, %v3188
    %v3532 = vpack.c.b16 %v3196, %v3189
    %v3533 = vpack.c.b16 %v3197, %v3190
    %v3534 = vpack.c.b16 %v3198, %v3191
    %v3535 = vpack.c.b16 %v3199, %v3192
    %v3536 = vpack.c.b16 %v3200, %v3193
    %v3537 = vpack.c.b16 %v3201, %v3194
    %v3538 = vpack.c.b16 %v3209, %v3202
    %v3539 = vpack.c.b16 %v3210, %v3203
    %v3540 = vpack.c.b16 %v3211, %v3204
    %v3541 = vpack.c.b16 %v3212, %v3205
    %v3542 = vpack.c.b16 %v3213, %v3206
    %v3543 = vpack.c.b16 %v3214, %v3207
    %v3544 = vpack.c.b16 %v3215, %v3208
    %v3545 = vpack.c.b16 %v3223, %v3216
    %v3546 = vpack.c.b16 %v3224, %v3217
    %v3547 = vpack.c.b16 %v3225, %v3218
    %v3548 = vpack.c.b16 %v3226, %v3219
    %v3549 = vpack.c.b16 %v3227, %v3220
    %v3550 = vpack.c.b16 %v3228, %v3221
    %v3551 = vpack.c.b16 %v3229, %v3222
    %v3552 = vpack.c.b16 %v3237, %v3230
    %v3553 = vpack.c.b16 %v3238, %v3231
    %v3554 = vpack.c.b16 %v3239, %v3232
    %v3555 = vpack.c.b16 %v3240, %v3233
    %v3556 = vpack.c.b16 %v3241, %v3234
    %v3557 = vpack.c.b16 %v3242, %v3235
    %v3558 = vpack.c.b16 %v3243, %v3236
    %v3559 = vpack.c.b16 %v3251, %v3244
    %v3560 = vpack.c.b16 %v3252, %v3245
    %v3561 = vpack.c.b16 %v3253, %v3246
    %v3562 = vpack.c.b16 %v3254, %v3247
    %v3563 = vpack.c.b16 %v3255, %v3248
    %v3564 = vpack.c.b16 %v3256, %v3249
    %v3565 = vpack.c.b16 %v3257, %v3250
    %v3566 = vpack.c.b16 %v3265, %v3258
    %v3567 = vpack.c.b16 %v3266, %v3259
    %v3568 = vpack.c.b16 %v3267, %v3260
    %v3569 = vpack.c.b16 %v3268, %v3261
    %v3570 = vpack.c.b16 %v3269, %v3262
    %v3571 = vpack.c.b16 %v3270, %v3263
    %v3572 = vpack.c.b16 %v3271, %v3264
    %v3573 = vpack.c.b16 %v3279, %v3272
    %v3574 = vpack.c.b16 %v3280, %v3273
    %v3575 = vpack.c.b16 %v3281, %v3274
    %v3576 = vpack.c.b16 %v3282, %v3275
    %v3577 = vpack.c.b16 %v3283, %v3276
    %v3578 = vpack.c.b16 %v3284, %v3277
    %v3579 = vpack.c.b16 %v3285, %v3278
    %v3580 = vpack.c.b16 %v3293, %v3286
    %v3581 = vpack.c.b16 %v3294, %v3287
    %v3582 = vpack.c.b16 %v3295, %v3288
    %v3583 = vpack.c.b16 %v3296, %v3289
    %v3584 = vpack.c.b16 %v3297, %v3290
    %v3585 = vpack.c.b16 %v3298, %v3291
    %v3586 = vpack.c.b16 %v3299, %v3292
    %v3587 = vpack.c.b16 %v3307, %v3300
    %v3588 = vpack.c.b16 %v3308, %v3301
    %v3589 = vpack.c.b16 %v3309, %v3302
    %v3590 = vpack.c.b16 %v3310, %v3303
    %v3591 = vpack.c.b16 %v3311, %v3304
    %v3592 = vpack.c.b16 %v3312, %v3305
    %v3593 = vpack.c.b16 %v3313, %v3306
    %v3594 = vpack.c.b16 %v3321, %v3314
    %v3595 = vpack.c.b16 %v3322, %v3315
    %v3596 = vpack.c.b16 %v3323, %v3316
    %v3597 = vpack.c.b16 %v3324, %v3317
    %v3598 = vpack.c.b16 %v3325, %v3318
    %v3599 = vpack.c.b16 %v3326, %v3319
    %v3600 = vpack.c.b16 %v3327, %v3320
    %v3601 = vpack.c.b16 %v3335, %v3328
    %v3602 = vpack.c.b16 %v3336, %v3329
    %v3603 = vpack.c.b16 %v3337, %v3330
    %v3604 = vpack.c.b16 %v3338, %v3331
    %v3605 = vpack.c.b16 %v3339, %v3332
    %v3606 = vpack.c.b16 %v3340, %v3333
    %v3607 = vpack.c.b16 %v3341, %v3334
    %v3608 = vpack.c.b16 %v3349, %v3342
    %v3609 = vpack.c.b16 %v3350, %v3343
    %v3610 = vpack.c.b16 %v3351, %v3344
    %v3611 = vpack.c.b16 %v3352, %v3345
    %v3612 = vpack.c.b16 %v3353, %v3346
    %v3613 = vpack.c.b16 %v3354, %v3347
    %v3614 = vpack.c.b16 %v3355, %v3348
    %v3615 = vpack.c.b16 %v3363, %v3356
    %v3616 = vpack.c.b16 %v3364, %v3357
    %v3617 = vpack.c.b16 %v3365, %v3358
    %v3618 = vpack.c.b16 %v3366, %v3359
    %v3619 = vpack.c.b16 %v3367, %v3360
    %v3620 = vpack.c.b16 %v3368, %v3361
    %v3621 = vpack.c.b16 %v3369, %v3362
    %v3622 = vpack.c.b16 %v3377, %v3370
    %v3623 = vpack.c.b16 %v3378, %v3371
    %v3624 = vpack.c.b16 %v3379, %v3372
    %v3625 = vpack.c.b16 %v3380, %v3373
    %v3626 = vpack.c.b16 %v3381, %v3374
    %v3627 = vpack.c.b16 %v3382, %v3375
    %v3628 = vpack.c.b16 %v3383, %v3376
    %v3629 = vpack.c.b16 %v3391, %v3384
    %v3630 = vpack.c.b16 %v3392, %v3385
    %v3631 = vpack.c.b16 %v3393, %v3386
    %v3632 = vpack.c.b16 %v3394, %v3387
    %v3633 = vpack.c.b16 %v3395, %v3388
    %v3634 = vpack.c.b16 %v3396, %v3389
    %v3635 = vpack.c.b16 %v3397, %v3390
    %v3636 = vpack.c.b16 %v3405, %v3398
    %v3637 = vpack.c.b16 %v3406, %v3399
    %v3638 = vpack.c.b16 %v3407, %v3400
    %v3639 = vpack.c.b16 %v3408, %v3401
    %v3640 = vpack.c.b16 %v3409, %v3402
    %v3641 = vpack.c.b16 %v3410, %v3403
    %v3642 = vpack.c.b16 %v3411, %v3404
    %v3643 = vpack.c.b16 %v3419, %v3412
    %v3644 = vpack.c.b16 %v3420, %v3413
    %v3645 = vpack.c.b16 %v3421, %v3414
    %v3646 = vpack.c.b16 %v3422, %v3415
    %v3647 = vpack.c.b16 %v3423, %v3416
    %v3648 = vpack.c.b16 %v3424, %v3417
    %v3649 = vpack.c.b16 %v3425, %v3418
    %3874 = vmatprep.subr.bf16.mxu0 %v3427
    %3875 = vmatpush1.bf16.msra.mxu0 %v3426
    %3876 = vmatprep.subr.bf16.mxu0 %v3434
    %3877 = vmatpush1.bf16.msra.mxu0 %v3433
    %3878 = vmatprep.subr.bf16.mxu0 %v3441
    %3879 = vmatpush1.bf16.msra.mxu0 %v3440
    %3880 = vmatprep.subr.bf16.mxu0 %v3448
    %3881 = vmatpush1.bf16.msra.mxu0 %v3447
    %3882 = vmatprep.subr.bf16.mxu0 %v3455
    %3883 = vmatpush1.bf16.msra.mxu0 %v3454
    %3884 = vmatprep.subr.bf16.mxu0 %v3462
    %3885 = vmatpush1.bf16.msra.mxu0 %v3461
    %3886 = vmatprep.subr.bf16.mxu0 %v3469
    %3887 = vmatpush1.bf16.msra.mxu0 %v3468
    %3888 = vmatprep.subr.bf16.mxu0 %v3476
    %3889 = vmatpush1.bf16.msra.mxu0 %v3475
    %3890 = vmatprep.subr.bf16.mxu0 %v3483
    %3891 = vmatpush1.bf16.msra.mxu0 %v3482
    %3892 = vmatprep.subr.bf16.mxu0 %v3490
    %3893 = vmatpush1.bf16.msra.mxu0 %v3489
    %3894 = vmatprep.subr.bf16.mxu0 %v3497
    %3895 = vmatpush1.bf16.msra.mxu0 %v3496
    %3896 = vmatprep.subr.bf16.mxu0 %v3504
    %3897 = vmatpush1.bf16.msra.mxu0 %v3503
    %3898 = vmatprep.subr.bf16.mxu0 %v3511
    %3899 = vmatpush1.bf16.msra.mxu0 %v3510
    %3900 = vmatprep.subr.bf16.mxu0 %v3518
    %3901 = vmatpush1.bf16.msra.mxu0 %v3517
    %3902 = vmatprep.subr.bf16.mxu0 %v3525
    %3903 = vmatpush1.bf16.msra.mxu0 %v3524
    %3904 = vmatprep.subr.bf16.mxu0 %v3532
    %3905 = vmatpush1.bf16.msra.mxu0 %v3531
    %3906 = vmatprep.mubr.bf16.mxu0 %v2426
    %3907 = vmatmul.mubr.bf16.gmra.mrb[0].mxu0 %v2425
    %v3908 = vpop.f32.mrb[0].mxu0
    %v3909 = vadd.f32 %v2690, %v3908
    %v3910 = vpop.f32.mrb[0].mxu0
    %v3911 = vadd.f32 %v2694, %v3910
    %v3912 = vpop.f32.mrb[0].mxu0
    %v3913 = vadd.f32 %v2690, %v3912
    %v3914 = vpop.f32.mrb[0].mxu0
    %v3915 = vadd.f32 %v2694, %v3914
    %3916 = vdwg.mxu0
    %3917 = vmatprep.subr.bf16.mxu0 %v3539
    %3918 = vmatpush1.bf16.msra.mxu0 %v3538
    %3919 = vmatprep.subr.bf16.mxu0 %v3546
    %3920 = vmatpush1.bf16.msra.mxu0 %v3545
    %3921 = vmatprep.subr.bf16.mxu0 %v3553
    %3922 = vmatpush1.bf16.msra.mxu0 %v3552
    %3923 = vmatprep.subr.bf16.mxu0 %v3560
    %3924 = vmatpush1.bf16.msra.mxu0 %v3559
    %3925 = vmatprep.subr.bf16.mxu0 %v3567
    %3926 = vmatpush1.bf16.msra.mxu0 %v3566
    %3927 = vmatprep.subr.bf16.mxu0 %v3574
    %3928 = vmatpush1.bf16.msra.mxu0 %v3573
    %3929 = vmatprep.subr.bf16.mxu0 %v3581
    %3930 = vmatpush1.bf16.msra.mxu0 %v3580
    %3931 = vmatprep.subr.bf16.mxu0 %v3588
    %3932 = vmatpush1.bf16.msra.mxu0 %v3587
    %3933 = vmatprep.subr.bf16.mxu0 %v3595
    %3934 = vmatpush1.bf16.msra.mxu0 %v3594
    %3935 = vmatprep.subr.bf16.mxu0 %v3602
    %3936 = vmatpush1.bf16.msra.mxu0 %v3601
    %3937 = vmatprep.subr.bf16.mxu0 %v3609
    %3938 = vmatpush1.bf16.msra.mxu0 %v3608
    %3939 = vmatprep.subr.bf16.mxu0 %v3616
    %3940 = vmatpush1.bf16.msra.mxu0 %v3615
    %3941 = vmatprep.subr.bf16.mxu0 %v3623
    %3942 = vmatpush1.bf16.msra.mxu0 %v3622
    %3943 = vmatprep.subr.bf16.mxu0 %v3630
    %3944 = vmatpush1.bf16.msra.mxu0 %v3629
    %3945 = vmatprep.subr.bf16.mxu0 %v3637
    %3946 = vmatpush1.bf16.msra.mxu0 %v3636
    %3947 = vmatprep.subr.bf16.mxu0 %v3644
    %3948 = vmatpush1.bf16.msra.mxu0 %v3643
    %3949 = vmatprep.mubr.bf16.mxu0 %v2428
    %3950 = vmatmul.mubr.bf16.gmra.mrb[0].mxu0 %v2427
    %v3951 = vpop.f32.mrb[0].mxu0
    %v3952 = vadd.f32 %v3909, %v3951
    %v3953 = vpop.f32.mrb[0].mxu0
    %v3954 = vadd.f32 %v3911, %v3953
    %v3955 = vpop.f32.mrb[0].mxu0
    %v3956 = vadd.f32 %v3913, %v3955
    %v3957 = vpop.f32.mrb[0].mxu0
    %v3958 = vadd.f32 %v3915, %v3957
    %3959 = vdwg.mxu0
    %3960 = vmatprep.subr.bf16.mxu0 %v3429
    %3961 = vmatpush1.bf16.msra.mxu0 %v3428
    %3962 = vmatprep.subr.bf16.mxu0 %v3436
    %3963 = vmatpush1.bf16.msra.mxu0 %v3435
    %3964 = vmatprep.subr.bf16.mxu0 %v3443
    %3965 = vmatpush1.bf16.msra.mxu0 %v3442
    %3966 = vmatprep.subr.bf16.mxu0 %v3450
    %3967 = vmatpush1.bf16.msra.mxu0 %v3449
    %3968 = vmatprep.subr.bf16.mxu0 %v3457
    %3969 = vmatpush1.bf16.msra.mxu0 %v3456
    %3970 = vmatprep.subr.bf16.mxu0 %v3464
    %3971 = vmatpush1.bf16.msra.mxu0 %v3463
    %3972 = vmatprep.subr.bf16.mxu0 %v3471
    %3973 = vmatpush1.bf16.msra.mxu0 %v3470
    %3974 = vmatprep.subr.bf16.mxu0 %v3478
    %3975 = vmatpush1.bf16.msra.mxu0 %v3477
    %3976 = vmatprep.subr.bf16.mxu0 %v3485
    %3977 = vmatpush1.bf16.msra.mxu0 %v3484
    %3978 = vmatprep.subr.bf16.mxu0 %v3492
    %3979 = vmatpush1.bf16.msra.mxu0 %v3491
    %3980 = vmatprep.subr.bf16.mxu0 %v3499
    %3981 = vmatpush1.bf16.msra.mxu0 %v3498
    %3982 = vmatprep.subr.bf16.mxu0 %v3506
    %3983 = vmatpush1.bf16.msra.mxu0 %v3505
    %3984 = vmatprep.subr.bf16.mxu0 %v3513
    %3985 = vmatpush1.bf16.msra.mxu0 %v3512
    %3986 = vmatprep.subr.bf16.mxu0 %v3520
    %3987 = vmatpush1.bf16.msra.mxu0 %v3519
    %3988 = vmatprep.subr.bf16.mxu0 %v3527
    %3989 = vmatpush1.bf16.msra.mxu0 %v3526
    %3990 = vmatprep.subr.bf16.mxu0 %v3534
    %3991 = vmatpush1.bf16.msra.mxu0 %v3533
    %3992 = vmatprep.mubr.bf16.mxu0 %v2426
    %3993 = vmatmul.mubr.bf16.gmra.mrb[0].mxu0 %v2425
    %v3994 = vpop.f32.mrb[0].mxu0
    %v3995 = vadd.f32 %v2698, %v3994
    %v3996 = vpop.f32.mrb[0].mxu0
    %v3997 = vadd.f32 %v2702, %v3996
    %v3998 = vpop.f32.mrb[0].mxu0
    %v3999 = vadd.f32 %v2698, %v3998
    %v4000 = vpop.f32.mrb[0].mxu0
    %v4001 = vadd.f32 %v2702, %v4000
    %4002 = vdwg.mxu0
    %4003 = vmatprep.subr.bf16.mxu0 %v3541
    %4004 = vmatpush1.bf16.msra.mxu0 %v3540
    %4005 = vmatprep.subr.bf16.mxu0 %v3548
    %4006 = vmatpush1.bf16.msra.mxu0 %v3547
    %4007 = vmatprep.subr.bf16.mxu0 %v3555
    %4008 = vmatpush1.bf16.msra.mxu0 %v3554
    %4009 = vmatprep.subr.bf16.mxu0 %v3562
    %4010 = vmatpush1.bf16.msra.mxu0 %v3561
    %4011 = vmatprep.subr.bf16.mxu0 %v3569
    %4012 = vmatpush1.bf16.msra.mxu0 %v3568
    %4013 = vmatprep.subr.bf16.mxu0 %v3576
    %4014 = vmatpush1.bf16.msra.mxu0 %v3575
    %4015 = vmatprep.subr.bf16.mxu0 %v3583
    %4016 = vmatpush1.bf16.msra.mxu0 %v3582
    %4017 = vmatprep.subr.bf16.mxu0 %v3590
    %4018 = vmatpush1.bf16.msra.mxu0 %v3589
    %4019 = vmatprep.subr.bf16.mxu0 %v3597
    %4020 = vmatpush1.bf16.msra.mxu0 %v3596
    %4021 = vmatprep.subr.bf16.mxu0 %v3604
    %4022 = vmatpush1.bf16.msra.mxu0 %v3603
    %4023 = vmatprep.subr.bf16.mxu0 %v3611
    %4024 = vmatpush1.bf16.msra.mxu0 %v3610
    %4025 = vmatprep.subr.bf16.mxu0 %v3618
    %4026 = vmatpush1.bf16.msra.mxu0 %v3617
    %4027 = vmatprep.subr.bf16.mxu0 %v3625
    %4028 = vmatpush1.bf16.msra.mxu0 %v3624
    %4029 = vmatprep.subr.bf16.mxu0 %v3632
    %4030 = vmatpush1.bf16.msra.mxu0 %v3631
    %4031 = vmatprep.subr.bf16.mxu0 %v3639
    %4032 = vmatpush1.bf16.msra.mxu0 %v3638
    %4033 = vmatprep.subr.bf16.mxu0 %v3646
    %4034 = vmatpush1.bf16.msra.mxu0 %v3645
    %4035 = vmatprep.mubr.bf16.mxu0 %v2428
    %4036 = vmatmul.mubr.bf16.gmra.mrb[0].mxu0 %v2427
    %v4037 = vpop.f32.mrb[0].mxu0
    %v4038 = vadd.f32 %v3995, %v4037
    %v4039 = vpop.f32.mrb[0].mxu0
    %v4040 = vadd.f32 %v3997, %v4039
    %v4041 = vpop.f32.mrb[0].mxu0
    %v4042 = vadd.f32 %v3999, %v4041
    %v4043 = vpop.f32.mrb[0].mxu0
    %v4044 = vadd.f32 %v4001, %v4043
    %4045 = vdwg.mxu0
    %4046 = vmatprep.subr.bf16.mxu0 %v3431
    %4047 = vmatpush1.bf16.msra.mxu0 %v3430
    %4048 = vmatprep.subr.bf16.mxu0 %v3438
    %4049 = vmatpush1.bf16.msra.mxu0 %v3437
    %4050 = vmatprep.subr.bf16.mxu0 %v3445
    %4051 = vmatpush1.bf16.msra.mxu0 %v3444
    %4052 = vmatprep.subr.bf16.mxu0 %v3452
    %4053 = vmatpush1.bf16.msra.mxu0 %v3451
    %4054 = vmatprep.subr.bf16.mxu0 %v3459
    %4055 = vmatpush1.bf16.msra.mxu0 %v3458
    %4056 = vmatprep.subr.bf16.mxu0 %v3466
    %4057 = vmatpush1.bf16.msra.mxu0 %v3465
    %4058 = vmatprep.subr.bf16.mxu0 %v3473
    %4059 = vmatpush1.bf16.msra.mxu0 %v3472
    %4060 = vmatprep.subr.bf16.mxu0 %v3480
    %4061 = vmatpush1.bf16.msra.mxu0 %v3479
    %4062 = vmatprep.subr.bf16.mxu0 %v3487
    %4063 = vmatpush1.bf16.msra.mxu0 %v3486
    %4064 = vmatprep.subr.bf16.mxu0 %v3494
    %4065 = vmatpush1.bf16.msra.mxu0 %v3493
    %4066 = vmatprep.subr.bf16.mxu0 %v3501
    %4067 = vmatpush1.bf16.msra.mxu0 %v3500
    %4068 = vmatprep.subr.bf16.mxu0 %v3508
    %4069 = vmatpush1.bf16.msra.mxu0 %v3507
    %4070 = vmatprep.subr.bf16.mxu0 %v3515
    %4071 = vmatpush1.bf16.msra.mxu0 %v3514
    %4072 = vmatprep.subr.bf16.mxu0 %v3522
    %4073 = vmatpush1.bf16.msra.mxu0 %v3521
    %4074 = vmatprep.subr.bf16.mxu0 %v3529
    %4075 = vmatpush1.bf16.msra.mxu0 %v3528
    %4076 = vmatprep.subr.bf16.mxu0 %v3536
    %4077 = vmatpush1.bf16.msra.mxu0 %v3535
    %4078 = vmatprep.mubr.bf16.mxu0 %v2426
    %4079 = vmatmul.mubr.bf16.gmra.mrb[0].mxu0 %v2425
    %v4080 = vpop.f32.mrb[0].mxu0
    %v4081 = vadd.f32 %v2706, %v4080
    %v4082 = vpop.f32.mrb[0].mxu0
    %v4083 = vadd.f32 %v2710, %v4082
    %v4084 = vpop.f32.mrb[0].mxu0
    %v4085 = vadd.f32 %v2706, %v4084
    %v4086 = vpop.f32.mrb[0].mxu0
    %v4087 = vadd.f32 %v2710, %v4086
    %4088 = vdwg.mxu0
    %4089 = vmatprep.subr.bf16.mxu0 %v3543
    %4090 = vmatpush1.bf16.msra.mxu0 %v3542
    %4091 = vmatprep.subr.bf16.mxu0 %v3550
    %4092 = vmatpush1.bf16.msra.mxu0 %v3549
    %4093 = vmatprep.subr.bf16.mxu0 %v3557
    %4094 = vmatpush1.bf16.msra.mxu0 %v3556
    %4095 = vmatprep.subr.bf16.mxu0 %v3564
    %4096 = vmatpush1.bf16.msra.mxu0 %v3563
    %4097 = vmatprep.subr.bf16.mxu0 %v3571
    %4098 = vmatpush1.bf16.msra.mxu0 %v3570
    %4099 = vmatprep.subr.bf16.mxu0 %v3578
    %4100 = vmatpush1.bf16.msra.mxu0 %v3577
    %4101 = vmatprep.subr.bf16.mxu0 %v3585
    %4102 = vmatpush1.bf16.msra.mxu0 %v3584
    %4103 = vmatprep.subr.bf16.mxu0 %v3592
    %4104 = vmatpush1.bf16.msra.mxu0 %v3591
    %4105 = vmatprep.subr.bf16.mxu0 %v3599
    %4106 = vmatpush1.bf16.msra.mxu0 %v3598
    %4107 = vmatprep.subr.bf16.mxu0 %v3606
    %4108 = vmatpush1.bf16.msra.mxu0 %v3605
    %4109 = vmatprep.subr.bf16.mxu0 %v3613
    %4110 = vmatpush1.bf16.msra.mxu0 %v3612
    %4111 = vmatprep.subr.bf16.mxu0 %v3620
    %4112 = vmatpush1.bf16.msra.mxu0 %v3619
    %4113 = vmatprep.subr.bf16.mxu0 %v3627
    %4114 = vmatpush1.bf16.msra.mxu0 %v3626
    %4115 = vmatprep.subr.bf16.mxu0 %v3634
    %4116 = vmatpush1.bf16.msra.mxu0 %v3633
    %4117 = vmatprep.subr.bf16.mxu0 %v3641
    %4118 = vmatpush1.bf16.msra.mxu0 %v3640
    %4119 = vmatprep.subr.bf16.mxu0 %v3648
    %4120 = vmatpush1.bf16.msra.mxu0 %v3647
    %4121 = vmatprep.mubr.bf16.mxu0 %v2428
    %4122 = vmatmul.mubr.bf16.gmra.mrb[0].mxu0 %v2427
    %v4123 = vpop.f32.mrb[0].mxu0
    %v4124 = vadd.f32 %v4081, %v4123
    %v4125 = vpop.f32.mrb[0].mxu0
    %v4126 = vadd.f32 %v4083, %v4125
    %v4127 = vpop.f32.mrb[0].mxu0
    %v4128 = vadd.f32 %v4085, %v4127
    %v4129 = vpop.f32.mrb[0].mxu0
    %v4130 = vadd.f32 %v4087, %v4129
    %4131 = vdwg.mxu0
    %4132 = vmatprep.subr.bf16.mxu0 0
    %4133 = vmatpush1.bf16.msra.mxu0 %v3432
    %4134 = vmatprep.subr.bf16.mxu0 0
    %4135 = vmatpush1.bf16.msra.mxu0 %v3439
    %4136 = vmatprep.subr.bf16.mxu0 0
    %4137 = vmatpush1.bf16.msra.mxu0 %v3446
    %4138 = vmatprep.subr.bf16.mxu0 0
    %4139 = vmatpush1.bf16.msra.mxu0 %v3453
    %4140 = vmatprep.subr.bf16.mxu0 0
    %4141 = vmatpush1.bf16.msra.mxu0 %v3460
    %4142 = vmatprep.subr.bf16.mxu0 0
    %4143 = vmatpush1.bf16.msra.mxu0 %v3467
    %4144 = vmatprep.subr.bf16.mxu0 0
    %4145 = vmatpush1.bf16.msra.mxu0 %v3474
    %4146 = vmatprep.subr.bf16.mxu0 0
    %4147 = vmatpush1.bf16.msra.mxu0 %v3481
    %4148 = vmatprep.subr.bf16.mxu0 0
    %4149 = vmatpush1.bf16.msra.mxu0 %v3488
    %4150 = vmatprep.subr.bf16.mxu0 0
    %4151 = vmatpush1.bf16.msra.mxu0 %v3495
    %4152 = vmatprep.subr.bf16.mxu0 0
    %4153 = vmatpush1.bf16.msra.mxu0 %v3502
    %4154 = vmatprep.subr.bf16.mxu0 0
    %4155 = vmatpush1.bf16.msra.mxu0 %v3509
    %4156 = vmatprep.subr.bf16.mxu0 0
    %4157 = vmatpush1.bf16.msra.mxu0 %v3516
    %4158 = vmatprep.subr.bf16.mxu0 0
    %4159 = vmatpush1.bf16.msra.mxu0 %v3523
    %4160 = vmatprep.subr.bf16.mxu0 0
    %4161 = vmatpush1.bf16.msra.mxu0 %v3530
    %4162 = vmatprep.subr.bf16.mxu0 0
    %4163 = vmatpush1.bf16.msra.mxu0 %v3537
    %4164 = vmatprep.mubr.bf16.mxu0 %v2426
    %4165 = vmatmul.mubr.bf16.gmra.mrb[0].mxu0 %v2425
    %v4166 = vpop.f32.mrb[0].mxu0
    %v4167 = vadd.f32 %v2714, %v4166
    %v4168 = vpop.f32.mrb[0].mxu0
    %v4169 = vpop.f32.mrb[0].mxu0
    %v4170 = vadd.f32 %v2714, %v4169
    %v4171 = vpop.f32.mrb[0].mxu0
    %4172 = vdwg.mxu0
    %4173 = vmatprep.subr.bf16.mxu0 0
    %4174 = vmatpush1.bf16.msra.mxu0 %v3544
    %4175 = vmatprep.subr.bf16.mxu0 0
    %4176 = vmatpush1.bf16.msra.mxu0 %v3551
    %4177 = vmatprep.subr.bf16.mxu0 0
    %4178 = vmatpush1.bf16.msra.mxu0 %v3558
    %4179 = vmatprep.subr.bf16.mxu0 0
    %4180 = vmatpush1.bf16.msra.mxu0 %v3565
    %4181 = vmatprep.subr.bf16.mxu0 0
    %4182 = vmatpush1.bf16.msra.mxu0 %v3572
    %4183 = vmatprep.subr.bf16.mxu0 0
    %4184 = vmatpush1.bf16.msra.mxu0 %v3579
    %4185 = vmatprep.subr.bf16.mxu0 0
    %4186 = vmatpush1.bf16.msra.mxu0 %v3586
    %4187 = vmatprep.subr.bf16.mxu0 0
    %4188 = vmatpush1.bf16.msra.mxu0 %v3593
    %4189 = vmatprep.subr.bf16.mxu0 0
    %4190 = vmatpush1.bf16.msra.mxu0 %v3600
    %4191 = vmatprep.subr.bf16.mxu0 0
    %4192 = vmatpush1.bf16.msra.mxu0 %v3607
    %4193 = vmatprep.subr.bf16.mxu0 0
    %4194 = vmatpush1.bf16.msra.mxu0 %v3614
    %4195 = vmatprep.subr.bf16.mxu0 0
    %4196 = vmatpush1.bf16.msra.mxu0 %v3621
    %4197 = vmatprep.subr.bf16.mxu0 0
    %4198 = vmatpush1.bf16.msra.mxu0 %v3628
    %4199 = vmatprep.subr.bf16.mxu0 0
    %4200 = vmatpush1.bf16.msra.mxu0 %v3635
    %4201 = vmatprep.subr.bf16.mxu0 0
    %4202 = vmatpush1.bf16.msra.mxu0 %v3642
    %4203 = vmatprep.subr.bf16.mxu0 0
    %4204 = vmatpush1.bf16.msra.mxu0 %v3649
    %4205 = vmatprep.mubr.bf16.mxu0 %v2428
    %4206 = vmatmul.mubr.bf16.gmra.mrb[0].mxu0 %v2427
    %v4207 = vpop.f32.mrb[0].mxu0
    %v4208 = vadd.f32 %v4167, %v4207
    %v4209 = vpop.f32.mrb[0].mxu0
    %v4210 = vpop.f32.mrb[0].mxu0
    %v4211 = vadd.f32 %v4170, %v4210
    %v4212 = vpop.f32.mrb[0].mxu0
    %4213 = vdwg.mxu0
    %v4214 = vsub.f32 0.0, %v3952
    %v4215 = vsub.f32 0.0, %v3954
    %v4216 = vsub.f32 0.0, %v4038
    %v4217 = vsub.f32 0.0, %v4040
    %v4218 = vsub.f32 0.0, %v4124
    %v4219 = vsub.f32 0.0, %v4126
    %v4220 = vsub.f32 0.0, %v4208
    %v4221 = vsub.f32 0.0, %v3956
    %v4222 = vsub.f32 0.0, %v3958
    %v4223 = vsub.f32 0.0, %v4042
    %v4224 = vsub.f32 0.0, %v4044
    %v4225 = vsub.f32 0.0, %v4128
    %v4226 = vsub.f32 0.0, %v4130
    %v4227 = vsub.f32 0.0, %v4211
    %v4228 = vmul.f32 %v4214, 1.442695
    %v4229 = vpow.pop %v4228
    %v4230 = vmul.f32 %v4215, 1.442695
    %v4231 = vpow.pop %v4230
    %v4232 = vmul.f32 %v4216, 1.442695
    %v4233 = vpow.pop %v4232
    %v4234 = vmul.f32 %v4217, 1.442695
    %v4235 = vpow.pop %v4234
    %v4236 = vmul.f32 %v4218, 1.442695
    %v4237 = vpow.pop %v4236
    %v4238 = vmul.f32 %v4219, 1.442695
    %v4239 = vpow.pop %v4238
    %v4240 = vmul.f32 %v4220, 1.442695
    %v4241 = vpow.pop %v4240
    %v4242 = vmul.f32 %v4221, 1.442695
    %v4243 = vpow.pop %v4242
    %v4244 = vmul.f32 %v4222, 1.442695
    %v4245 = vpow.pop %v4244
    %v4246 = vmul.f32 %v4223, 1.442695
    %v4247 = vpow.pop %v4246
    %v4248 = vmul.f32 %v4224, 1.442695
    %v4249 = vpow.pop %v4248
    %v4250 = vmul.f32 %v4225, 1.442695
    %v4251 = vpow.pop %v4250
    %v4252 = vmul.f32 %v4226, 1.442695
    %v4253 = vpow.pop %v4252
    %v4254 = vmul.f32 %v4227, 1.442695
    %v4255 = vpow.pop %v4254
    %v4256 = vadd.f32 %v4229, 1.0
    %v4257 = vadd.f32 %v4231, 1.0
    %v4258 = vadd.f32 %v4233, 1.0
    %v4259 = vadd.f32 %v4235, 1.0
    %v4260 = vadd.f32 %v4237, 1.0
    %v4261 = vadd.f32 %v4239, 1.0
    %v4262 = vadd.f32 %v4241, 1.0
    %v4263 = vadd.f32 %v4243, 1.0
    %v4264 = vadd.f32 %v4245, 1.0
    %v4265 = vadd.f32 %v4247, 1.0
    %v4266 = vadd.f32 %v4249, 1.0
    %v4267 = vadd.f32 %v4251, 1.0
    %v4268 = vadd.f32 %v4253, 1.0
    %v4269 = vadd.f32 %v4255, 1.0
    %v4270 = vrcp.pop %v4256
    %v4271 = vrcp.pop %v4257
    %v4272 = vrcp.pop %v4258
    %v4273 = vrcp.pop %v4259
    %v4274 = vrcp.pop %v4260
    %v4275 = vrcp.pop %v4261
    %v4276 = vrcp.pop %v4262
    %v4277 = vrcp.pop %v4263
    %v4278 = vrcp.pop %v4264
    %v4279 = vrcp.pop %v4265
    %v4280 = vrcp.pop %v4266
    %v4281 = vrcp.pop %v4267
    %v4282 = vrcp.pop %v4268
    %v4283 = vrcp.pop %v4269
    %v4284 = vpack.c.bf16 %v4277, %v4270
    %v4285 = vpack.c.bf16 %v4278, %v4271
    %v4286 = vpack.c.bf16 %v4279, %v4272
    %v4287 = vpack.c.bf16 %v4280, %v4273
    %v4288 = vpack.c.bf16 %v4281, %v4274
    %v4289 = vpack.c.bf16 %v4282, %v4275
    %v4290 = vpack.c.bf16 %v4283, %v4276
    %v4298 = vunpack.c.l.b16 %v4284
    %v4299 = vunpack.c.l.b16 %v4285
    %v4300 = vunpack.c.l.b16 %v4286
    %v4301 = vunpack.c.l.b16 %v4287
    %v4302 = vunpack.c.l.b16 %v4288
    %v4303 = vunpack.c.l.b16 %v4289
    %v4304 = vunpack.c.l.b16 %v4290
    %v4305 = vunpack.c.h.b16 %v4284
    %v4306 = vunpack.c.h.b16 %v4285
    %v4307 = vunpack.c.h.b16 %v4286
    %v4308 = vunpack.c.h.b16 %v4287
    %v4309 = vunpack.c.h.b16 %v4288
    %v4310 = vunpack.c.h.b16 %v4289
    %v4311 = vunpack.c.h.b16 %v4290
    %v4312 = vpack.c.b16 %v4299, %v4298
    %v4313 = vpack.c.b16 %v4301, %v4300
    %v4314 = vpack.c.b16 %v4303, %v4302
    %v4315 = vpack.c.b16 %v4304, %v4304
    %v4316 = vpack.c.b16 %v4306, %v4305
    %v4317 = vpack.c.b16 %v4308, %v4307
    %v4318 = vpack.c.b16 %v4310, %v4309
    %v4319 = vpack.c.b16 %v4311, %v4311
    %4328 = vst [vmem:[#allocation2] sm:$0xff] %v4312
    %4329 = vst [vmem:[#allocation2 + $0x8] sm:$0xff] %v4313
    %4330 = vst [vmem:[#allocation2 + $0x10] sm:$0xff] %v4314
    %vm4331 = vcmask 125952
    %4332 = vst.msk [vmem:[#allocation2 + $0x18] sm:$0xf] %vm4331, %v4315
    %4333 = vst [vmem:[#allocation2 + $0x1c] sm:$0xff] %v4316
    %4334 = vst [vmem:[#allocation2 + $0x24] sm:$0xff] %v4317
    %4335 = vst [vmem:[#allocation2 + $0x2c] sm:$0xff] %v4318
    %4336 = vst.msk [vmem:[#allocation2 + $0x34] sm:$0xf] %vm4331, %v4319
    %vm4337 = vcmask 80896
    %4338 = vst.msk [vmem:[#allocation4] sm:$0xff] %vm4337, %v2094
    %4339 = vst.msk [vmem:[#allocation4 + $0x8] sm:$0xff] %vm4337, %v2098
    %4340 = vst.msk [vmem:[#allocation6] sm:$0xff] %vm4337, %v2096
    %4341 = vst.msk [vmem:[#allocation6 + $0x8] sm:$0xff] %vm4337, %v2100
    // Predicated region
    $region42: #{tpu_custom_call.1} parent=1 // pred_check
      _
    $region43: #{tpu_custom_call.1} parent=1 // pred_check_branch
      %4343 = sbr.rel (0) target = $region45
    $region44: #{tpu_custom_call.1} parent=1 // pred_region
      %s4345 = ssub.s32 896, 896
      %4346 = vsyncadd [#allocation3], %s4345
      %s4347 = sshll.u32 [#allocation2], 4
      %s4348 = int_to_ptr.vmem [resolvable:$true] %s4347
      %4353 = dma.vmem_to_hbm [thread:$0]  %s4348, 896, %s10, [#allocation3], 448, 448, 28
    $region45: #{tpu_custom_call.1} parent=1 // pred_fallthru
      _
    // Predicated region
    $region46: #{tpu_custom_call.1} parent=1 // pred_check
      _
    $region47: #{tpu_custom_call.1} parent=1 // pred_check_branch
      %4355 = sbr.rel (0) target = $region49
    $region48: #{tpu_custom_call.1} parent=1 // pred_region
      %s4357 = ssub.s32 256, 256
      %4358 = vsyncadd [#allocation5], %s4357
      %s4359 = sshll.u32 [#allocation4], 4
      %s4360 = int_to_ptr.vmem [resolvable:$true] %s4359
      %4365 = dma.vmem_to_hbm [thread:$0]  %s4360, 256, %s11, [#allocation5], 128, 128, 8
    $region49: #{tpu_custom_call.1} parent=1 // pred_fallthru
      _
    // Predicated region
    $region50: #{tpu_custom_call.1} parent=1 // pred_check
      _
    $region51: #{tpu_custom_call.1} parent=1 // pred_check_branch
      %4367 = sbr.rel (0) target = $region53
    $region52: #{tpu_custom_call.1} parent=1 // pred_region
      %s4369 = ssub.s32 256, 256
      %4370 = vsyncadd [#allocation5], %s4369
      %s4371 = sshll.u32 [#allocation6], 4
      %s4372 = int_to_ptr.vmem [resolvable:$true] %s4371
      %4377 = dma.vmem_to_hbm [thread:$0]  %s4372, 256, %s12, [#allocation5], 128, 128, 8
    $region53: #{tpu_custom_call.1} parent=1 // pred_fallthru
      _
    // Predicated region
    $region54: #{tpu_custom_call.1} parent=1 // pred_check
      _
    $region55: #{tpu_custom_call.1} parent=1 // pred_check_branch
      %4379 = sbr.rel (0) target = $region57
    $region56: #{tpu_custom_call.1} parent=1 // pred_region
      %4380 = dma.done [#allocation3], 896
    $region57: #{tpu_custom_call.1} parent=1 // pred_fallthru
      _
    // Predicated region
    $region58: #{tpu_custom_call.1} parent=1 // pred_check
      _
    $region59: #{tpu_custom_call.1} parent=1 // pred_check_branch
      %4382 = sbr.rel (0) target = $region61
    $region60: #{tpu_custom_call.1} parent=1 // pred_region
      %4383 = dma.done [#allocation5], 256
    $region61: #{tpu_custom_call.1} parent=1 // pred_fallthru
      _
    // Predicated region
    $region62: #{tpu_custom_call.1} parent=1 // pred_check
      _
    $region63: #{tpu_custom_call.1} parent=1 // pred_check_branch
      %4385 = sbr.rel (0) target = $region65
    $region64: #{tpu_custom_call.1} parent=1 // pred_region
      %4386 = dma.done [#allocation5], 256
    $region65: #{tpu_custom_call.1} parent=1 // pred_fallthru
      _
    %4387 = vsyncpa [#allocation3], 1
    %4388 = vsyncpa [#allocation5], 1

</llo_original>
